<compile_context>
chip_gen: v7x
topology: tpu7x:2x2x1
jax: 0.10.0
libtpu: 0.0.40
codegen_flags: <defaults>
</compile_context>

<pallas_src>
import functools

import jax
import jax.numpy as jnp
from jax import lax
from jax.experimental import pallas as pl
from jax.experimental.pallas import tpu as pltpu

BF16 = jnp.bfloat16  # storage / MXU operand dtype; accumulation & norm/softmax math in f32


# ----------------------------- in-kernel helpers -----------------------------

def _layernorm_f32(x_f32, g, b, eps=1e-5):
    # PyTorch nn.LayerNorm over last dim (biased variance, eps=1e-5), f32 math.
    mu = jnp.mean(x_f32, axis=-1, keepdims=True)
    xc = x_f32 - mu
    var = jnp.mean(xc * xc, axis=-1, keepdims=True)
    inv = lax.rsqrt(var + eps)
    return xc * inv * g.astype(jnp.float32) + b.astype(jnp.float32)


def _gated_mlp_f32(x_bf, w1_ref, b1_ref, w3_ref, b3_ref, w2_ref, b2_ref):
    # Mlp.forward (eval): fc2( silu(fc1(x)) * fc3(x) ); bf16 MXU operands, f32 accumulation.
    h1 = (jnp.dot(x_bf, w1_ref[...], preferred_element_type=jnp.float32)
          + b1_ref[...].astype(jnp.float32))
    h1 = h1 * jax.nn.sigmoid(h1)                                   # SiLU in f32
    h3 = (jnp.dot(x_bf, w3_ref[...], preferred_element_type=jnp.float32)
          + b3_ref[...].astype(jnp.float32))
    h = (h1 * h3).astype(x_bf.dtype)
    return (jnp.dot(h, w2_ref[...], preferred_element_type=jnp.float32)
            + b2_ref[...].astype(jnp.float32))


_NT_DIMS = (((1,), (1,)), ((), ()))  # contract last dims: q @ k^T without a transpose


# ----------------------------- Pallas kernels -----------------------------

def to_patch_kernel(x_ref, w1_ref, b1_ref, w3_ref, b3_ref, w2_ref, b2_ref, pos_ref, o_ref):
    # to_patch Mlp fused with the pos_embedding[:, 1:-1] add. One batch row per grid step.
    x = x_ref[0]                                                   # (Np, W) bf16
    y = _gated_mlp_f32(x, w1_ref, b1_ref, w3_ref, b3_ref, w2_ref, b2_ref)
    o_ref[0] = (y + pos_ref[0].astype(jnp.float32)).astype(o_ref.dtype)


def block_kernel(x_ref,
                 ln1g_ref, ln1b_ref,
                 wq_ref, bq_ref, wk_ref, bk_ref, wv_ref, bv_ref,
                 wo_ref, bo_ref,
                 ln2g_ref, ln2b_ref,
                 w1_ref, b1_ref, w3_ref, b3_ref, w2_ref, b2_ref,
                 o_ref, *, heads):
    # One whole TransformerBlock for one batch element; residual stream stays in VMEM/f32.
    n = x_ref.shape[1]
    width = x_ref.shape[2]

    x = x_ref[0].astype(jnp.float32)                               # (N, W) residual stream

    # ---- PreNorm(ln1) -> multi-head self-attention -> out-proj -> +residual ----
    h = _layernorm_f32(x, ln1g_ref[...], ln1b_ref[...]).astype(BF16)
    acc = jnp.zeros((n, width), jnp.float32)
    for hh in range(heads):                                        # static unroll over heads
        # per-head projections; softmax scale is pre-folded into wq/bq at init
        qh = (jnp.dot(h, wq_ref[hh], preferred_element_type=jnp.float32)
              + bq_ref[hh].astype(jnp.float32))                    # (N, dh)
        kh = (jnp.dot(h, wk_ref[hh], preferred_element_type=jnp.float32)
              + bk_ref[hh].astype(jnp.float32))
        vh = (jnp.dot(h, wv_ref[hh], preferred_element_type=jnp.float32)
              + bv_ref[hh].astype(jnp.float32)).astype(BF16)
        dots = lax.dot_general(qh.astype(BF16), kh.astype(BF16), _NT_DIMS,
                               preferred_element_type=jnp.float32)  # (N, N)
        dots = dots - jnp.max(dots, axis=-1, keepdims=True)
        e = jnp.exp(dots)
        p = e * pl.reciprocal(jnp.sum(e, axis=-1, keepdims=True), approx=True)
        oh = jnp.dot(p.astype(BF16), vh, preferred_element_type=jnp.float32)  # (N, dh)
        # out-projection accumulated per head (equivalent to concat(h d) @ W_out)
        acc = acc + jnp.dot(oh.astype(BF16), wo_ref[hh],
                            preferred_element_type=jnp.float32)
    x = x + acc + bo_ref[...].astype(jnp.float32)                  # residual 1

    # ---- PreNorm(ln2) -> gated MLP -> +residual ----
    h2 = _layernorm_f32(x, ln2g_ref[...], ln2b_ref[...]).astype(BF16)
    x = x + _gated_mlp_f32(h2, w1_ref, b1_ref, w3_ref, b3_ref, w2_ref, b2_ref)

    o_ref[0] = x.astype(o_ref.dtype)


def head_kernel(x_ref, g_ref, b_ref, w1_ref, b1_ref, w3_ref, b3_ref, w2_ref, b2_ref, o_ref):
    # final LayerNorm fused into the head Mlp.
    h = _layernorm_f32(x_ref[0].astype(jnp.float32), g_ref[...], b_ref[...]).astype(BF16)
    o_ref[0] = _gated_mlp_f32(h, w1_ref, b1_ref, w3_ref, b3_ref, w2_ref, b2_ref
                              ).astype(o_ref.dtype)


# ----------------------------- Pallas wrappers -----------------------------

def _bcast_spec(shape):
    # whole array, same block for every grid step (weights / biases / pos embeds)
    return pl.BlockSpec(shape, lambda b, _n=len(shape): (0,) * _n)


def to_patch_pallas(x, p, pos_mid):
    B, Np, W = x.shape
    in_specs = [pl.BlockSpec((1, Np, W), lambda b: (b, 0, 0)),
                _bcast_spec(p["fc1"]["w"].shape), _bcast_spec(p["fc1"]["b"].shape),
                _bcast_spec(p["fc3"]["w"].shape), _bcast_spec(p["fc3"]["b"].shape),
                _bcast_spec(p["fc2"]["w"].shape), _bcast_spec(p["fc2"]["b"].shape),
                _bcast_spec(pos_mid.shape)]
    return pl.pallas_call(
        to_patch_kernel,
        out_shape=jax.ShapeDtypeStruct((B, Np, W), x.dtype),
        grid=(B,),
        in_specs=in_specs,
        out_specs=pl.BlockSpec((1, Np, W), lambda b: (b, 0, 0)),
        compiler_params=pltpu.CompilerParams(dimension_semantics=("parallel",)),
    )(x, p["fc1"]["w"], p["fc1"]["b"], p["fc3"]["w"], p["fc3"]["b"],
      p["fc2"]["w"], p["fc2"]["b"], pos_mid)


def block_pallas(x, p, heads):
    B, N, W = x.shape
    a, ff = p["attn"], p["ff"]
    kern = functools.partial(block_kernel, heads=heads)
    in_specs = [pl.BlockSpec((1, N, W), lambda b: (b, 0, 0)),
                _bcast_spec(p["ln1"]["g"].shape), _bcast_spec(p["ln1"]["b"].shape),
                _bcast_spec(a["wq"].shape), _bcast_spec(a["bq"].shape),
                _bcast_spec(a["wk"].shape), _bcast_spec(a["bk"].shape),
                _bcast_spec(a["wv"].shape), _bcast_spec(a["bv"].shape),
                _bcast_spec(a["wo"].shape), _bcast_spec(a["bo"].shape),
                _bcast_spec(p["ln2"]["g"].shape), _bcast_spec(p["ln2"]["b"].shape),
                _bcast_spec(ff["fc1"]["w"].shape), _bcast_spec(ff["fc1"]["b"].shape),
                _bcast_spec(ff["fc3"]["w"].shape), _bcast_spec(ff["fc3"]["b"].shape),
                _bcast_spec(ff["fc2"]["w"].shape), _bcast_spec(ff["fc2"]["b"].shape)]
    return pl.pallas_call(
        kern,
        out_shape=jax.ShapeDtypeStruct((B, N, W), x.dtype),
        grid=(B,),
        in_specs=in_specs,
        out_specs=pl.BlockSpec((1, N, W), lambda b: (b, 0, 0)),
        compiler_params=pltpu.CompilerParams(dimension_semantics=("parallel",)),
    )(x,
      p["ln1"]["g"], p["ln1"]["b"],
      a["wq"], a["bq"], a["wk"], a["bk"], a["wv"], a["bv"], a["wo"], a["bo"],
      p["ln2"]["g"], p["ln2"]["b"],
      ff["fc1"]["w"], ff["fc1"]["b"], ff["fc3"]["w"], ff["fc3"]["b"],
      ff["fc2"]["w"], ff["fc2"]["b"])


def head_pallas(x, ln, p):
    B, Np, W = x.shape
    out_dim = p["fc2"]["w"].shape[1]
    in_specs = [pl.BlockSpec((1, Np, W), lambda b: (b, 0, 0)),
                _bcast_spec(ln["g"].shape), _bcast_spec(ln["b"].shape),
                _bcast_spec(p["fc1"]["w"].shape), _bcast_spec(p["fc1"]["b"].shape),
                _bcast_spec(p["fc3"]["w"].shape), _bcast_spec(p["fc3"]["b"].shape),
                _bcast_spec(p["fc2"]["w"].shape), _bcast_spec(p["fc2"]["b"].shape)]
    return pl.pallas_call(
        head_kernel,
        out_shape=jax.ShapeDtypeStruct((B, Np, out_dim), jnp.float32),
        grid=(B,),
        in_specs=in_specs,
        out_specs=pl.BlockSpec((1, Np, out_dim), lambda b: (b, 0, 0)),
        compiler_params=pltpu.CompilerParams(dimension_semantics=("parallel",)),
    )(x, ln["g"], ln["b"], p["fc1"]["w"], p["fc1"]["b"],
      p["fc3"]["w"], p["fc3"]["b"], p["fc2"]["w"], p["fc2"]["b"])


# ----------------------------- Model (thin glue + kernels) -----------------------------

def transformer_forward(series, params, *, depth, heads):
    B, Np, W = series.shape
    pos = params["pos_embedding"]                                  # (1, Np+2, W)

    # to_patch Mlp fused with the mid positional-embedding add
    x = to_patch_pallas(series.astype(BF16), params["to_patch"], pos[:, 1:-1, :])

    # separator tokens + their positional embeddings (tiny once-per-forward glue)
    sep = params["sep_embedding"][None, None, :]                   # (1, 1, W)
    left = jnp.broadcast_to(sep + pos[:, :1, :], (B, 1, W))
    right = jnp.broadcast_to(sep + pos[:, -1:, :], (B, 1, W))
    x = jnp.concatenate([left, x, right], axis=1)                  # (B, Np+2, W)

    # fused transformer blocks
    for i in range(depth):
        x = block_pallas(x, params[f"block{i}"], heads)

    # drop separators, fused final LayerNorm + head Mlp
    x = x[:, 1:-1, :]
    return head_pallas(x, params["norm"], params["head"])


# ----------------------------- Parameter init -----------------------------

def init_linear(key, din, dout, scale=0.05):
    kw, kb = jax.random.split(key)
    return {"w": jax.random.normal(kw, (din, dout), jnp.float32) * scale,
            "b": jax.random.normal(kb, (1, dout), jnp.float32) * scale}


def init_mlp(key, din, hidden, dout):
    k1, k2, k3 = jax.random.split(key, 3)
    return {"fc1": init_linear(k1, din, hidden),
            "fc2": init_linear(k2, hidden, dout),
            "fc3": init_linear(k3, din, hidden)}


def init_ln(dim):
    return {"g": jnp.ones((1, dim), jnp.float32),
            "b": jnp.zeros((1, dim), jnp.float32)}


def init_attention(key, width, heads, dim_head):
    # Build the PyTorch-equivalent combined qkv / out-proj weights, then re-layout per
    # head ((H, W, dh) / (H, dh, W)) and fold the softmax scale into the q projection.
    inner = heads * dim_head
    k1, k2 = jax.random.split(key)
    qkv = init_linear(k1, width, 3 * inner)
    out = init_linear(k2, inner, width)
    sm_scale = dim_head ** (-0.5)

    w, b = qkv["w"], qkv["b"][0]

    def per_head(wc, bc, s=1.0):
        wh = (wc * s).reshape(width, heads, dim_head).transpose(1, 0, 2)   # (H, W, dh)
        bh = (bc * s).reshape(heads, 1, dim_head)                          # (H, 1, dh)
        return wh, bh

    wq, bq = per_head(w[:, :inner], b[:inner], sm_scale)          # scale folded into q
    wk, bk = per_head(w[:, inner:2 * inner], b[inner:2 * inner])
    wv, bv = per_head(w[:, 2 * inner:], b[2 * inner:])
    wo = out["w"].reshape(heads, dim_head, width)                 # (H, dh, W)
    bo = out["b"]                                                 # (1, W)
    return {"wq": wq, "bq": bq, "wk": wk, "bk": bk, "wv": wv, "bv": bv,
            "wo": wo, "bo": bo}


def init_block(key, width, mlp_dim, heads, dim_head):
    k1, k2 = jax.random.split(key)
    return {"ln1": init_ln(width),
            "attn": init_attention(k1, width, heads, dim_head),
            "ln2": init_ln(width),
            "ff": init_mlp(k2, width, mlp_dim, width)}


def init_transformer(key, *, num_patches, width, depth, mlp_dim, heads, dim_head, out_dim):
    keys = jax.random.split(key, depth + 4)
    params = {
        "to_patch": init_mlp(keys[0], width, mlp_dim, width),
        "pos_embedding": jax.random.normal(keys[1], (1, num_patches + 2, width), jnp.float32),
        "sep_embedding": jax.random.normal(keys[2], (width,), jnp.float32),
        "norm": init_ln(width),
        "head": init_mlp(keys[3], width, mlp_dim, out_dim),
    }
    for i in range(depth):
        params[f"block{i}"] = init_block(keys[4 + i], width, mlp_dim, heads, dim_head)
    # bf16 storage everywhere; kernels accumulate in f32 and keep LN/softmax math in f32.
    return jax.tree_util.tree_map(lambda a: a.astype(BF16), params)


# ----------------------------- Main -----------------------------

if __name__ == "__main__":
    # Small, self-consistent config (scaled-down from width=768/heads=8/dim_head=64).
    B, NUM_PATCHES, WIDTH = 2, 8, 32
    MLP_DIM, HEADS, DIM_HEAD = 64, 4, 8
    DEPTH, OUT_DIM = 2, 32

    key = jax.random.PRNGKey(0)
    k_params, k_x = jax.random.split(key)

    params = init_transformer(
        k_params, num_patches=NUM_PATCHES, width=WIDTH, depth=DEPTH,
        mlp_dim=MLP_DIM, heads=HEADS, dim_head=DIM_HEAD, out_dim=OUT_DIM)

    series = jax.random.normal(k_x, (B, NUM_PATCHES, WIDTH), jnp.float32)

    fwd = jax.jit(functools.partial(transformer_forward, depth=DEPTH, heads=HEADS))
    out = fwd(series, params)
    jax.block_until_ready(out)

    assert out.shape == (B, NUM_PATCHES, OUT_DIM), out.shape
    assert bool(jnp.all(jnp.isfinite(out)))
    # TODO(synk): Dropout / DropPath are training-only stochastic ops; inference-mode
    # (identity) semantics are what is implemented here.
    print("KERNEL_OK")
</pallas_src>

<mosaic_0001>
module attributes {stable_mosaic.version = 11 : i64} {
  func.func @to_patch_kernel(%arg0: i32, %arg1: memref<1x8x32xbf16, #tpu.memory_space<vmem>>, %arg2: memref<32x64xbf16, #tpu.memory_space<vmem>>, %arg3: memref<1x64xbf16, #tpu.memory_space<vmem>>, %arg4: memref<32x64xbf16, #tpu.memory_space<vmem>>, %arg5: memref<1x64xbf16, #tpu.memory_space<vmem>>, %arg6: memref<64x32xbf16, #tpu.memory_space<vmem>>, %arg7: memref<1x32xbf16, #tpu.memory_space<vmem>>, %arg8: memref<1x8x32xbf16, #tpu.memory_space<vmem>>, %arg9: memref<1x8x32xbf16, #tpu.memory_space<vmem>>) attributes {dimension_semantics = [#tpu.dimension_semantics<parallel>], iteration_bounds = array<i64: 2>, scalar_prefetch = 0 : i64, scratch_operands = 0 : i64, tpu.core_type = #tpu.core_type<tc>, window_params = [{transform_indices = @transform_0, window_bounds = array<i64: 1, 8, 32>}, {pipeline_mode = #tpu.pipeline_mode<synchronous>, transform_indices = @transform_1, window_bounds = array<i64: 32, 64>}, {pipeline_mode = #tpu.pipeline_mode<synchronous>, transform_indices = @transform_2, window_bounds = array<i64: 1, 64>}, {pipeline_mode = #tpu.pipeline_mode<synchronous>, transform_indices = @transform_3, window_bounds = array<i64: 32, 64>}, {pipeline_mode = #tpu.pipeline_mode<synchronous>, transform_indices = @transform_4, window_bounds = array<i64: 1, 64>}, {pipeline_mode = #tpu.pipeline_mode<synchronous>, transform_indices = @transform_5, window_bounds = array<i64: 64, 32>}, {pipeline_mode = #tpu.pipeline_mode<synchronous>, transform_indices = @transform_6, window_bounds = array<i64: 1, 32>}, {pipeline_mode = #tpu.pipeline_mode<synchronous>, transform_indices = @transform_7, window_bounds = array<i64: 1, 8, 32>}, {transform_indices = @transform_8, window_bounds = array<i64: 1, 8, 32>}]} {
    %c0 = arith.constant 0 : index
    %c0_0 = arith.constant 0 : index
    %c0_1 = arith.constant 0 : index
    %0 = vector.load %arg1[%c0, %c0_0, %c0_1] : memref<1x8x32xbf16, #tpu.memory_space<vmem>>, vector<1x8x32xbf16>
    %1 = vector.shape_cast %0 : vector<1x8x32xbf16> to vector<8x32xbf16>
    %c0_2 = arith.constant 0 : index
    %c0_3 = arith.constant 0 : index
    %2 = vector.load %arg2[%c0_2, %c0_3] : memref<32x64xbf16, #tpu.memory_space<vmem>>, vector<32x64xbf16>
    %cst = arith.constant dense<0.000000e+00> : vector<8x64xf32>
    %3 = tpu.matmul %1, %2, %cst {dimension_numbers = #tpu.dot_dimension_numbers<[1], [0], [0], [1], [0, 0, 1, 1], [], []>} : vector<8x32xbf16>, vector<32x64xbf16>, vector<8x64xf32> -> vector<8x64xf32>
    %c0_4 = arith.constant 0 : index
    %c0_5 = arith.constant 0 : index
    %4 = vector.load %arg3[%c0_4, %c0_5] : memref<1x64xbf16, #tpu.memory_space<vmem>>, vector<1x64xbf16>
    %5 = arith.extf %4 : vector<1x64xbf16> to vector<1x64xf32>
    %6 = vector.broadcast %5 : vector<1x64xf32> to vector<8x64xf32>
    %7 = arith.addf %3, %6 : vector<8x64xf32>
    %8 = arith.negf %7 : vector<8x64xf32>
    %9 = math.exp %8 : vector<8x64xf32>
    %cst_6 = arith.constant 1.000000e+00 : f32
    %10 = vector.broadcast %cst_6 : f32 to vector<8x64xf32>
    %11 = arith.addf %10, %9 : vector<8x64xf32>
    %12 = arith.divf %10, %11 : vector<8x64xf32>
    %13 = arith.mulf %7, %12 : vector<8x64xf32>
    %c0_7 = arith.constant 0 : index
    %c0_8 = arith.constant 0 : index
    %14 = vector.load %arg4[%c0_7, %c0_8] : memref<32x64xbf16, #tpu.memory_space<vmem>>, vector<32x64xbf16>
    %cst_9 = arith.constant dense<0.000000e+00> : vector<8x64xf32>
    %15 = tpu.matmul %1, %14, %cst_9 {dimension_numbers = #tpu.dot_dimension_numbers<[1], [0], [0], [1], [0, 0, 1, 1], [], []>} : vector<8x32xbf16>, vector<32x64xbf16>, vector<8x64xf32> -> vector<8x64xf32>
    %c0_10 = arith.constant 0 : index
    %c0_11 = arith.constant 0 : index
    %16 = vector.load %arg5[%c0_10, %c0_11] : memref<1x64xbf16, #tpu.memory_space<vmem>>, vector<1x64xbf16>
    %17 = arith.extf %16 : vector<1x64xbf16> to vector<1x64xf32>
    %18 = vector.broadcast %17 : vector<1x64xf32> to vector<8x64xf32>
    %19 = arith.addf %15, %18 : vector<8x64xf32>
    %20 = arith.mulf %13, %19 : vector<8x64xf32>
    %21 = arith.truncf %20 : vector<8x64xf32> to vector<8x64xbf16>
    %c0_12 = arith.constant 0 : index
    %c0_13 = arith.constant 0 : index
    %22 = vector.load %arg6[%c0_12, %c0_13] : memref<64x32xbf16, #tpu.memory_space<vmem>>, vector<64x32xbf16>
    %cst_14 = arith.constant dense<0.000000e+00> : vector<8x32xf32>
    %23 = tpu.matmul %21, %22, %cst_14 {dimension_numbers = #tpu.dot_dimension_numbers<[1], [0], [0], [1], [0, 0, 1, 1], [], []>} : vector<8x64xbf16>, vector<64x32xbf16>, vector<8x32xf32> -> vector<8x32xf32>
    %c0_15 = arith.constant 0 : index
    %c0_16 = arith.constant 0 : index
    %24 = vector.load %arg7[%c0_15, %c0_16] : memref<1x32xbf16, #tpu.memory_space<vmem>>, vector<1x32xbf16>
    %25 = arith.extf %24 : vector<1x32xbf16> to vector<1x32xf32>
    %26 = vector.broadcast %25 : vector<1x32xf32> to vector<8x32xf32>
    %27 = arith.addf %23, %26 : vector<8x32xf32>
    %c0_17 = arith.constant 0 : index
    %c0_18 = arith.constant 0 : index
    %c0_19 = arith.constant 0 : index
    %28 = vector.load %arg8[%c0_17, %c0_18, %c0_19] : memref<1x8x32xbf16, #tpu.memory_space<vmem>>, vector<1x8x32xbf16>
    %29 = vector.shape_cast %28 : vector<1x8x32xbf16> to vector<8x32xbf16>
    %30 = arith.extf %29 : vector<8x32xbf16> to vector<8x32xf32>
    %31 = arith.addf %27, %30 : vector<8x32xf32>
    %32 = arith.truncf %31 : vector<8x32xf32> to vector<8x32xbf16>
    %c0_20 = arith.constant 0 : index
    %c0_21 = arith.constant 0 : index
    %c0_22 = arith.constant 0 : index
    %33 = vector.load %arg9[%c0_20, %c0_21, %c0_22] : memref<1x8x32xbf16, #tpu.memory_space<vmem>>, vector<1x8x32xbf16>
    %34 = vector.shape_cast %33 : vector<1x8x32xbf16> to vector<8x32xbf16>
    %35 = vector.shape_cast %32 : vector<8x32xbf16> to vector<1x8x32xbf16>
    tpu.vector_store %arg9[%c0_20, %c0_21, %c0_22], %35 {strides = array<i32>} : memref<1x8x32xbf16, #tpu.memory_space<vmem>>, vector<1x8x32xbf16>,
    return
  }
  func.func @transform_0(%arg0: i32) -> (i32, i32, i32) {
    %c0_i32 = arith.constant 0 : i32
    %c0_i32_0 = arith.constant 0 : i32
    %c0_i32_1 = arith.constant 0 : i32
    return %arg0, %c0_i32, %c0_i32_0 : i32, i32, i32
  }
  func.func @transform_1(%arg0: i32) -> (i32, i32) {
    %c0_i32 = arith.constant 0 : i32
    %c0_i32_0 = arith.constant 0 : i32
    %c0_i32_1 = arith.constant 0 : i32
    return %c0_i32, %c0_i32_0 : i32, i32
  }
  func.func @transform_2(%arg0: i32) -> (i32, i32) {
    %c0_i32 = arith.constant 0 : i32
    %c0_i32_0 = arith.constant 0 : i32
    %c0_i32_1 = arith.constant 0 : i32
    return %c0_i32, %c0_i32_0 : i32, i32
  }
  func.func @transform_3(%arg0: i32) -> (i32, i32) {
    %c0_i32 = arith.constant 0 : i32
    %c0_i32_0 = arith.constant 0 : i32
    %c0_i32_1 = arith.constant 0 : i32
    return %c0_i32, %c0_i32_0 : i32, i32
  }
  func.func @transform_4(%arg0: i32) -> (i32, i32) {
    %c0_i32 = arith.constant 0 : i32
    %c0_i32_0 = arith.constant 0 : i32
    %c0_i32_1 = arith.constant 0 : i32
    return %c0_i32, %c0_i32_0 : i32, i32
  }
  func.func @transform_5(%arg0: i32) -> (i32, i32) {
    %c0_i32 = arith.constant 0 : i32
    %c0_i32_0 = arith.constant 0 : i32
    %c0_i32_1 = arith.constant 0 : i32
    return %c0_i32, %c0_i32_0 : i32, i32
  }
  func.func @transform_6(%arg0: i32) -> (i32, i32) {
    %c0_i32 = arith.constant 0 : i32
    %c0_i32_0 = arith.constant 0 : i32
    %c0_i32_1 = arith.constant 0 : i32
    return %c0_i32, %c0_i32_0 : i32, i32
  }
  func.func @transform_7(%arg0: i32) -> (i32, i32, i32) {
    %c0_i32 = arith.constant 0 : i32
    %c0_i32_0 = arith.constant 0 : i32
    %c0_i32_1 = arith.constant 0 : i32
    %c0_i32_2 = arith.constant 0 : i32
    return %c0_i32, %c0_i32_0, %c0_i32_1 : i32, i32, i32
  }
  func.func @transform_8(%arg0: i32) -> (i32, i32, i32) {
    %c0_i32 = arith.constant 0 : i32
    %c0_i32_0 = arith.constant 0 : i32
    %c0_i32_1 = arith.constant 0 : i32
    return %arg0, %c0_i32, %c0_i32_0 : i32, i32, i32
  }
}

module attributes {stable_mosaic.version = 11 : i64} {
  func.func @head_kernel(%arg0: i32, %arg1: memref<1x8x32xbf16, #tpu.memory_space<vmem>>, %arg2: memref<1x32xbf16, #tpu.memory_space<vmem>>, %arg3: memref<1x32xbf16, #tpu.memory_space<vmem>>, %arg4: memref<32x64xbf16, #tpu.memory_space<vmem>>, %arg5: memref<1x64xbf16, #tpu.memory_space<vmem>>, %arg6: memref<32x64xbf16, #tpu.memory_space<vmem>>, %arg7: memref<1x64xbf16, #tpu.memory_space<vmem>>, %arg8: memref<64x32xbf16, #tpu.memory_space<vmem>>, %arg9: memref<1x32xbf16, #tpu.memory_space<vmem>>, %arg10: memref<1x8x32xf32, #tpu.memory_space<vmem>>) attributes {dimension_semantics = [#tpu.dimension_semantics<parallel>], iteration_bounds = array<i64: 2>, scalar_prefetch = 0 : i64, scratch_operands = 0 : i64, tpu.core_type = #tpu.core_type<tc>, window_params = [{transform_indices = @transform_0, window_bounds = array<i64: 1, 8, 32>}, {pipeline_mode = #tpu.pipeline_mode<synchronous>, transform_indices = @transform_1, window_bounds = array<i64: 1, 32>}, {pipeline_mode = #tpu.pipeline_mode<synchronous>, transform_indices = @transform_2, window_bounds = array<i64: 1, 32>}, {pipeline_mode = #tpu.pipeline_mode<synchronous>, transform_indices = @transform_3, window_bounds = array<i64: 32, 64>}, {pipeline_mode = #tpu.pipeline_mode<synchronous>, transform_indices = @transform_4, window_bounds = array<i64: 1, 64>}, {pipeline_mode = #tpu.pipeline_mode<synchronous>, transform_indices = @transform_5, window_bounds = array<i64: 32, 64>}, {pipeline_mode = #tpu.pipeline_mode<synchronous>, transform_indices = @transform_6, window_bounds = array<i64: 1, 64>}, {pipeline_mode = #tpu.pipeline_mode<synchronous>, transform_indices = @transform_7, window_bounds = array<i64: 64, 32>}, {pipeline_mode = #tpu.pipeline_mode<synchronous>, transform_indices = @transform_8, window_bounds = array<i64: 1, 32>}, {transform_indices = @transform_9, window_bounds = array<i64: 1, 8, 32>}]} {
    %c0 = arith.constant 0 : index
    %c0_0 = arith.constant 0 : index
    %c0_1 = arith.constant 0 : index
    %0 = vector.load %arg1[%c0, %c0_0, %c0_1] : memref<1x8x32xbf16, #tpu.memory_space<vmem>>, vector<1x8x32xbf16>
    %1 = vector.shape_cast %0 : vector<1x8x32xbf16> to vector<8x32xbf16>
    %2 = arith.extf %1 : vector<8x32xbf16> to vector<8x32xf32>
    %c0_2 = arith.constant 0 : index
    %c0_3 = arith.constant 0 : index
    %3 = vector.load %arg2[%c0_2, %c0_3] : memref<1x32xbf16, #tpu.memory_space<vmem>>, vector<1x32xbf16>
    %c0_4 = arith.constant 0 : index
    %c0_5 = arith.constant 0 : index
    %4 = vector.load %arg3[%c0_4, %c0_5] : memref<1x32xbf16, #tpu.memory_space<vmem>>, vector<1x32xbf16>
    %cst = arith.constant dense<0.000000e+00> : vector<8xf32>
    %5 = vector.multi_reduction <add>, %2, %cst [1] : vector<8x32xf32> to vector<8xf32>
    %6 = vector.shape_cast %5 : vector<8xf32> to vector<8x1xf32>
    %cst_6 = arith.constant 3.200000e+01 : f32
    %7 = vector.broadcast %cst_6 : f32 to vector<8x1xf32>
    %8 = arith.divf %6, %7 : vector<8x1xf32>
    %9 = vector.broadcast %8 : vector<8x1xf32> to vector<8x32xf32>
    %10 = arith.subf %2, %9 : vector<8x32xf32>
    %11 = arith.mulf %10, %10 : vector<8x32xf32>
    %cst_7 = arith.constant dense<0.000000e+00> : vector<8xf32>
    %12 = vector.multi_reduction <add>, %11, %cst_7 [1] : vector<8x32xf32> to vector<8xf32>
    %13 = vector.shape_cast %12 : vector<8xf32> to vector<8x1xf32>
    %cst_8 = arith.constant 3.200000e+01 : f32
    %14 = vector.broadcast %cst_8 : f32 to vector<8x1xf32>
    %15 = arith.divf %13, %14 : vector<8x1xf32>
    %cst_9 = arith.constant 9.99999974E-6 : f32
    %16 = vector.broadcast %cst_9 : f32 to vector<8x1xf32>
    %17 = arith.addf %15, %16 : vector<8x1xf32>
    %18 = math.rsqrt %17 : vector<8x1xf32>
    %19 = vector.broadcast %18 : vector<8x1xf32> to vector<8x32xf32>
    %20 = arith.mulf %10, %19 : vector<8x32xf32>
    %21 = arith.extf %3 : vector<1x32xbf16> to vector<1x32xf32>
    %22 = vector.broadcast %21 : vector<1x32xf32> to vector<8x32xf32>
    %23 = arith.mulf %20, %22 : vector<8x32xf32>
    %24 = arith.extf %4 : vector<1x32xbf16> to vector<1x32xf32>
    %25 = vector.broadcast %24 : vector<1x32xf32> to vector<8x32xf32>
    %26 = arith.addf %23, %25 : vector<8x32xf32>
    %27 = arith.truncf %26 : vector<8x32xf32> to vector<8x32xbf16>
    %c0_10 = arith.constant 0 : index
    %c0_11 = arith.constant 0 : index
    %28 = vector.load %arg4[%c0_10, %c0_11] : memref<32x64xbf16, #tpu.memory_space<vmem>>, vector<32x64xbf16>
    %cst_12 = arith.constant dense<0.000000e+00> : vector<8x64xf32>
    %29 = tpu.matmul %27, %28, %cst_12 {dimension_numbers = #tpu.dot_dimension_numbers<[1], [0], [0], [1], [0, 0, 1, 1], [], []>} : vector<8x32xbf16>, vector<32x64xbf16>, vector<8x64xf32> -> vector<8x64xf32>
    %c0_13 = arith.constant 0 : index
    %c0_14 = arith.constant 0 : index
    %30 = vector.load %arg5[%c0_13, %c0_14] : memref<1x64xbf16, #tpu.memory_space<vmem>>, vector<1x64xbf16>
    %31 = arith.extf %30 : vector<1x64xbf16> to vector<1x64xf32>
    %32 = vector.broadcast %31 : vector<1x64xf32> to vector<8x64xf32>
    %33 = arith.addf %29, %32 : vector<8x64xf32>
    %34 = arith.negf %33 : vector<8x64xf32>
    %35 = math.exp %34 : vector<8x64xf32>
    %cst_15 = arith.constant 1.000000e+00 : f32
    %36 = vector.broadcast %cst_15 : f32 to vector<8x64xf32>
    %37 = arith.addf %36, %35 : vector<8x64xf32>
    %38 = arith.divf %36, %37 : vector<8x64xf32>
    %39 = arith.mulf %33, %38 : vector<8x64xf32>
    %c0_16 = arith.constant 0 : index
    %c0_17 = arith.constant 0 : index
    %40 = vector.load %arg6[%c0_16, %c0_17] : memref<32x64xbf16, #tpu.memory_space<vmem>>, vector<32x64xbf16>
    %cst_18 = arith.constant dense<0.000000e+00> : vector<8x64xf32>
    %41 = tpu.matmul %27, %40, %cst_18 {dimension_numbers = #tpu.dot_dimension_numbers<[1], [0], [0], [1], [0, 0, 1, 1], [], []>} : vector<8x32xbf16>, vector<32x64xbf16>, vector<8x64xf32> -> vector<8x64xf32>
    %c0_19 = arith.constant 0 : index
    %c0_20 = arith.constant 0 : index
    %42 = vector.load %arg7[%c0_19, %c0_20] : memref<1x64xbf16, #tpu.memory_space<vmem>>, vector<1x64xbf16>
    %43 = arith.extf %42 : vector<1x64xbf16> to vector<1x64xf32>
    %44 = vector.broadcast %43 : vector<1x64xf32> to vector<8x64xf32>
    %45 = arith.addf %41, %44 : vector<8x64xf32>
    %46 = arith.mulf %39, %45 : vector<8x64xf32>
    %47 = arith.truncf %46 : vector<8x64xf32> to vector<8x64xbf16>
    %c0_21 = arith.constant 0 : index
    %c0_22 = arith.constant 0 : index
    %48 = vector.load %arg8[%c0_21, %c0_22] : memref<64x32xbf16, #tpu.memory_space<vmem>>, vector<64x32xbf16>
    %cst_23 = arith.constant dense<0.000000e+00> : vector<8x32xf32>
    %49 = tpu.matmul %47, %48, %cst_23 {dimension_numbers = #tpu.dot_dimension_numbers<[1], [0], [0], [1], [0, 0, 1, 1], [], []>} : vector<8x64xbf16>, vector<64x32xbf16>, vector<8x32xf32> -> vector<8x32xf32>
    %c0_24 = arith.constant 0 : index
    %c0_25 = arith.constant 0 : index
    %50 = vector.load %arg9[%c0_24, %c0_25] : memref<1x32xbf16, #tpu.memory_space<vmem>>, vector<1x32xbf16>
    %51 = arith.extf %50 : vector<1x32xbf16> to vector<1x32xf32>
    %52 = vector.broadcast %51 : vector<1x32xf32> to vector<8x32xf32>
    %53 = arith.addf %49, %52 : vector<8x32xf32>
    %c0_26 = arith.constant 0 : index
    %c0_27 = arith.constant 0 : index
    %c0_28 = arith.constant 0 : index
    %54 = vector.load %arg10[%c0_26, %c0_27, %c0_28] : memref<1x8x32xf32, #tpu.memory_space<vmem>>, vector<1x8x32xf32>
    %55 = vector.shape_cast %54 : vector<1x8x32xf32> to vector<8x32xf32>
    %56 = vector.shape_cast %53 : vector<8x32xf32> to vector<1x8x32xf32>
    tpu.vector_store %arg10[%c0_26, %c0_27, %c0_28], %56 {strides = array<i32>} : memref<1x8x32xf32, #tpu.memory_space<vmem>>, vector<1x8x32xf32>,
    return
  }
  func.func @transform_0(%arg0: i32) -> (i32, i32, i32) {
    %c0_i32 = arith.constant 0 : i32
    %c0_i32_0 = arith.constant 0 : i32
    %c0_i32_1 = arith.constant 0 : i32
    return %arg0, %c0_i32, %c0_i32_0 : i32, i32, i32
  }
  func.func @transform_1(%arg0: i32) -> (i32, i32) {
    %c0_i32 = arith.constant 0 : i32
    %c0_i32_0 = arith.constant 0 : i32
    %c0_i32_1 = arith.constant 0 : i32
    return %c0_i32, %c0_i32_0 : i32, i32
  }
  func.func @transform_2(%arg0: i32) -> (i32, i32) {
    %c0_i32 = arith.constant 0 : i32
    %c0_i32_0 = arith.constant 0 : i32
    %c0_i32_1 = arith.constant 0 : i32
    return %c0_i32, %c0_i32_0 : i32, i32
  }
  func.func @transform_3(%arg0: i32) -> (i32, i32) {
    %c0_i32 = arith.constant 0 : i32
    %c0_i32_0 = arith.constant 0 : i32
    %c0_i32_1 = arith.constant 0 : i32
    return %c0_i32, %c0_i32_0 : i32, i32
  }
  func.func @transform_4(%arg0: i32) -> (i32, i32) {
    %c0_i32 = arith.constant 0 : i32
    %c0_i32_0 = arith.constant 0 : i32
    %c0_i32_1 = arith.constant 0 : i32
    return %c0_i32, %c0_i32_0 : i32, i32
  }
  func.func @transform_5(%arg0: i32) -> (i32, i32) {
    %c0_i32 = arith.constant 0 : i32
    %c0_i32_0 = arith.constant 0 : i32
    %c0_i32_1 = arith.constant 0 : i32
    return %c0_i32, %c0_i32_0 : i32, i32
  }
  func.func @transform_6(%arg0: i32) -> (i32, i32) {
    %c0_i32 = arith.constant 0 : i32
    %c0_i32_0 = arith.constant 0 : i32
    %c0_i32_1 = arith.constant 0 : i32
    return %c0_i32, %c0_i32_0 : i32, i32
  }
  func.func @transform_7(%arg0: i32) -> (i32, i32) {
    %c0_i32 = arith.constant 0 : i32
    %c0_i32_0 = arith.constant 0 : i32
    %c0_i32_1 = arith.constant 0 : i32
    return %c0_i32, %c0_i32_0 : i32, i32
  }
  func.func @transform_8(%arg0: i32) -> (i32, i32) {
    %c0_i32 = arith.constant 0 : i32
    %c0_i32_0 = arith.constant 0 : i32
    %c0_i32_1 = arith.constant 0 : i32
    return %c0_i32, %c0_i32_0 : i32, i32
  }
  func.func @transform_9(%arg0: i32) -> (i32, i32, i32) {
    %c0_i32 = arith.constant 0 : i32
    %c0_i32_0 = arith.constant 0 : i32
    %c0_i32_1 = arith.constant 0 : i32
    return %arg0, %c0_i32, %c0_i32_0 : i32, i32, i32
  }
}

module attributes {stable_mosaic.version = 11 : i64} {
  func.func @block_kernel(%arg0: i32, %arg1: memref<1x10x32xbf16, #tpu.memory_space<vmem>>, %arg2: memref<1x32xbf16, #tpu.memory_space<vmem>>, %arg3: memref<1x32xbf16, #tpu.memory_space<vmem>>, %arg4: memref<4x32x8xbf16, #tpu.memory_space<vmem>>, %arg5: memref<4x1x8xbf16, #tpu.memory_space<vmem>>, %arg6: memref<4x32x8xbf16, #tpu.memory_space<vmem>>, %arg7: memref<4x1x8xbf16, #tpu.memory_space<vmem>>, %arg8: memref<4x32x8xbf16, #tpu.memory_space<vmem>>, %arg9: memref<4x1x8xbf16, #tpu.memory_space<vmem>>, %arg10: memref<4x8x32xbf16, #tpu.memory_space<vmem>>, %arg11: memref<1x32xbf16, #tpu.memory_space<vmem>>, %arg12: memref<1x32xbf16, #tpu.memory_space<vmem>>, %arg13: memref<1x32xbf16, #tpu.memory_space<vmem>>, %arg14: memref<32x64xbf16, #tpu.memory_space<vmem>>, %arg15: memref<1x64xbf16, #tpu.memory_space<vmem>>, %arg16: memref<32x64xbf16, #tpu.memory_space<vmem>>, %arg17: memref<1x64xbf16, #tpu.memory_space<vmem>>, %arg18: memref<64x32xbf16, #tpu.memory_space<vmem>>, %arg19: memref<1x32xbf16, #tpu.memory_space<vmem>>, %arg20: memref<1x10x32xbf16, #tpu.memory_space<vmem>>) attributes {dimension_semantics = [#tpu.dimension_semantics<parallel>], iteration_bounds = array<i64: 2>, scalar_prefetch = 0 : i64, scratch_operands = 0 : i64, tpu.core_type = #tpu.core_type<tc>, window_params = [{transform_indices = @transform_0, window_bounds = array<i64: 1, 10, 32>}, {pipeline_mode = #tpu.pipeline_mode<synchronous>, transform_indices = @transform_1, window_bounds = array<i64: 1, 32>}, {pipeline_mode = #tpu.pipeline_mode<synchronous>, transform_indices = @transform_2, window_bounds = array<i64: 1, 32>}, {pipeline_mode = #tpu.pipeline_mode<synchronous>, transform_indices = @transform_3, window_bounds = array<i64: 4, 32, 8>}, {pipeline_mode = #tpu.pipeline_mode<synchronous>, transform_indices = @transform_4, window_bounds = array<i64: 4, 1, 8>}, {pipeline_mode = #tpu.pipeline_mode<synchronous>, transform_indices = @transform_5, window_bounds = array<i64: 4, 32, 8>}, {pipeline_mode = #tpu.pipeline_mode<synchronous>, transform_indices = @transform_6, window_bounds = array<i64: 4, 1, 8>}, {pipeline_mode = #tpu.pipeline_mode<synchronous>, transform_indices = @transform_7, window_bounds = array<i64: 4, 32, 8>}, {pipeline_mode = #tpu.pipeline_mode<synchronous>, transform_indices = @transform_8, window_bounds = array<i64: 4, 1, 8>}, {pipeline_mode = #tpu.pipeline_mode<synchronous>, transform_indices = @transform_9, window_bounds = array<i64: 4, 8, 32>}, {pipeline_mode = #tpu.pipeline_mode<synchronous>, transform_indices = @transform_10, window_bounds = array<i64: 1, 32>}, {pipeline_mode = #tpu.pipeline_mode<synchronous>, transform_indices = @transform_11, window_bounds = array<i64: 1, 32>}, {pipeline_mode = #tpu.pipeline_mode<synchronous>, transform_indices = @transform_12, window_bounds = array<i64: 1, 32>}, {pipeline_mode = #tpu.pipeline_mode<synchronous>, transform_indices = @transform_13, window_bounds = array<i64: 32, 64>}, {pipeline_mode = #tpu.pipeline_mode<synchronous>, transform_indices = @transform_14, window_bounds = array<i64: 1, 64>}, {pipeline_mode = #tpu.pipeline_mode<synchronous>, transform_indices = @transform_15, window_bounds = array<i64: 32, 64>}, {pipeline_mode = #tpu.pipeline_mode<synchronous>, transform_indices = @transform_16, window_bounds = array<i64: 1, 64>}, {pipeline_mode = #tpu.pipeline_mode<synchronous>, transform_indices = @transform_17, window_bounds = array<i64: 64, 32>}, {pipeline_mode = #tpu.pipeline_mode<synchronous>, transform_indices = @transform_18, window_bounds = array<i64: 1, 32>}, {transform_indices = @transform_19, window_bounds = array<i64: 1, 10, 32>}]} {
    %c0 = arith.constant 0 : index
    %c0_0 = arith.constant 0 : index
    %c0_1 = arith.constant 0 : index
    %0 = vector.load %arg1[%c0, %c0_0, %c0_1] : memref<1x10x32xbf16, #tpu.memory_space<vmem>>, vector<1x10x32xbf16>
    %1 = vector.shape_cast %0 : vector<1x10x32xbf16> to vector<10x32xbf16>
    %2 = arith.extf %1 : vector<10x32xbf16> to vector<10x32xf32>
    %c0_2 = arith.constant 0 : index
    %c0_3 = arith.constant 0 : index
    %3 = vector.load %arg2[%c0_2, %c0_3] : memref<1x32xbf16, #tpu.memory_space<vmem>>, vector<1x32xbf16>
    %c0_4 = arith.constant 0 : index
    %c0_5 = arith.constant 0 : index
    %4 = vector.load %arg3[%c0_4, %c0_5] : memref<1x32xbf16, #tpu.memory_space<vmem>>, vector<1x32xbf16>
    %cst = arith.constant dense<0.000000e+00> : vector<10xf32>
    %5 = vector.multi_reduction <add>, %2, %cst [1] : vector<10x32xf32> to vector<10xf32>
    %6 = vector.shape_cast %5 : vector<10xf32> to vector<10x1xf32>
    %cst_6 = arith.constant 3.200000e+01 : f32
    %7 = vector.broadcast %cst_6 : f32 to vector<10x1xf32>
    %8 = arith.divf %6, %7 : vector<10x1xf32>
    %9 = vector.broadcast %8 : vector<10x1xf32> to vector<10x32xf32>
    %10 = arith.subf %2, %9 : vector<10x32xf32>
    %11 = arith.mulf %10, %10 : vector<10x32xf32>
    %cst_7 = arith.constant dense<0.000000e+00> : vector<10xf32>
    %12 = vector.multi_reduction <add>, %11, %cst_7 [1] : vector<10x32xf32> to vector<10xf32>
    %13 = vector.shape_cast %12 : vector<10xf32> to vector<10x1xf32>
    %cst_8 = arith.constant 3.200000e+01 : f32
    %14 = vector.broadcast %cst_8 : f32 to vector<10x1xf32>
    %15 = arith.divf %13, %14 : vector<10x1xf32>
    %cst_9 = arith.constant 9.99999974E-6 : f32
    %16 = vector.broadcast %cst_9 : f32 to vector<10x1xf32>
    %17 = arith.addf %15, %16 : vector<10x1xf32>
    %18 = math.rsqrt %17 : vector<10x1xf32>
    %19 = vector.broadcast %18 : vector<10x1xf32> to vector<10x32xf32>
    %20 = arith.mulf %10, %19 : vector<10x32xf32>
    %21 = arith.extf %3 : vector<1x32xbf16> to vector<1x32xf32>
    %22 = vector.broadcast %21 : vector<1x32xf32> to vector<10x32xf32>
    %23 = arith.mulf %20, %22 : vector<10x32xf32>
    %24 = arith.extf %4 : vector<1x32xbf16> to vector<1x32xf32>
    %25 = vector.broadcast %24 : vector<1x32xf32> to vector<10x32xf32>
    %26 = arith.addf %23, %25 : vector<10x32xf32>
    %27 = arith.truncf %26 : vector<10x32xf32> to vector<10x32xbf16>
    %cst_10 = arith.constant 0.000000e+00 : f32
    %28 = vector.broadcast %cst_10 : f32 to vector<10x32xf32>
    %c0_11 = arith.constant 0 : index
    %c0_12 = arith.constant 0 : index
    %c0_13 = arith.constant 0 : index
    %29 = vector.load %arg4[%c0_11, %c0_12, %c0_13] : memref<4x32x8xbf16, #tpu.memory_space<vmem>>, vector<1x32x8xbf16>
    %30 = vector.shape_cast %29 : vector<1x32x8xbf16> to vector<32x8xbf16>
    %cst_14 = arith.constant dense<0.000000e+00> : vector<10x8xf32>
    %31 = tpu.matmul %27, %30, %cst_14 {dimension_numbers = #tpu.dot_dimension_numbers<[1], [0], [0], [1], [0, 0, 1, 1], [], []>} : vector<10x32xbf16>, vector<32x8xbf16>, vector<10x8xf32> -> vector<10x8xf32>
    %c0_15 = arith.constant 0 : index
    %c0_16 = arith.constant 0 : index
    %c0_17 = arith.constant 0 : index
    %32 = vector.load %arg5[%c0_15, %c0_16, %c0_17] : memref<4x1x8xbf16, #tpu.memory_space<vmem>>, vector<1x1x8xbf16>
    %33 = vector.shape_cast %32 : vector<1x1x8xbf16> to vector<1x8xbf16>
    %34 = arith.extf %33 : vector<1x8xbf16> to vector<1x8xf32>
    %35 = vector.broadcast %34 : vector<1x8xf32> to vector<10x8xf32>
    %36 = arith.addf %31, %35 : vector<10x8xf32>
    %c0_18 = arith.constant 0 : index
    %c0_19 = arith.constant 0 : index
    %c0_20 = arith.constant 0 : index
    %37 = vector.load %arg6[%c0_18, %c0_19, %c0_20] : memref<4x32x8xbf16, #tpu.memory_space<vmem>>, vector<1x32x8xbf16>
    %38 = vector.shape_cast %37 : vector<1x32x8xbf16> to vector<32x8xbf16>
    %cst_21 = arith.constant dense<0.000000e+00> : vector<10x8xf32>
    %39 = tpu.matmul %27, %38, %cst_21 {dimension_numbers = #tpu.dot_dimension_numbers<[1], [0], [0], [1], [0, 0, 1, 1], [], []>} : vector<10x32xbf16>, vector<32x8xbf16>, vector<10x8xf32> -> vector<10x8xf32>
    %c0_22 = arith.constant 0 : index
    %c0_23 = arith.constant 0 : index
    %c0_24 = arith.constant 0 : index
    %40 = vector.load %arg7[%c0_22, %c0_23, %c0_24] : memref<4x1x8xbf16, #tpu.memory_space<vmem>>, vector<1x1x8xbf16>
    %41 = vector.shape_cast %40 : vector<1x1x8xbf16> to vector<1x8xbf16>
    %42 = arith.extf %41 : vector<1x8xbf16> to vector<1x8xf32>
    %43 = vector.broadcast %42 : vector<1x8xf32> to vector<10x8xf32>
    %44 = arith.addf %39, %43 : vector<10x8xf32>
    %c0_25 = arith.constant 0 : index
    %c0_26 = arith.constant 0 : index
    %c0_27 = arith.constant 0 : index
    %45 = vector.load %arg8[%c0_25, %c0_26, %c0_27] : memref<4x32x8xbf16, #tpu.memory_space<vmem>>, vector<1x32x8xbf16>
    %46 = vector.shape_cast %45 : vector<1x32x8xbf16> to vector<32x8xbf16>
    %cst_28 = arith.constant dense<0.000000e+00> : vector<10x8xf32>
    %47 = tpu.matmul %27, %46, %cst_28 {dimension_numbers = #tpu.dot_dimension_numbers<[1], [0], [0], [1], [0, 0, 1, 1], [], []>} : vector<10x32xbf16>, vector<32x8xbf16>, vector<10x8xf32> -> vector<10x8xf32>
    %c0_29 = arith.constant 0 : index
    %c0_30 = arith.constant 0 : index
    %c0_31 = arith.constant 0 : index
    %48 = vector.load %arg9[%c0_29, %c0_30, %c0_31] : memref<4x1x8xbf16, #tpu.memory_space<vmem>>, vector<1x1x8xbf16>
    %49 = vector.shape_cast %48 : vector<1x1x8xbf16> to vector<1x8xbf16>
    %50 = arith.extf %49 : vector<1x8xbf16> to vector<1x8xf32>
    %51 = vector.broadcast %50 : vector<1x8xf32> to vector<10x8xf32>
    %52 = arith.addf %47, %51 : vector<10x8xf32>
    %53 = arith.truncf %52 : vector<10x8xf32> to vector<10x8xbf16>
    %54 = arith.truncf %36 : vector<10x8xf32> to vector<10x8xbf16>
    %55 = arith.truncf %44 : vector<10x8xf32> to vector<10x8xbf16>
    %cst_32 = arith.constant dense<0.000000e+00> : vector<10x10xf32>
    %56 = tpu.matmul %54, %55, %cst_32 {dimension_numbers = #tpu.dot_dimension_numbers<[1], [1], [0], [0], [0, 0, 1, 0], [], []>} : vector<10x8xbf16>, vector<10x8xbf16>, vector<10x10xf32> -> vector<10x10xf32>
    %cst_33 = arith.constant dense<0xFF800000> : vector<10xf32>
    %57 = vector.multi_reduction <maximumf>, %56, %cst_33 [1] : vector<10x10xf32> to vector<10xf32>
    %58 = vector.shape_cast %57 : vector<10xf32> to vector<10x1xf32>
    %59 = vector.broadcast %58 : vector<10x1xf32> to vector<10x10xf32>
    %60 = arith.subf %56, %59 : vector<10x10xf32>
    %61 = math.exp %60 : vector<10x10xf32>
    %cst_34 = arith.constant dense<0.000000e+00> : vector<10xf32>
    %62 = vector.multi_reduction <add>, %61, %cst_34 [1] : vector<10x10xf32> to vector<10xf32>
    %63 = vector.shape_cast %62 : vector<10xf32> to vector<10x1xf32>
    %64 = tpu.reciprocal %63 {approx = true} : vector<10x1xf32> -> vector<10x1xf32>
    %65 = vector.broadcast %64 : vector<10x1xf32> to vector<10x10xf32>
    %66 = arith.mulf %61, %65 : vector<10x10xf32>
    %67 = arith.truncf %66 : vector<10x10xf32> to vector<10x10xbf16>
    %cst_35 = arith.constant dense<0.000000e+00> : vector<10x8xf32>
    %68 = tpu.matmul %67, %53, %cst_35 {dimension_numbers = #tpu.dot_dimension_numbers<[1], [0], [0], [1], [0, 0, 1, 1], [], []>} : vector<10x10xbf16>, vector<10x8xbf16>, vector<10x8xf32> -> vector<10x8xf32>
    %69 = arith.truncf %68 : vector<10x8xf32> to vector<10x8xbf16>
    %c0_36 = arith.constant 0 : index
    %c0_37 = arith.constant 0 : index
    %c0_38 = arith.constant 0 : index
    %70 = vector.load %arg10[%c0_36, %c0_37, %c0_38] : memref<4x8x32xbf16, #tpu.memory_space<vmem>>, vector<1x8x32xbf16>
    %71 = vector.shape_cast %70 : vector<1x8x32xbf16> to vector<8x32xbf16>
    %cst_39 = arith.constant dense<0.000000e+00> : vector<10x32xf32>
    %72 = tpu.matmul %69, %71, %cst_39 {dimension_numbers = #tpu.dot_dimension_numbers<[1], [0], [0], [1], [0, 0, 1, 1], [], []>} : vector<10x8xbf16>, vector<8x32xbf16>, vector<10x32xf32> -> vector<10x32xf32>
    %73 = arith.addf %28, %72 : vector<10x32xf32>
    %c1 = arith.constant 1 : index
    %c0_40 = arith.constant 0 : index
    %c0_41 = arith.constant 0 : index
    %74 = vector.load %arg4[%c1, %c0_40, %c0_41] : memref<4x32x8xbf16, #tpu.memory_space<vmem>>, vector<1x32x8xbf16>
    %75 = vector.shape_cast %74 : vector<1x32x8xbf16> to vector<32x8xbf16>
    %cst_42 = arith.constant dense<0.000000e+00> : vector<10x8xf32>
    %76 = tpu.matmul %27, %75, %cst_42 {dimension_numbers = #tpu.dot_dimension_numbers<[1], [0], [0], [1], [0, 0, 1, 1], [], []>} : vector<10x32xbf16>, vector<32x8xbf16>, vector<10x8xf32> -> vector<10x8xf32>
    %c1_43 = arith.constant 1 : index
    %c0_44 = arith.constant 0 : index
    %c0_45 = arith.constant 0 : index
    %77 = vector.load %arg5[%c1_43, %c0_44, %c0_45] : memref<4x1x8xbf16, #tpu.memory_space<vmem>>, vector<1x1x8xbf16>
    %78 = vector.shape_cast %77 : vector<1x1x8xbf16> to vector<1x8xbf16>
    %79 = arith.extf %78 : vector<1x8xbf16> to vector<1x8xf32>
    %80 = vector.broadcast %79 : vector<1x8xf32> to vector<10x8xf32>
    %81 = arith.addf %76, %80 : vector<10x8xf32>
    %c1_46 = arith.constant 1 : index
    %c0_47 = arith.constant 0 : index
    %c0_48 = arith.constant 0 : index
    %82 = vector.load %arg6[%c1_46, %c0_47, %c0_48] : memref<4x32x8xbf16, #tpu.memory_space<vmem>>, vector<1x32x8xbf16>
    %83 = vector.shape_cast %82 : vector<1x32x8xbf16> to vector<32x8xbf16>
    %cst_49 = arith.constant dense<0.000000e+00> : vector<10x8xf32>
    %84 = tpu.matmul %27, %83, %cst_49 {dimension_numbers = #tpu.dot_dimension_numbers<[1], [0], [0], [1], [0, 0, 1, 1], [], []>} : vector<10x32xbf16>, vector<32x8xbf16>, vector<10x8xf32> -> vector<10x8xf32>
    %c1_50 = arith.constant 1 : index
    %c0_51 = arith.constant 0 : index
    %c0_52 = arith.constant 0 : index
    %85 = vector.load %arg7[%c1_50, %c0_51, %c0_52] : memref<4x1x8xbf16, #tpu.memory_space<vmem>>, vector<1x1x8xbf16>
    %86 = vector.shape_cast %85 : vector<1x1x8xbf16> to vector<1x8xbf16>
    %87 = arith.extf %86 : vector<1x8xbf16> to vector<1x8xf32>
    %88 = vector.broadcast %87 : vector<1x8xf32> to vector<10x8xf32>
    %89 = arith.addf %84, %88 : vector<10x8xf32>
    %c1_53 = arith.constant 1 : index
    %c0_54 = arith.constant 0 : index
    %c0_55 = arith.constant 0 : index
    %90 = vector.load %arg8[%c1_53, %c0_54, %c0_55] : memref<4x32x8xbf16, #tpu.memory_space<vmem>>, vector<1x32x8xbf16>
    %91 = vector.shape_cast %90 : vector<1x32x8xbf16> to vector<32x8xbf16>
    %cst_56 = arith.constant dense<0.000000e+00> : vector<10x8xf32>
    %92 = tpu.matmul %27, %91, %cst_56 {dimension_numbers = #tpu.dot_dimension_numbers<[1], [0], [0], [1], [0, 0, 1, 1], [], []>} : vector<10x32xbf16>, vector<32x8xbf16>, vector<10x8xf32> -> vector<10x8xf32>
    %c1_57 = arith.constant 1 : index
    %c0_58 = arith.constant 0 : index
    %c0_59 = arith.constant 0 : index
    %93 = vector.load %arg9[%c1_57, %c0_58, %c0_59] : memref<4x1x8xbf16, #tpu.memory_space<vmem>>, vector<1x1x8xbf16>
    %94 = vector.shape_cast %93 : vector<1x1x8xbf16> to vector<1x8xbf16>
    %95 = arith.extf %94 : vector<1x8xbf16> to vector<1x8xf32>
    %96 = vector.broadcast %95 : vector<1x8xf32> to vector<10x8xf32>
    %97 = arith.addf %92, %96 : vector<10x8xf32>
    %98 = arith.truncf %97 : vector<10x8xf32> to vector<10x8xbf16>
    %99 = arith.truncf %81 : vector<10x8xf32> to vector<10x8xbf16>
    %100 = arith.truncf %89 : vector<10x8xf32> to vector<10x8xbf16>
    %cst_60 = arith.constant dense<0.000000e+00> : vector<10x10xf32>
    %101 = tpu.matmul %99, %100, %cst_60 {dimension_numbers = #tpu.dot_dimension_numbers<[1], [1], [0], [0], [0, 0, 1, 0], [], []>} : vector<10x8xbf16>, vector<10x8xbf16>, vector<10x10xf32> -> vector<10x10xf32>
    %cst_61 = arith.constant dense<0xFF800000> : vector<10xf32>
    %102 = vector.multi_reduction <maximumf>, %101, %cst_61 [1] : vector<10x10xf32> to vector<10xf32>
    %103 = vector.shape_cast %102 : vector<10xf32> to vector<10x1xf32>
    %104 = vector.broadcast %103 : vector<10x1xf32> to vector<10x10xf32>
    %105 = arith.subf %101, %104 : vector<10x10xf32>
    %106 = math.exp %105 : vector<10x10xf32>
    %cst_62 = arith.constant dense<0.000000e+00> : vector<10xf32>
    %107 = vector.multi_reduction <add>, %106, %cst_62 [1] : vector<10x10xf32> to vector<10xf32>
    %108 = vector.shape_cast %107 : vector<10xf32> to vector<10x1xf32>
    %109 = tpu.reciprocal %108 {approx = true} : vector<10x1xf32> -> vector<10x1xf32>
    %110 = vector.broadcast %109 : vector<10x1xf32> to vector<10x10xf32>
    %111 = arith.mulf %106, %110 : vector<10x10xf32>
    %112 = arith.truncf %111 : vector<10x10xf32> to vector<10x10xbf16>
    %cst_63 = arith.constant dense<0.000000e+00> : vector<10x8xf32>
    %113 = tpu.matmul %112, %98, %cst_63 {dimension_numbers = #tpu.dot_dimension_numbers<[1], [0], [0], [1], [0, 0, 1, 1], [], []>} : vector<10x10xbf16>, vector<10x8xbf16>, vector<10x8xf32> -> vector<10x8xf32>
    %114 = arith.truncf %113 : vector<10x8xf32> to vector<10x8xbf16>
    %c1_64 = arith.constant 1 : index
    %c0_65 = arith.constant 0 : index
    %c0_66 = arith.constant 0 : index
    %115 = vector.load %arg10[%c1_64, %c0_65, %c0_66] : memref<4x8x32xbf16, #tpu.memory_space<vmem>>, vector<1x8x32xbf16>
    %116 = vector.shape_cast %115 : vector<1x8x32xbf16> to vector<8x32xbf16>
    %cst_67 = arith.constant dense<0.000000e+00> : vector<10x32xf32>
    %117 = tpu.matmul %114, %116, %cst_67 {dimension_numbers = #tpu.dot_dimension_numbers<[1], [0], [0], [1], [0, 0, 1, 1], [], []>} : vector<10x8xbf16>, vector<8x32xbf16>, vector<10x32xf32> -> vector<10x32xf32>
    %118 = arith.addf %73, %117 : vector<10x32xf32>
    %c2 = arith.constant 2 : index
    %c0_68 = arith.constant 0 : index
    %c0_69 = arith.constant 0 : index
    %119 = vector.load %arg4[%c2, %c0_68, %c0_69] : memref<4x32x8xbf16, #tpu.memory_space<vmem>>, vector<1x32x8xbf16>
    %120 = vector.shape_cast %119 : vector<1x32x8xbf16> to vector<32x8xbf16>
    %cst_70 = arith.constant dense<0.000000e+00> : vector<10x8xf32>
    %121 = tpu.matmul %27, %120, %cst_70 {dimension_numbers = #tpu.dot_dimension_numbers<[1], [0], [0], [1], [0, 0, 1, 1], [], []>} : vector<10x32xbf16>, vector<32x8xbf16>, vector<10x8xf32> -> vector<10x8xf32>
    %c2_71 = arith.constant 2 : index
    %c0_72 = arith.constant 0 : index
    %c0_73 = arith.constant 0 : index
    %122 = vector.load %arg5[%c2_71, %c0_72, %c0_73] : memref<4x1x8xbf16, #tpu.memory_space<vmem>>, vector<1x1x8xbf16>
    %123 = vector.shape_cast %122 : vector<1x1x8xbf16> to vector<1x8xbf16>
    %124 = arith.extf %123 : vector<1x8xbf16> to vector<1x8xf32>
    %125 = vector.broadcast %124 : vector<1x8xf32> to vector<10x8xf32>
    %126 = arith.addf %121, %125 : vector<10x8xf32>
    %c2_74 = arith.constant 2 : index
    %c0_75 = arith.constant 0 : index
    %c0_76 = arith.constant 0 : index
    %127 = vector.load %arg6[%c2_74, %c0_75, %c0_76] : memref<4x32x8xbf16, #tpu.memory_space<vmem>>, vector<1x32x8xbf16>
    %128 = vector.shape_cast %127 : vector<1x32x8xbf16> to vector<32x8xbf16>
    %cst_77 = arith.constant dense<0.000000e+00> : vector<10x8xf32>
    %129 = tpu.matmul %27, %128, %cst_77 {dimension_numbers = #tpu.dot_dimension_numbers<[1], [0], [0], [1], [0, 0, 1, 1], [], []>} : vector<10x32xbf16>, vector<32x8xbf16>, vector<10x8xf32> -> vector<10x8xf32>
    %c2_78 = arith.constant 2 : index
    %c0_79 = arith.constant 0 : index
    %c0_80 = arith.constant 0 : index
    %130 = vector.load %arg7[%c2_78, %c0_79, %c0_80] : memref<4x1x8xbf16, #tpu.memory_space<vmem>>, vector<1x1x8xbf16>
    %131 = vector.shape_cast %130 : vector<1x1x8xbf16> to vector<1x8xbf16>
    %132 = arith.extf %131 : vector<1x8xbf16> to vector<1x8xf32>
    %133 = vector.broadcast %132 : vector<1x8xf32> to vector<10x8xf32>
    %134 = arith.addf %129, %133 : vector<10x8xf32>
    %c2_81 = arith.constant 2 : index
    %c0_82 = arith.constant 0 : index
    %c0_83 = arith.constant 0 : index
    %135 = vector.load %arg8[%c2_81, %c0_82, %c0_83] : memref<4x32x8xbf16, #tpu.memory_space<vmem>>, vector<1x32x8xbf16>
    %136 = vector.shape_cast %135 : vector<1x32x8xbf16> to vector<32x8xbf16>
    %cst_84 = arith.constant dense<0.000000e+00> : vector<10x8xf32>
    %137 = tpu.matmul %27, %136, %cst_84 {dimension_numbers = #tpu.dot_dimension_numbers<[1], [0], [0], [1], [0, 0, 1, 1], [], []>} : vector<10x32xbf16>, vector<32x8xbf16>, vector<10x8xf32> -> vector<10x8xf32>
    %c2_85 = arith.constant 2 : index
    %c0_86 = arith.constant 0 : index
    %c0_87 = arith.constant 0 : index
    %138 = vector.load %arg9[%c2_85, %c0_86, %c0_87] : memref<4x1x8xbf16, #tpu.memory_space<vmem>>, vector<1x1x8xbf16>
    %139 = vector.shape_cast %138 : vector<1x1x8xbf16> to vector<1x8xbf16>
    %140 = arith.extf %139 : vector<1x8xbf16> to vector<1x8xf32>
    %141 = vector.broadcast %140 : vector<1x8xf32> to vector<10x8xf32>
    %142 = arith.addf %137, %141 : vector<10x8xf32>
    %143 = arith.truncf %142 : vector<10x8xf32> to vector<10x8xbf16>
    %144 = arith.truncf %126 : vector<10x8xf32> to vector<10x8xbf16>
    %145 = arith.truncf %134 : vector<10x8xf32> to vector<10x8xbf16>
    %cst_88 = arith.constant dense<0.000000e+00> : vector<10x10xf32>
    %146 = tpu.matmul %144, %145, %cst_88 {dimension_numbers = #tpu.dot_dimension_numbers<[1], [1], [0], [0], [0, 0, 1, 0], [], []>} : vector<10x8xbf16>, vector<10x8xbf16>, vector<10x10xf32> -> vector<10x10xf32>
    %cst_89 = arith.constant dense<0xFF800000> : vector<10xf32>
    %147 = vector.multi_reduction <maximumf>, %146, %cst_89 [1] : vector<10x10xf32> to vector<10xf32>
    %148 = vector.shape_cast %147 : vector<10xf32> to vector<10x1xf32>
    %149 = vector.broadcast %148 : vector<10x1xf32> to vector<10x10xf32>
    %150 = arith.subf %146, %149 : vector<10x10xf32>
    %151 = math.exp %150 : vector<10x10xf32>
    %cst_90 = arith.constant dense<0.000000e+00> : vector<10xf32>
    %152 = vector.multi_reduction <add>, %151, %cst_90 [1] : vector<10x10xf32> to vector<10xf32>
    %153 = vector.shape_cast %152 : vector<10xf32> to vector<10x1xf32>
    %154 = tpu.reciprocal %153 {approx = true} : vector<10x1xf32> -> vector<10x1xf32>
    %155 = vector.broadcast %154 : vector<10x1xf32> to vector<10x10xf32>
    %156 = arith.mulf %151, %155 : vector<10x10xf32>
    %157 = arith.truncf %156 : vector<10x10xf32> to vector<10x10xbf16>
    %cst_91 = arith.constant dense<0.000000e+00> : vector<10x8xf32>
    %158 = tpu.matmul %157, %143, %cst_91 {dimension_numbers = #tpu.dot_dimension_numbers<[1], [0], [0], [1], [0, 0, 1, 1], [], []>} : vector<10x10xbf16>, vector<10x8xbf16>, vector<10x8xf32> -> vector<10x8xf32>
    %159 = arith.truncf %158 : vector<10x8xf32> to vector<10x8xbf16>
    %c2_92 = arith.constant 2 : index
    %c0_93 = arith.constant 0 : index
    %c0_94 = arith.constant 0 : index
    %160 = vector.load %arg10[%c2_92, %c0_93, %c0_94] : memref<4x8x32xbf16, #tpu.memory_space<vmem>>, vector<1x8x32xbf16>
    %161 = vector.shape_cast %160 : vector<1x8x32xbf16> to vector<8x32xbf16>
    %cst_95 = arith.constant dense<0.000000e+00> : vector<10x32xf32>
    %162 = tpu.matmul %159, %161, %cst_95 {dimension_numbers = #tpu.dot_dimension_numbers<[1], [0], [0], [1], [0, 0, 1, 1], [], []>} : vector<10x8xbf16>, vector<8x32xbf16>, vector<10x32xf32> -> vector<10x32xf32>
    %163 = arith.addf %118, %162 : vector<10x32xf32>
    %c3 = arith.constant 3 : index
    %c0_96 = arith.constant 0 : index
    %c0_97 = arith.constant 0 : index
    %164 = vector.load %arg4[%c3, %c0_96, %c0_97] : memref<4x32x8xbf16, #tpu.memory_space<vmem>>, vector<1x32x8xbf16>
    %165 = vector.shape_cast %164 : vector<1x32x8xbf16> to vector<32x8xbf16>
    %cst_98 = arith.constant dense<0.000000e+00> : vector<10x8xf32>
    %166 = tpu.matmul %27, %165, %cst_98 {dimension_numbers = #tpu.dot_dimension_numbers<[1], [0], [0], [1], [0, 0, 1, 1], [], []>} : vector<10x32xbf16>, vector<32x8xbf16>, vector<10x8xf32> -> vector<10x8xf32>
    %c3_99 = arith.constant 3 : index
    %c0_100 = arith.constant 0 : index
    %c0_101 = arith.constant 0 : index
    %167 = vector.load %arg5[%c3_99, %c0_100, %c0_101] : memref<4x1x8xbf16, #tpu.memory_space<vmem>>, vector<1x1x8xbf16>
    %168 = vector.shape_cast %167 : vector<1x1x8xbf16> to vector<1x8xbf16>
    %169 = arith.extf %168 : vector<1x8xbf16> to vector<1x8xf32>
    %170 = vector.broadcast %169 : vector<1x8xf32> to vector<10x8xf32>
    %171 = arith.addf %166, %170 : vector<10x8xf32>
    %c3_102 = arith.constant 3 : index
    %c0_103 = arith.constant 0 : index
    %c0_104 = arith.constant 0 : index
    %172 = vector.load %arg6[%c3_102, %c0_103, %c0_104] : memref<4x32x8xbf16, #tpu.memory_space<vmem>>, vector<1x32x8xbf16>
    %173 = vector.shape_cast %172 : vector<1x32x8xbf16> to vector<32x8xbf16>
    %cst_105 = arith.constant dense<0.000000e+00> : vector<10x8xf32>
    %174 = tpu.matmul %27, %173, %cst_105 {dimension_numbers = #tpu.dot_dimension_numbers<[1], [0], [0], [1], [0, 0, 1, 1], [], []>} : vector<10x32xbf16>, vector<32x8xbf16>, vector<10x8xf32> -> vector<10x8xf32>
    %c3_106 = arith.constant 3 : index
    %c0_107 = arith.constant 0 : index
    %c0_108 = arith.constant 0 : index
    %175 = vector.load %arg7[%c3_106, %c0_107, %c0_108] : memref<4x1x8xbf16, #tpu.memory_space<vmem>>, vector<1x1x8xbf16>
    %176 = vector.shape_cast %175 : vector<1x1x8xbf16> to vector<1x8xbf16>
    %177 = arith.extf %176 : vector<1x8xbf16> to vector<1x8xf32>
    %178 = vector.broadcast %177 : vector<1x8xf32> to vector<10x8xf32>
    %179 = arith.addf %174, %178 : vector<10x8xf32>
    %c3_109 = arith.constant 3 : index
    %c0_110 = arith.constant 0 : index
    %c0_111 = arith.constant 0 : index
    %180 = vector.load %arg8[%c3_109, %c0_110, %c0_111] : memref<4x32x8xbf16, #tpu.memory_space<vmem>>, vector<1x32x8xbf16>
    %181 = vector.shape_cast %180 : vector<1x32x8xbf16> to vector<32x8xbf16>
    %cst_112 = arith.constant dense<0.000000e+00> : vector<10x8xf32>
    %182 = tpu.matmul %27, %181, %cst_112 {dimension_numbers = #tpu.dot_dimension_numbers<[1], [0], [0], [1], [0, 0, 1, 1], [], []>} : vector<10x32xbf16>, vector<32x8xbf16>, vector<10x8xf32> -> vector<10x8xf32>
    %c3_113 = arith.constant 3 : index
    %c0_114 = arith.constant 0 : index
    %c0_115 = arith.constant 0 : index
    %183 = vector.load %arg9[%c3_113, %c0_114, %c0_115] : memref<4x1x8xbf16, #tpu.memory_space<vmem>>, vector<1x1x8xbf16>
    %184 = vector.shape_cast %183 : vector<1x1x8xbf16> to vector<1x8xbf16>
    %185 = arith.extf %184 : vector<1x8xbf16> to vector<1x8xf32>
    %186 = vector.broadcast %185 : vector<1x8xf32> to vector<10x8xf32>
    %187 = arith.addf %182, %186 : vector<10x8xf32>
    %188 = arith.truncf %187 : vector<10x8xf32> to vector<10x8xbf16>
    %189 = arith.truncf %171 : vector<10x8xf32> to vector<10x8xbf16>
    %190 = arith.truncf %179 : vector<10x8xf32> to vector<10x8xbf16>
    %cst_116 = arith.constant dense<0.000000e+00> : vector<10x10xf32>
    %191 = tpu.matmul %189, %190, %cst_116 {dimension_numbers = #tpu.dot_dimension_numbers<[1], [1], [0], [0], [0, 0, 1, 0], [], []>} : vector<10x8xbf16>, vector<10x8xbf16>, vector<10x10xf32> -> vector<10x10xf32>
    %cst_117 = arith.constant dense<0xFF800000> : vector<10xf32>
    %192 = vector.multi_reduction <maximumf>, %191, %cst_117 [1] : vector<10x10xf32> to vector<10xf32>
    %193 = vector.shape_cast %192 : vector<10xf32> to vector<10x1xf32>
    %194 = vector.broadcast %193 : vector<10x1xf32> to vector<10x10xf32>
    %195 = arith.subf %191, %194 : vector<10x10xf32>
    %196 = math.exp %195 : vector<10x10xf32>
    %cst_118 = arith.constant dense<0.000000e+00> : vector<10xf32>
    %197 = vector.multi_reduction <add>, %196, %cst_118 [1] : vector<10x10xf32> to vector<10xf32>
    %198 = vector.shape_cast %197 : vector<10xf32> to vector<10x1xf32>
    %199 = tpu.reciprocal %198 {approx = true} : vector<10x1xf32> -> vector<10x1xf32>
    %200 = vector.broadcast %199 : vector<10x1xf32> to vector<10x10xf32>
    %201 = arith.mulf %196, %200 : vector<10x10xf32>
    %202 = arith.truncf %201 : vector<10x10xf32> to vector<10x10xbf16>
    %cst_119 = arith.constant dense<0.000000e+00> : vector<10x8xf32>
    %203 = tpu.matmul %202, %188, %cst_119 {dimension_numbers = #tpu.dot_dimension_numbers<[1], [0], [0], [1], [0, 0, 1, 1], [], []>} : vector<10x10xbf16>, vector<10x8xbf16>, vector<10x8xf32> -> vector<10x8xf32>
    %204 = arith.truncf %203 : vector<10x8xf32> to vector<10x8xbf16>
    %c3_120 = arith.constant 3 : index
    %c0_121 = arith.constant 0 : index
    %c0_122 = arith.constant 0 : index
    %205 = vector.load %arg10[%c3_120, %c0_121, %c0_122] : memref<4x8x32xbf16, #tpu.memory_space<vmem>>, vector<1x8x32xbf16>
    %206 = vector.shape_cast %205 : vector<1x8x32xbf16> to vector<8x32xbf16>
    %cst_123 = arith.constant dense<0.000000e+00> : vector<10x32xf32>
    %207 = tpu.matmul %204, %206, %cst_123 {dimension_numbers = #tpu.dot_dimension_numbers<[1], [0], [0], [1], [0, 0, 1, 1], [], []>} : vector<10x8xbf16>, vector<8x32xbf16>, vector<10x32xf32> -> vector<10x32xf32>
    %208 = arith.addf %163, %207 : vector<10x32xf32>
    %209 = arith.addf %2, %208 : vector<10x32xf32>
    %c0_124 = arith.constant 0 : index
    %c0_125 = arith.constant 0 : index
    %210 = vector.load %arg11[%c0_124, %c0_125] : memref<1x32xbf16, #tpu.memory_space<vmem>>, vector<1x32xbf16>
    %211 = arith.extf %210 : vector<1x32xbf16> to vector<1x32xf32>
    %212 = vector.broadcast %211 : vector<1x32xf32> to vector<10x32xf32>
    %213 = arith.addf %209, %212 : vector<10x32xf32>
    %c0_126 = arith.constant 0 : index
    %c0_127 = arith.constant 0 : index
    %214 = vector.load %arg12[%c0_126, %c0_127] : memref<1x32xbf16, #tpu.memory_space<vmem>>, vector<1x32xbf16>
    %c0_128 = arith.constant 0 : index
    %c0_129 = arith.constant 0 : index
    %215 = vector.load %arg13[%c0_128, %c0_129] : memref<1x32xbf16, #tpu.memory_space<vmem>>, vector<1x32xbf16>
    %cst_130 = arith.constant dense<0.000000e+00> : vector<10xf32>
    %216 = vector.multi_reduction <add>, %213, %cst_130 [1] : vector<10x32xf32> to vector<10xf32>
    %217 = vector.shape_cast %216 : vector<10xf32> to vector<10x1xf32>
    %cst_131 = arith.constant 3.200000e+01 : f32
    %218 = vector.broadcast %cst_131 : f32 to vector<10x1xf32>
    %219 = arith.divf %217, %218 : vector<10x1xf32>
    %220 = vector.broadcast %219 : vector<10x1xf32> to vector<10x32xf32>
    %221 = arith.subf %213, %220 : vector<10x32xf32>
    %222 = arith.mulf %221, %221 : vector<10x32xf32>
    %cst_132 = arith.constant dense<0.000000e+00> : vector<10xf32>
    %223 = vector.multi_reduction <add>, %222, %cst_132 [1] : vector<10x32xf32> to vector<10xf32>
    %224 = vector.shape_cast %223 : vector<10xf32> to vector<10x1xf32>
    %cst_133 = arith.constant 3.200000e+01 : f32
    %225 = vector.broadcast %cst_133 : f32 to vector<10x1xf32>
    %226 = arith.divf %224, %225 : vector<10x1xf32>
    %cst_134 = arith.constant 9.99999974E-6 : f32
    %227 = vector.broadcast %cst_134 : f32 to vector<10x1xf32>
    %228 = arith.addf %226, %227 : vector<10x1xf32>
    %229 = math.rsqrt %228 : vector<10x1xf32>
    %230 = vector.broadcast %229 : vector<10x1xf32> to vector<10x32xf32>
    %231 = arith.mulf %221, %230 : vector<10x32xf32>
    %232 = arith.extf %214 : vector<1x32xbf16> to vector<1x32xf32>
    %233 = vector.broadcast %232 : vector<1x32xf32> to vector<10x32xf32>
    %234 = arith.mulf %231, %233 : vector<10x32xf32>
    %235 = arith.extf %215 : vector<1x32xbf16> to vector<1x32xf32>
    %236 = vector.broadcast %235 : vector<1x32xf32> to vector<10x32xf32>
    %237 = arith.addf %234, %236 : vector<10x32xf32>
    %238 = arith.truncf %237 : vector<10x32xf32> to vector<10x32xbf16>
    %c0_135 = arith.constant 0 : index
    %c0_136 = arith.constant 0 : index
    %239 = vector.load %arg14[%c0_135, %c0_136] : memref<32x64xbf16, #tpu.memory_space<vmem>>, vector<32x64xbf16>
    %cst_137 = arith.constant dense<0.000000e+00> : vector<10x64xf32>
    %240 = tpu.matmul %238, %239, %cst_137 {dimension_numbers = #tpu.dot_dimension_numbers<[1], [0], [0], [1], [0, 0, 1, 1], [], []>} : vector<10x32xbf16>, vector<32x64xbf16>, vector<10x64xf32> -> vector<10x64xf32>
    %c0_138 = arith.constant 0 : index
    %c0_139 = arith.constant 0 : index
    %241 = vector.load %arg15[%c0_138, %c0_139] : memref<1x64xbf16, #tpu.memory_space<vmem>>, vector<1x64xbf16>
    %242 = arith.extf %241 : vector<1x64xbf16> to vector<1x64xf32>
    %243 = vector.broadcast %242 : vector<1x64xf32> to vector<10x64xf32>
    %244 = arith.addf %240, %243 : vector<10x64xf32>
    %245 = arith.negf %244 : vector<10x64xf32>
    %246 = math.exp %245 : vector<10x64xf32>
    %cst_140 = arith.constant 1.000000e+00 : f32
    %247 = vector.broadcast %cst_140 : f32 to vector<10x64xf32>
    %248 = arith.addf %247, %246 : vector<10x64xf32>
    %249 = arith.divf %247, %248 : vector<10x64xf32>
    %250 = arith.mulf %244, %249 : vector<10x64xf32>
    %c0_141 = arith.constant 0 : index
    %c0_142 = arith.constant 0 : index
    %251 = vector.load %arg16[%c0_141, %c0_142] : memref<32x64xbf16, #tpu.memory_space<vmem>>, vector<32x64xbf16>
    %cst_143 = arith.constant dense<0.000000e+00> : vector<10x64xf32>
    %252 = tpu.matmul %238, %251, %cst_143 {dimension_numbers = #tpu.dot_dimension_numbers<[1], [0], [0], [1], [0, 0, 1, 1], [], []>} : vector<10x32xbf16>, vector<32x64xbf16>, vector<10x64xf32> -> vector<10x64xf32>
    %c0_144 = arith.constant 0 : index
    %c0_145 = arith.constant 0 : index
    %253 = vector.load %arg17[%c0_144, %c0_145] : memref<1x64xbf16, #tpu.memory_space<vmem>>, vector<1x64xbf16>
    %254 = arith.extf %253 : vector<1x64xbf16> to vector<1x64xf32>
    %255 = vector.broadcast %254 : vector<1x64xf32> to vector<10x64xf32>
    %256 = arith.addf %252, %255 : vector<10x64xf32>
    %257 = arith.mulf %250, %256 : vector<10x64xf32>
    %258 = arith.truncf %257 : vector<10x64xf32> to vector<10x64xbf16>
    %c0_146 = arith.constant 0 : index
    %c0_147 = arith.constant 0 : index
    %259 = vector.load %arg18[%c0_146, %c0_147] : memref<64x32xbf16, #tpu.memory_space<vmem>>, vector<64x32xbf16>
    %cst_148 = arith.constant dense<0.000000e+00> : vector<10x32xf32>
    %260 = tpu.matmul %258, %259, %cst_148 {dimension_numbers = #tpu.dot_dimension_numbers<[1], [0], [0], [1], [0, 0, 1, 1], [], []>} : vector<10x64xbf16>, vector<64x32xbf16>, vector<10x32xf32> -> vector<10x32xf32>
    %c0_149 = arith.constant 0 : index
    %c0_150 = arith.constant 0 : index
    %261 = vector.load %arg19[%c0_149, %c0_150] : memref<1x32xbf16, #tpu.memory_space<vmem>>, vector<1x32xbf16>
    %262 = arith.extf %261 : vector<1x32xbf16> to vector<1x32xf32>
    %263 = vector.broadcast %262 : vector<1x32xf32> to vector<10x32xf32>
    %264 = arith.addf %260, %263 : vector<10x32xf32>
    %265 = arith.addf %213, %264 : vector<10x32xf32>
    %266 = arith.truncf %265 : vector<10x32xf32> to vector<10x32xbf16>
    %c0_151 = arith.constant 0 : index
    %c0_152 = arith.constant 0 : index
    %c0_153 = arith.constant 0 : index
    %267 = vector.load %arg20[%c0_151, %c0_152, %c0_153] : memref<1x10x32xbf16, #tpu.memory_space<vmem>>, vector<1x10x32xbf16>
    %268 = vector.shape_cast %267 : vector<1x10x32xbf16> to vector<10x32xbf16>
    %269 = vector.shape_cast %266 : vector<10x32xbf16> to vector<1x10x32xbf16>
    tpu.vector_store %arg20[%c0_151, %c0_152, %c0_153], %269 {strides = array<i32>} : memref<1x10x32xbf16, #tpu.memory_space<vmem>>, vector<1x10x32xbf16>,
    return
  }
  func.func @transform_0(%arg0: i32) -> (i32, i32, i32) {
    %c0_i32 = arith.constant 0 : i32
    %c0_i32_0 = arith.constant 0 : i32
    %c0_i32_1 = arith.constant 0 : i32
    return %arg0, %c0_i32, %c0_i32_0 : i32, i32, i32
  }
  func.func @transform_1(%arg0: i32) -> (i32, i32) {
    %c0_i32 = arith.constant 0 : i32
    %c0_i32_0 = arith.constant 0 : i32
    %c0_i32_1 = arith.constant 0 : i32
    return %c0_i32, %c0_i32_0 : i32, i32
  }
  func.func @transform_2(%arg0: i32) -> (i32, i32) {
    %c0_i32 = arith.constant 0 : i32
    %c0_i32_0 = arith.constant 0 : i32
    %c0_i32_1 = arith.constant 0 : i32
    return %c0_i32, %c0_i32_0 : i32, i32
  }
  func.func @transform_3(%arg0: i32) -> (i32, i32, i32) {
    %c0_i32 = arith.constant 0 : i32
    %c0_i32_0 = arith.constant 0 : i32
    %c0_i32_1 = arith.constant 0 : i32
    %c0_i32_2 = arith.constant 0 : i32
    return %c0_i32, %c0_i32_0, %c0_i32_1 : i32, i32, i32
  }
  func.func @transform_4(%arg0: i32) -> (i32, i32, i32) {
    %c0_i32 = arith.constant 0 : i32
    %c0_i32_0 = arith.constant 0 : i32
    %c0_i32_1 = arith.constant 0 : i32
    %c0_i32_2 = arith.constant 0 : i32
    return %c0_i32, %c0_i32_0, %c0_i32_1 : i32, i32, i32
  }
  func.func @transform_5(%arg0: i32) -> (i32, i32, i32) {
    %c0_i32 = arith.constant 0 : i32
    %c0_i32_0 = arith.constant 0 : i32
    %c0_i32_1 = arith.constant 0 : i32
    %c0_i32_2 = arith.constant 0 : i32
    return %c0_i32, %c0_i32_0, %c0_i32_1 : i32, i32, i32
  }
  func.func @transform_6(%arg0: i32) -> (i32, i32, i32) {
    %c0_i32 = arith.constant 0 : i32
    %c0_i32_0 = arith.constant 0 : i32
    %c0_i32_1 = arith.constant 0 : i32
    %c0_i32_2 = arith.constant 0 : i32
    return %c0_i32, %c0_i32_0, %c0_i32_1 : i32, i32, i32
  }
  func.func @transform_7(%arg0: i32) -> (i32, i32, i32) {
    %c0_i32 = arith.constant 0 : i32
    %c0_i32_0 = arith.constant 0 : i32
    %c0_i32_1 = arith.constant 0 : i32
    %c0_i32_2 = arith.constant 0 : i32
    return %c0_i32, %c0_i32_0, %c0_i32_1 : i32, i32, i32
  }
  func.func @transform_8(%arg0: i32) -> (i32, i32, i32) {
    %c0_i32 = arith.constant 0 : i32
    %c0_i32_0 = arith.constant 0 : i32
    %c0_i32_1 = arith.constant 0 : i32
    %c0_i32_2 = arith.constant 0 : i32
    return %c0_i32, %c0_i32_0, %c0_i32_1 : i32, i32, i32
  }
  func.func @transform_9(%arg0: i32) -> (i32, i32, i32) {
    %c0_i32 = arith.constant 0 : i32
    %c0_i32_0 = arith.constant 0 : i32
    %c0_i32_1 = arith.constant 0 : i32
    %c0_i32_2 = arith.constant 0 : i32
    return %c0_i32, %c0_i32_0, %c0_i32_1 : i32, i32, i32
  }
  func.func @transform_10(%arg0: i32) -> (i32, i32) {
    %c0_i32 = arith.constant 0 : i32
    %c0_i32_0 = arith.constant 0 : i32
    %c0_i32_1 = arith.constant 0 : i32
    return %c0_i32, %c0_i32_0 : i32, i32
  }
  func.func @transform_11(%arg0: i32) -> (i32, i32) {
    %c0_i32 = arith.constant 0 : i32
    %c0_i32_0 = arith.constant 0 : i32
    %c0_i32_1 = arith.constant 0 : i32
    return %c0_i32, %c0_i32_0 : i32, i32
  }
  func.func @transform_12(%arg0: i32) -> (i32, i32) {
    %c0_i32 = arith.constant 0 : i32
    %c0_i32_0 = arith.constant 0 : i32
    %c0_i32_1 = arith.constant 0 : i32
    return %c0_i32, %c0_i32_0 : i32, i32
  }
  func.func @transform_13(%arg0: i32) -> (i32, i32) {
    %c0_i32 = arith.constant 0 : i32
    %c0_i32_0 = arith.constant 0 : i32
    %c0_i32_1 = arith.constant 0 : i32
    return %c0_i32, %c0_i32_0 : i32, i32
  }
  func.func @transform_14(%arg0: i32) -> (i32, i32) {
    %c0_i32 = arith.constant 0 : i32
    %c0_i32_0 = arith.constant 0 : i32
    %c0_i32_1 = arith.constant 0 : i32
    return %c0_i32, %c0_i32_0 : i32, i32
  }
  func.func @transform_15(%arg0: i32) -> (i32, i32) {
    %c0_i32 = arith.constant 0 : i32
    %c0_i32_0 = arith.constant 0 : i32
    %c0_i32_1 = arith.constant 0 : i32
    return %c0_i32, %c0_i32_0 : i32, i32
  }
  func.func @transform_16(%arg0: i32) -> (i32, i32) {
    %c0_i32 = arith.constant 0 : i32
    %c0_i32_0 = arith.constant 0 : i32
    %c0_i32_1 = arith.constant 0 : i32
    return %c0_i32, %c0_i32_0 : i32, i32
  }
  func.func @transform_17(%arg0: i32) -> (i32, i32) {
    %c0_i32 = arith.constant 0 : i32
    %c0_i32_0 = arith.constant 0 : i32
    %c0_i32_1 = arith.constant 0 : i32
    return %c0_i32, %c0_i32_0 : i32, i32
  }
  func.func @transform_18(%arg0: i32) -> (i32, i32) {
    %c0_i32 = arith.constant 0 : i32
    %c0_i32_0 = arith.constant 0 : i32
    %c0_i32_1 = arith.constant 0 : i32
    return %c0_i32, %c0_i32_0 : i32, i32
  }
  func.func @transform_19(%arg0: i32) -> (i32, i32, i32) {
    %c0_i32 = arith.constant 0 : i32
    %c0_i32_0 = arith.constant 0 : i32
    %c0_i32_1 = arith.constant 0 : i32
    return %arg0, %c0_i32, %c0_i32_0 : i32, i32, i32
  }
}

</mosaic_0001>

<llo_original>
// kernel: transformer_forward.7
$region0: #{transformer_forward.7}
  #allocation0 [shape = 'u32[]', space=smem, size = 0x4, offset = 0x4, fixed_abs, tag = 'smem constant byte address 0x4 - core index']
  #allocation1 [shape = 'u32[144,128]{1,0:T(1,128)}', space=vmem, size = 0x12000, scoped, tag = 'internal scratch']
  %s0 = inlined_call_operand.vmem [shape: bf16[2,8,32], index: 0, kind: input, shape index: {}]
  %s1 = inlined_call_operand.vmem [shape: bf16[1,32], index: 1, kind: input, shape index: {}]
  %s2 = inlined_call_operand.vmem [shape: bf16[1,32], index: 2, kind: input, shape index: {}]
  %s3 = inlined_call_operand.vmem [shape: bf16[32,64], index: 3, kind: input, shape index: {}]
  %s4 = inlined_call_operand.vmem [shape: bf16[1,64], index: 4, kind: input, shape index: {}]
  %s5 = inlined_call_operand.vmem [shape: bf16[32,64], index: 5, kind: input, shape index: {}]
  %s6 = inlined_call_operand.vmem [shape: bf16[1,64], index: 6, kind: input, shape index: {}]
  %s7 = inlined_call_operand.vmem [shape: bf16[64,32], index: 7, kind: input, shape index: {}]
  %s8 = inlined_call_operand.vmem [shape: bf16[1,32], index: 8, kind: input, shape index: {}]
  %s9 = inlined_call_operand.hbm [shape: f32[2,8,32], index: 9, kind: output, shape index: {}]
  %s10 = sld [smem:[#allocation0]]
  $region69: #{transformer_forward.7} parent=0
    _
  %s12 = ssub.s32 1, %s10
  %s13 = scalar_select 0, %s12, %s10
  $region1: #{transformer_forward.7} parent=0
    #allocation2 [shape = 'u8[8192]{0}', space=vmem, size = 0x2000, scoped, tag = 'output window, operand 0']
    #allocation3 [shape = 's32[2]{0}', space=sflag, size = 0x8, scoped, tag = 'scoped memory for transformer_forward.7']
    %14 = vsyncpa [#allocation3], 0
    %s15 = scalar_lea.sflag [#allocation3], 1
    %16 = vsyncpa %s15, 0
    loop: start=0, step=1, limit=4
    $region2: #{transformer_forward.7} parent=1 // loop_pre_header
      _
    $region3: #{transformer_forward.7} parent=1 // loop_header
      %s18 = sphi 0, %s22
      %p19 = scmp.ge.s32.totalorder %s18, 4
      %s28 = sphi 0, %s30
      %s31 = sphi 0, %s28
      %s32 = sphi 0, %s31
      %s48 = sphi 0, %s32
      %s52 = sphi 0, %s52
      %s54 = sphi 0, %s52
      %s55 = sphi 0, %s54
      %s69 = sphi 0, %s55
      %s73 = sphi 0, %s73
      %s75 = sphi 0, %s73
      %s76 = sphi 0, %s75
      %s90 = sphi 0, %s76
      %s94 = sphi 0, %s94
      %s96 = sphi 0, %s94
      %s97 = sphi 0, %s96
      %s111 = sphi 0, %s97
      %s115 = sphi 0, %s115
      %s117 = sphi 0, %s115
      %s118 = sphi 0, %s117
      %s132 = sphi 0, %s118
      %s136 = sphi 0, %s136
      %s138 = sphi 0, %s136
      %s139 = sphi 0, %s138
      %s153 = sphi 0, %s139
      %s157 = sphi 0, %s157
      %s159 = sphi 0, %s157
      %s160 = sphi 0, %s159
      %s174 = sphi 0, %s160
      %s178 = sphi 0, %s178
      %s180 = sphi 0, %s178
      %s181 = sphi 0, %s180
      %s195 = sphi 0, %s181
      %s199 = sphi 0, %s199
      %s201 = sphi 0, %s199
      %s202 = sphi 0, %s201
      %s216 = sphi 0, %s202
      %s222 = sphi 0, %s224
      %s225 = sphi 0, %s222
      %s226 = sphi 0, %s225
      %s242 = sphi 0, %s226
    $region4: #{transformer_forward.7} parent=1 // loop_header_branch
      %21 = sbr.rel (%p19) target = $region8
    $region5: #{transformer_forward.7} parent=1 // loop_body
      %s23 = ssub.s32 %s18, 1
      %s24 = ssub.s32 %s18, 2
      %s25 = sadd.s32 %s18, 1
      %s26 = ssub.s32 %s18, %s25
      %p27 = scmp.eq.s32.totalorder %s26, 0
      %s29 = sadd.s32 %s28, 1
      %s30 = scalar_select %p27, %s28, %s29
      %p33 = pneg %p27
      %p34 = scmp.eq.s32.totalorder %s18, 1
      %p35 = por %p33, %p34
      %p36 = scmp.ne.s32.totalorder %s28, %s31
      %p37 = scmp.eq.s32.totalorder %s18, 0
      %p38 = por %p36, %p37
      %p39 = scmp.ne.s32.totalorder %s28, %s31
      %p40 = scmp.eq.s32.totalorder %s23, 1
      %p41 = por %p39, %p40
      %p42 = scmp.ne.s32.totalorder %s31, %s32
      %p43 = scmp.eq.s32.totalorder %s23, 0
      %p44 = por %p42, %p43
      %p45 = scmp.ne.s32.totalorder %s31, %s32
      %p46 = scmp.eq.s32.totalorder %s24, 1
      %p47 = por %p45, %p46
      %p49 = scmp.ne.s32.totalorder %s32, %s48
      %p50 = scmp.eq.s32.totalorder %s24, 0
      %p51 = por %p49, %p50
      %s53 = sadd.s32 %s52, 1
      %p56 = scmp.eq.s32.totalorder %s18, 1
      %p57 = scmp.ne.s32.totalorder %s52, %s54
      %p58 = scmp.eq.s32.totalorder %s18, 0
      %p59 = por %p57, %p58
      %p60 = scmp.ne.s32.totalorder %s52, %s54
      %p61 = scmp.eq.s32.totalorder %s23, 1
      %p62 = por %p60, %p61
      %p63 = scmp.ne.s32.totalorder %s54, %s55
      %p64 = scmp.eq.s32.totalorder %s23, 0
      %p65 = por %p63, %p64
      %p66 = scmp.ne.s32.totalorder %s54, %s55
      %p67 = scmp.eq.s32.totalorder %s24, 1
      %p68 = por %p66, %p67
      %p70 = scmp.ne.s32.totalorder %s55, %s69
      %p71 = scmp.eq.s32.totalorder %s24, 0
      %p72 = por %p70, %p71
      %s74 = sadd.s32 %s73, 1
      %p77 = scmp.eq.s32.totalorder %s18, 1
      %p78 = scmp.ne.s32.totalorder %s73, %s75
      %p79 = scmp.eq.s32.totalorder %s18, 0
      %p80 = por %p78, %p79
      %p81 = scmp.ne.s32.totalorder %s73, %s75
      %p82 = scmp.eq.s32.totalorder %s23, 1
      %p83 = por %p81, %p82
      %p84 = scmp.ne.s32.totalorder %s75, %s76
      %p85 = scmp.eq.s32.totalorder %s23, 0
      %p86 = por %p84, %p85
      %p87 = scmp.ne.s32.totalorder %s75, %s76
      %p88 = scmp.eq.s32.totalorder %s24, 1
      %p89 = por %p87, %p88
      %p91 = scmp.ne.s32.totalorder %s76, %s90
      %p92 = scmp.eq.s32.totalorder %s24, 0
      %p93 = por %p91, %p92
      %s95 = sadd.s32 %s94, 1
      %p98 = scmp.eq.s32.totalorder %s18, 1
      %p99 = scmp.ne.s32.totalorder %s94, %s96
      %p100 = scmp.eq.s32.totalorder %s18, 0
      %p101 = por %p99, %p100
      %p102 = scmp.ne.s32.totalorder %s94, %s96
      %p103 = scmp.eq.s32.totalorder %s23, 1
      %p104 = por %p102, %p103
      %p105 = scmp.ne.s32.totalorder %s96, %s97
      %p106 = scmp.eq.s32.totalorder %s23, 0
      %p107 = por %p105, %p106
      %p108 = scmp.ne.s32.totalorder %s96, %s97
      %p109 = scmp.eq.s32.totalorder %s24, 1
      %p110 = por %p108, %p109
      %p112 = scmp.ne.s32.totalorder %s97, %s111
      %p113 = scmp.eq.s32.totalorder %s24, 0
      %p114 = por %p112, %p113
      %s116 = sadd.s32 %s115, 1
      %p119 = scmp.eq.s32.totalorder %s18, 1
      %p120 = scmp.ne.s32.totalorder %s115, %s117
      %p121 = scmp.eq.s32.totalorder %s18, 0
      %p122 = por %p120, %p121
      %p123 = scmp.ne.s32.totalorder %s115, %s117
      %p124 = scmp.eq.s32.totalorder %s23, 1
      %p125 = por %p123, %p124
      %p126 = scmp.ne.s32.totalorder %s117, %s118
      %p127 = scmp.eq.s32.totalorder %s23, 0
      %p128 = por %p126, %p127
      %p129 = scmp.ne.s32.totalorder %s117, %s118
      %p130 = scmp.eq.s32.totalorder %s24, 1
      %p131 = por %p129, %p130
      %p133 = scmp.ne.s32.totalorder %s118, %s132
      %p134 = scmp.eq.s32.totalorder %s24, 0
      %p135 = por %p133, %p134
      %s137 = sadd.s32 %s136, 1
      %p140 = scmp.eq.s32.totalorder %s18, 1
      %p141 = scmp.ne.s32.totalorder %s136, %s138
      %p142 = scmp.eq.s32.totalorder %s18, 0
      %p143 = por %p141, %p142
      %p144 = scmp.ne.s32.totalorder %s136, %s138
      %p145 = scmp.eq.s32.totalorder %s23, 1
      %p146 = por %p144, %p145
      %p147 = scmp.ne.s32.totalorder %s138, %s139
      %p148 = scmp.eq.s32.totalorder %s23, 0
      %p149 = por %p147, %p148
      %p150 = scmp.ne.s32.totalorder %s138, %s139
      %p151 = scmp.eq.s32.totalorder %s24, 1
      %p152 = por %p150, %p151
      %p154 = scmp.ne.s32.totalorder %s139, %s153
      %p155 = scmp.eq.s32.totalorder %s24, 0
      %p156 = por %p154, %p155
      %s158 = sadd.s32 %s157, 1
      %p161 = scmp.eq.s32.totalorder %s18, 1
      %p162 = scmp.ne.s32.totalorder %s157, %s159
      %p163 = scmp.eq.s32.totalorder %s18, 0
      %p164 = por %p162, %p163
      %p165 = scmp.ne.s32.totalorder %s157, %s159
      %p166 = scmp.eq.s32.totalorder %s23, 1
      %p167 = por %p165, %p166
      %p168 = scmp.ne.s32.totalorder %s159, %s160
      %p169 = scmp.eq.s32.totalorder %s23, 0
      %p170 = por %p168, %p169
      %p171 = scmp.ne.s32.totalorder %s159, %s160
      %p172 = scmp.eq.s32.totalorder %s24, 1
      %p173 = por %p171, %p172
      %p175 = scmp.ne.s32.totalorder %s160, %s174
      %p176 = scmp.eq.s32.totalorder %s24, 0
      %p177 = por %p175, %p176
      %s179 = sadd.s32 %s178, 1
      %p182 = scmp.eq.s32.totalorder %s18, 1
      %p183 = scmp.ne.s32.totalorder %s178, %s180
      %p184 = scmp.eq.s32.totalorder %s18, 0
      %p185 = por %p183, %p184
      %p186 = scmp.ne.s32.totalorder %s178, %s180
      %p187 = scmp.eq.s32.totalorder %s23, 1
      %p188 = por %p186, %p187
      %p189 = scmp.ne.s32.totalorder %s180, %s181
      %p190 = scmp.eq.s32.totalorder %s23, 0
      %p191 = por %p189, %p190
      %p192 = scmp.ne.s32.totalorder %s180, %s181
      %p193 = scmp.eq.s32.totalorder %s24, 1
      %p194 = por %p192, %p193
      %p196 = scmp.ne.s32.totalorder %s181, %s195
      %p197 = scmp.eq.s32.totalorder %s24, 0
      %p198 = por %p196, %p197
      %s200 = sadd.s32 %s199, 1
      %p203 = scmp.eq.s32.totalorder %s18, 1
      %p204 = scmp.ne.s32.totalorder %s199, %s201
      %p205 = scmp.eq.s32.totalorder %s18, 0
      %p206 = por %p204, %p205
      %p207 = scmp.ne.s32.totalorder %s199, %s201
      %p208 = scmp.eq.s32.totalorder %s23, 1
      %p209 = por %p207, %p208
      %p210 = scmp.ne.s32.totalorder %s201, %s202
      %p211 = scmp.eq.s32.totalorder %s23, 0
      %p212 = por %p210, %p211
      %p213 = scmp.ne.s32.totalorder %s201, %s202
      %p214 = scmp.eq.s32.totalorder %s24, 1
      %p215 = por %p213, %p214
      %p217 = scmp.ne.s32.totalorder %s202, %s216
      %p218 = scmp.eq.s32.totalorder %s24, 0
      %p219 = por %p217, %p218
      %s220 = ssub.s32 %s18, %s25
      %p221 = scmp.eq.s32.totalorder %s220, 0
      %s223 = sadd.s32 %s222, 1
      %s224 = scalar_select %p221, %s222, %s223
      %p227 = pneg %p221
      %p228 = scmp.eq.s32.totalorder %s18, 1
      %p229 = por %p227, %p228
      %p230 = scmp.ne.s32.totalorder %s222, %s225
      %p231 = scmp.eq.s32.totalorder %s18, 0
      %p232 = por %p230, %p231
      %p233 = scmp.ne.s32.totalorder %s222, %s225
      %p234 = scmp.eq.s32.totalorder %s23, 1
      %p235 = por %p233, %p234
      %p236 = scmp.ne.s32.totalorder %s225, %s226
      %p237 = scmp.eq.s32.totalorder %s23, 0
      %p238 = por %p236, %p237
      %p239 = scmp.ne.s32.totalorder %s225, %s226
      %p240 = scmp.eq.s32.totalorder %s24, 1
      %p241 = por %p239, %p240
      %p243 = scmp.ne.s32.totalorder %s226, %s242
      %p244 = scmp.eq.s32.totalorder %s24, 0
      %p245 = por %p243, %p244
      %p246 = scmp.le.s32.totalorder 1, %s18
      %p247 = scmp.lt.s32.totalorder %s18, 3
      %p248 = pnand %p246, %p247
      %p249 = pneg %p248
      // Predicated region
      $region9: #{transformer_forward.7} parent=5 // pred_check
        _
      $region10: #{transformer_forward.7} parent=5 // pred_check_branch
        %251 = sbr.rel (%p248) target = $region12
      $region11: #{transformer_forward.7} parent=5 // pred_region
        %s252 = ssub.s32 %s18, 1
        // Predicated region
        $region13: #{transformer_forward.7} parent=11 // pred_check
          %p253 = pneg %p65
        $region14: #{transformer_forward.7} parent=11 // pred_check_branch
          %255 = sbr.rel (%p253) target = $region16
        $region15: #{transformer_forward.7} parent=11 // pred_region
          _
        $region16: #{transformer_forward.7} parent=11 // pred_fallthru
          _
        // Predicated region
        $region17: #{transformer_forward.7} parent=11 // pred_check
          %p256 = pneg %p86
        $region18: #{transformer_forward.7} parent=11 // pred_check_branch
          %258 = sbr.rel (%p256) target = $region20
        $region19: #{transformer_forward.7} parent=11 // pred_region
          _
        $region20: #{transformer_forward.7} parent=11 // pred_fallthru
          _
        // Predicated region
        $region21: #{transformer_forward.7} parent=11 // pred_check
          %p259 = pneg %p107
        $region22: #{transformer_forward.7} parent=11 // pred_check_branch
          %261 = sbr.rel (%p259) target = $region24
        $region23: #{transformer_forward.7} parent=11 // pred_region
          _
        $region24: #{transformer_forward.7} parent=11 // pred_fallthru
          _
        // Predicated region
        $region25: #{transformer_forward.7} parent=11 // pred_check
          %p262 = pneg %p128
        $region26: #{transformer_forward.7} parent=11 // pred_check_branch
          %264 = sbr.rel (%p262) target = $region28
        $region27: #{transformer_forward.7} parent=11 // pred_region
          _
        $region28: #{transformer_forward.7} parent=11 // pred_fallthru
          _
        // Predicated region
        $region29: #{transformer_forward.7} parent=11 // pred_check
          %p265 = pneg %p149
        $region30: #{transformer_forward.7} parent=11 // pred_check_branch
          %267 = sbr.rel (%p265) target = $region32
        $region31: #{transformer_forward.7} parent=11 // pred_region
          _
        $region32: #{transformer_forward.7} parent=11 // pred_fallthru
          _
        // Predicated region
        $region33: #{transformer_forward.7} parent=11 // pred_check
          %p268 = pneg %p170
        $region34: #{transformer_forward.7} parent=11 // pred_check_branch
          %270 = sbr.rel (%p268) target = $region36
        $region35: #{transformer_forward.7} parent=11 // pred_region
          _
        $region36: #{transformer_forward.7} parent=11 // pred_fallthru
          _
        // Predicated region
        $region37: #{transformer_forward.7} parent=11 // pred_check
          %p271 = pneg %p191
        $region38: #{transformer_forward.7} parent=11 // pred_check_branch
          %273 = sbr.rel (%p271) target = $region40
        $region39: #{transformer_forward.7} parent=11 // pred_region
          _
        $region40: #{transformer_forward.7} parent=11 // pred_fallthru
          _
        // Predicated region
        $region41: #{transformer_forward.7} parent=11 // pred_check
          %p274 = pneg %p212
        $region42: #{transformer_forward.7} parent=11 // pred_check_branch
          %276 = sbr.rel (%p274) target = $region44
        $region43: #{transformer_forward.7} parent=11 // pred_region
          _
        $region44: #{transformer_forward.7} parent=11 // pred_fallthru
          _
      $region12: #{transformer_forward.7} parent=5 // pred_fallthru
        _
      %p277 = scmp.lt.s32.totalorder %s18, 2
      // Predicated region
      $region45: #{transformer_forward.7} parent=5 // pred_check
        %p278 = pneg %p277
      $region46: #{transformer_forward.7} parent=5 // pred_check_branch
        %280 = sbr.rel (%p278) target = $region48
      $region47: #{transformer_forward.7} parent=5 // pred_region
        // Predicated region
        $region49: #{transformer_forward.7} parent=47 // pred_check
          %p281 = pneg %p38
        $region50: #{transformer_forward.7} parent=47 // pred_check_branch
          %283 = sbr.rel (%p281) target = $region52
        $region51: #{transformer_forward.7} parent=47 // pred_region
          %p284 = scmp.lt.s32.totalorder %s18, 1
          %s285 = scalar_select %p284, %s18, 1
          %s286 = smul.addr %s285, 4
          %s287 = scalar_lea.vmem %s0, %s286
        $region52: #{transformer_forward.7} parent=47 // pred_fallthru
          _
      $region48: #{transformer_forward.7} parent=5 // pred_fallthru
        _
      %p288 = scmp.le.s32.totalorder 1, %s18
      %p289 = scmp.lt.s32.totalorder %s18, 3
      %p290 = pnand %p288, %p289
      %p291 = pneg %p290
      // Predicated region
      $region53: #{transformer_forward.7} parent=5 // pred_check
        _
      $region54: #{transformer_forward.7} parent=5 // pred_check_branch
        %293 = sbr.rel (%p290) target = $region56
      $region55: #{transformer_forward.7} parent=5 // pred_region
        %s294 = ssub.s32 %s18, 1
        %p295 = scmp.lt.s32.totalorder %s23, 1
        %s296 = scalar_select %p295, %s23, 1
        %s297 = smul.addr %s296, 4
        %s298 = scalar_lea.vmem %s0, %s297
        %p299 = pneg %p44
        %p300 = pneg %p41
        %p301 = pneg %p65
        %p302 = pneg %p62
        %p303 = pneg %p86
        %p304 = pneg %p83
        %p305 = pneg %p107
        %p306 = pneg %p104
        %p307 = pneg %p128
        %p308 = pneg %p125
        %p309 = pneg %p149
        %p310 = pneg %p146
        %p311 = pneg %p170
        %p312 = pneg %p167
        %p313 = pneg %p191
        %p314 = pneg %p188
        %p315 = pneg %p212
        %p316 = pneg %p209
        %p317 = pneg %p238
        %p318 = pneg %p235
        %s319 = sand.u32 %s225, 1
        %s320 = scalar_lea.sflag [#allocation3], %s319
        %s321 = sand.u32 %s225, 1
        %s322 = smul.addr %s321, 8
        %s323 = scalar_lea.vmem [#allocation2], %s322
        %p324 = scmp.lt.s32.totalorder %s23, 1
        %s325 = scalar_select %p324, %s23, 1
        %s326 = smul.addr %s325, 4
        %s327 = scalar_lea.vmem %s0, %s326
        %v329 = vld [vmem:[%s327] sm:$0xf]
        %v330 = vunpack.c.l.bf16 %v329
        %v331 = vld [vmem:[%s1] sm:$0x1]
        %v332 = vld [vmem:[%s2] sm:$0x1]
        %vm333 = vcmask 261120
        %v334 = vsel %vm333, %v330, 0.0
        %335 = vadd.xlane.f32.xlu0 %v334
        %v336 = vpop.xlane.xlu0 %335
        %v337 = vrcp.pop 32.0
        %v338 = vmul.f32 %v336, %v337
        %v339 = vsub.f32 %v330, %v338
        %v340 = vmul.f32 %v339, %v339
        %v341 = vsel %vm333, %v340, 0.0
        %342 = vadd.xlane.f32.xlu0 %v341
        %v343 = vpop.xlane.xlu0 %342
        %v344 = vmul.f32 %v343, %v337
        %v345 = vadd.f32 %v344, 1e-05
        %v346 = vrsqrt.pop %v345
        %v347 = vmul.f32 %v339, %v346
        %v348 = vunpack.c.l.bf16 %v331
        %v349 = vlaneseq
        %v350 = vshrl.u32 %v349, 7
        %v351 = vsub.s32 0, %v350
        %v352 = vrot.slane %v348, %v351
        %v353 = vmul.f32 %v347, %v352
        %v354 = vunpack.c.l.bf16 %v332
        %v355 = vlaneseq
        %v356 = vshrl.u32 %v355, 7
        %v357 = vsub.s32 0, %v356
        %v358 = vrot.slane %v354, %v357
        %v359 = vadd.f32 %v353, %v358
        %v360 = vpack.c.bf16 %v359, %v359
        %v361 = vld [vmem:[%s3] sm:$0xf]
        %v362 = vld [vmem:[%s3 + $0x4] sm:$0xf]
        %v363 = vld [vmem:[%s3 + $0x8] sm:$0xf]
        %v364 = vld [vmem:[%s3 + $0xc] sm:$0xf]
        %v365 = vld [vmem:[%s4] sm:$0x1]
        %v366 = vunpack.c.l.bf16 %v365
        %v367 = vlaneseq
        %v368 = vshrl.u32 %v367, 7
        %v369 = vsub.s32 0, %v368
        %v370 = vrot.slane %v366, %v369
        %v375 = vunpack.c.l.b16 %v361
        %v376 = vunpack.c.l.b16 %v362
        %v377 = vunpack.c.l.b16 %v363
        %v378 = vunpack.c.l.b16 %v364
        %v379 = vpack.c.b16 %v376, %v375
        %v380 = vpack.c.b16 %v378, %v377
        %v384 = vsel %vm333, %v360, 0
        %386 = vmatprep.subr.bf16.mxu0 0
        %387 = vmatpush1.bf16.msra.mxu0 %v379
        %388 = vmatprep.subr.bf16.mxu0 0
        %389 = vmatpush1.bf16.msra.mxu0 %v380
        %390 = vmatprep.subr.bf16.mxu0 0
        %391 = vmatpush1.bf16.msra.mxu0 0
        %392 = vmatprep.subr.bf16.mxu0 0
        %393 = vmatpush1.bf16.msra.mxu0 0
        %394 = vmatprep.subr.bf16.mxu0 0
        %395 = vmatpush1.bf16.msra.mxu0 0
        %396 = vmatprep.subr.bf16.mxu0 0
        %397 = vmatpush1.bf16.msra.mxu0 0
        %398 = vmatprep.subr.bf16.mxu0 0
        %399 = vmatpush1.bf16.msra.mxu0 0
        %400 = vmatprep.subr.bf16.mxu0 0
        %401 = vmatpush1.bf16.msra.mxu0 0
        %402 = vmatprep.subr.bf16.mxu0 0
        %403 = vmatpush1.bf16.msra.mxu0 0
        %404 = vmatprep.subr.bf16.mxu0 0
        %405 = vmatpush1.bf16.msra.mxu0 0
        %406 = vmatprep.subr.bf16.mxu0 0
        %407 = vmatpush1.bf16.msra.mxu0 0
        %408 = vmatprep.subr.bf16.mxu0 0
        %409 = vmatpush1.bf16.msra.mxu0 0
        %410 = vmatprep.subr.bf16.mxu0 0
        %411 = vmatpush1.bf16.msra.mxu0 0
        %412 = vmatprep.subr.bf16.mxu0 0
        %413 = vmatpush1.bf16.msra.mxu0 0
        %414 = vmatprep.subr.bf16.mxu0 0
        %415 = vmatpush1.bf16.msra.mxu0 0
        %416 = vmatprep.subr.bf16.mxu0 0
        %417 = vmatpush1.bf16.msra.mxu0 0
        %418 = vmatprep.mubr.bf16.mxu0 0
        %419 = vmatmul.mubr.bf16.gmra.mrb[0].mxu0 %v384
        %v420 = vpop.f32.mrb[0].mxu0
        %v421 = vadd.f32 %v370, %v420
        %v422 = vpop.f32.mrb[0].mxu0
        %v423 = vpop.f32.mrb[0].mxu0
        %v424 = vpop.f32.mrb[0].mxu0
        %425 = vdwg.mxu0
        %v426 = vxor.u32 %v421, 2147483648
        %v427 = vmul.f32 %v426, 1.442695
        %v428 = vpow.pop %v427
        %v429 = vadd.f32 %v428, 1.0
        %v430 = vrcp.pop %v429
        %v431 = vmul.f32 1.0, %v430
        %v432 = vmul.f32 %v421, %v431
        %v433 = vld [vmem:[%s5] sm:$0xf]
        %v434 = vld [vmem:[%s5 + $0x4] sm:$0xf]
        %v435 = vld [vmem:[%s5 + $0x8] sm:$0xf]
        %v436 = vld [vmem:[%s5 + $0xc] sm:$0xf]
        %v437 = vld [vmem:[%s6] sm:$0x1]
        %v438 = vunpack.c.l.bf16 %v437
        %v439 = vlaneseq
        %v440 = vshrl.u32 %v439, 7
        %v441 = vsub.s32 0, %v440
        %v442 = vrot.slane %v438, %v441
        %v447 = vunpack.c.l.b16 %v433
        %v448 = vunpack.c.l.b16 %v434
        %v449 = vunpack.c.l.b16 %v435
        %v450 = vunpack.c.l.b16 %v436
        %v451 = vpack.c.b16 %v448, %v447
        %v452 = vpack.c.b16 %v450, %v449
        %455 = vmatprep.subr.bf16.mxu0 0
        %456 = vmatpush1.bf16.msra.mxu0 %v451
        %457 = vmatprep.subr.bf16.mxu0 0
        %458 = vmatpush1.bf16.msra.mxu0 %v452
        %459 = vmatprep.subr.bf16.mxu0 0
        %460 = vmatpush1.bf16.msra.mxu0 0
        %461 = vmatprep.subr.bf16.mxu0 0
        %462 = vmatpush1.bf16.msra.mxu0 0
        %463 = vmatprep.subr.bf16.mxu0 0
        %464 = vmatpush1.bf16.msra.mxu0 0
        %465 = vmatprep.subr.bf16.mxu0 0
        %466 = vmatpush1.bf16.msra.mxu0 0
        %467 = vmatprep.subr.bf16.mxu0 0
        %468 = vmatpush1.bf16.msra.mxu0 0
        %469 = vmatprep.subr.bf16.mxu0 0
        %470 = vmatpush1.bf16.msra.mxu0 0
        %471 = vmatprep.subr.bf16.mxu0 0
        %472 = vmatpush1.bf16.msra.mxu0 0
        %473 = vmatprep.subr.bf16.mxu0 0
        %474 = vmatpush1.bf16.msra.mxu0 0
        %475 = vmatprep.subr.bf16.mxu0 0
        %476 = vmatpush1.bf16.msra.mxu0 0
        %477 = vmatprep.subr.bf16.mxu0 0
        %478 = vmatpush1.bf16.msra.mxu0 0
        %479 = vmatprep.subr.bf16.mxu0 0
        %480 = vmatpush1.bf16.msra.mxu0 0
        %481 = vmatprep.subr.bf16.mxu0 0
        %482 = vmatpush1.bf16.msra.mxu0 0
        %483 = vmatprep.subr.bf16.mxu0 0
        %484 = vmatpush1.bf16.msra.mxu0 0
        %485 = vmatprep.subr.bf16.mxu0 0
        %486 = vmatpush1.bf16.msra.mxu0 0
        %487 = vmatprep.mubr.bf16.mxu0 0
        %488 = vmatmul.mubr.bf16.gmra.mrb[0].mxu0 %v384
        %v489 = vpop.f32.mrb[0].mxu0
        %v490 = vadd.f32 %v442, %v489
        %v491 = vpop.f32.mrb[0].mxu0
        %v492 = vpop.f32.mrb[0].mxu0
        %v493 = vpop.f32.mrb[0].mxu0
        %494 = vdwg.mxu0
        %v495 = vmul.f32 %v432, %v490
        %v496 = vpack.c.bf16 %v495, %v495
        %v497 = vld [vmem:[%s7] sm:$0xf]
        %v498 = vld [vmem:[%s7 + $0x4] sm:$0xf]
        %v499 = vld [vmem:[%s7 + $0x8] sm:$0xf]
        %v500 = vld [vmem:[%s7 + $0xc] sm:$0xf]
        %v501 = vld [vmem:[%s7 + $0x10] sm:$0xf]
        %v502 = vld [vmem:[%s7 + $0x14] sm:$0xf]
        %v503 = vld [vmem:[%s7 + $0x18] sm:$0xf]
        %v504 = vld [vmem:[%s7 + $0x1c] sm:$0xf]
        %v505 = vld [vmem:[%s8] sm:$0x1]
        %v506 = vunpack.c.l.bf16 %v505
        %v507 = vlaneseq
        %v508 = vshrl.u32 %v507, 7
        %v509 = vsub.s32 0, %v508
        %v510 = vrot.slane %v506, %v509
        %v519 = vunpack.c.l.b16 %v497
        %v520 = vunpack.c.l.b16 %v498
        %v521 = vunpack.c.l.b16 %v499
        %v522 = vunpack.c.l.b16 %v500
        %v523 = vunpack.c.l.b16 %v501
        %v524 = vunpack.c.l.b16 %v502
        %v525 = vunpack.c.l.b16 %v503
        %v526 = vunpack.c.l.b16 %v504
        %v527 = vpack.c.b16 %v520, %v519
        %v528 = vpack.c.b16 %v522, %v521
        %v529 = vpack.c.b16 %v524, %v523
        %v530 = vpack.c.b16 %v526, %v525
        %vm535 = vcmask 523264
        %v537 = vsel %vm535, %v496, 0
        %539 = vmatprep.subr.bf16.mxu0 0
        %540 = vmatpush1.bf16.msra.mxu0 %v527
        %541 = vmatprep.subr.bf16.mxu0 0
        %542 = vmatpush1.bf16.msra.mxu0 %v528
        %543 = vmatprep.subr.bf16.mxu0 0
        %544 = vmatpush1.bf16.msra.mxu0 %v529
        %545 = vmatprep.subr.bf16.mxu0 0
        %546 = vmatpush1.bf16.msra.mxu0 %v530
        %547 = vmatprep.subr.bf16.mxu0 0
        %548 = vmatpush1.bf16.msra.mxu0 0
        %549 = vmatprep.subr.bf16.mxu0 0
        %550 = vmatpush1.bf16.msra.mxu0 0
        %551 = vmatprep.subr.bf16.mxu0 0
        %552 = vmatpush1.bf16.msra.mxu0 0
        %553 = vmatprep.subr.bf16.mxu0 0
        %554 = vmatpush1.bf16.msra.mxu0 0
        %555 = vmatprep.subr.bf16.mxu0 0
        %556 = vmatpush1.bf16.msra.mxu0 0
        %557 = vmatprep.subr.bf16.mxu0 0
        %558 = vmatpush1.bf16.msra.mxu0 0
        %559 = vmatprep.subr.bf16.mxu0 0
        %560 = vmatpush1.bf16.msra.mxu0 0
        %561 = vmatprep.subr.bf16.mxu0 0
        %562 = vmatpush1.bf16.msra.mxu0 0
        %563 = vmatprep.subr.bf16.mxu0 0
        %564 = vmatpush1.bf16.msra.mxu0 0
        %565 = vmatprep.subr.bf16.mxu0 0
        %566 = vmatpush1.bf16.msra.mxu0 0
        %567 = vmatprep.subr.bf16.mxu0 0
        %568 = vmatpush1.bf16.msra.mxu0 0
        %569 = vmatprep.subr.bf16.mxu0 0
        %570 = vmatpush1.bf16.msra.mxu0 0
        %571 = vmatprep.mubr.bf16.mxu0 0
        %572 = vmatmul.mubr.bf16.gmra.mrb[0].mxu0 %v537
        %v573 = vpop.f32.mrb[0].mxu0
        %v574 = vadd.f32 %v510, %v573
        %v575 = vpop.f32.mrb[0].mxu0
        %v576 = vpop.f32.mrb[0].mxu0
        %v577 = vpop.f32.mrb[0].mxu0
        %578 = vdwg.mxu0
        %579 = vst.msk [vmem:[%s323] sm:$0xff] %vm333, %v574
        %s580 = sand.u32 %s225, 1
        %s581 = scalar_lea.sflag [#allocation3], %s580
        %s582 = sand.u32 %s225, 1
        %s583 = smul.addr %s582, 8
        %s584 = scalar_lea.vmem [#allocation2], %s583
        // Predicated region
        $region57: #{transformer_forward.7} parent=55 // pred_check
          %p585 = pneg %p235
        $region58: #{transformer_forward.7} parent=55 // pred_check_branch
          %587 = sbr.rel (%p585) target = $region60
        $region59: #{transformer_forward.7} parent=55 // pred_region
          %s589 = ssub.s32 128, 128
          %590 = vsyncadd %s581, %s589
          %s591 = smul.addr %s23, 128
          %s592 = scalar_lea.hbm %s9, %s591
          %s594 = sshll.u32 %s584, 4
          %s595 = int_to_ptr.vmem [resolvable:$true] %s594
          %597 = dma.vmem_to_hbm [thread:$0]  %s595, 128, %s592, %s581
        $region60: #{transformer_forward.7} parent=55 // pred_fallthru
          _
      $region56: #{transformer_forward.7} parent=5 // pred_fallthru
        _
      %p598 = scmp.le.s32.totalorder 2, %s18
      // Predicated region
      $region61: #{transformer_forward.7} parent=5 // pred_check
        %p599 = pneg %p598
      $region62: #{transformer_forward.7} parent=5 // pred_check_branch
        %601 = sbr.rel (%p599) target = $region64
      $region63: #{transformer_forward.7} parent=5 // pred_region
        %s602 = ssub.s32 %s18, 2
        // Predicated region
        $region65: #{transformer_forward.7} parent=63 // pred_check
          %p603 = pneg %p241
        $region66: #{transformer_forward.7} parent=63 // pred_check_branch
          %605 = sbr.rel (%p603) target = $region68
        $region67: #{transformer_forward.7} parent=63 // pred_region
          %s606 = sand.u32 %s226, 1
          %s607 = scalar_lea.sflag [#allocation3], %s606
          %s608 = sand.u32 %s226, 1
          %s609 = smul.addr %s608, 8
          %s610 = scalar_lea.vmem [#allocation2], %s609
          %611 = dma.done %s607, 128
        $region68: #{transformer_forward.7} parent=63 // pred_fallthru
          _
      $region64: #{transformer_forward.7} parent=5 // pred_fallthru
        _
    $region6: #{transformer_forward.7} parent=1 // loop_footer
      %s22 = sadd.s32 1, %s18
    $region7: #{transformer_forward.7} parent=1 // loop_footer_branch
      %17 = sbr.rel target = $region3
    $region8: #{transformer_forward.7} parent=1 // loop_exit
      _
    %612 = vsyncpa [#allocation3], 1
    %s613 = scalar_lea.sflag [#allocation3], 1
    %614 = vsyncpa %s613, 1

// kernel: transformer_forward.4
$region0: #{transformer_forward.4}
  #allocation0 [shape = 'u32[]', space=smem, size = 0x4, offset = 0x4, fixed_abs, tag = 'smem constant byte address 0x4 - core index']
  #allocation1 [shape = 'u32[144,128]{1,0:T(1,128)}', space=vmem, size = 0x12000, scoped, tag = 'internal scratch']
  %s0 = inlined_call_operand.vmem [shape: bf16[2,8,32], index: 0, kind: input, shape index: {}]
  %s1 = inlined_call_operand.vmem [shape: bf16[32,64], index: 1, kind: input, shape index: {}]
  %s2 = inlined_call_operand.vmem [shape: bf16[1,64], index: 2, kind: input, shape index: {}]
  %s3 = inlined_call_operand.vmem [shape: bf16[32,64], index: 3, kind: input, shape index: {}]
  %s4 = inlined_call_operand.vmem [shape: bf16[1,64], index: 4, kind: input, shape index: {}]
  %s5 = inlined_call_operand.vmem [shape: bf16[64,32], index: 5, kind: input, shape index: {}]
  %s6 = inlined_call_operand.vmem [shape: bf16[1,32], index: 6, kind: input, shape index: {}]
  %s7 = inlined_call_operand.vmem [shape: bf16[1,8,32], index: 7, kind: input, shape index: {}]
  %s8 = inlined_call_operand.vmem [shape: bf16[2,8,32], index: 8, kind: output, shape index: {}]
  %s9 = sld [smem:[#allocation0]]
  $region65: #{transformer_forward.4} parent=0
    _
  %s11 = ssub.s32 1, %s9
  %s12 = scalar_select 0, %s11, %s9
  loop: start=0, step=1, limit=4
  $region2: #{transformer_forward.4} parent=0 // loop_pre_header
    _
  $region3: #{transformer_forward.4} parent=0 // loop_header
    %s14 = sphi 0, %s18
    %p15 = scmp.ge.s32.totalorder %s14, 4
    %s24 = sphi 0, %s26
    %s27 = sphi 0, %s24
    %s28 = sphi 0, %s27
    %s44 = sphi 0, %s28
    %s48 = sphi 0, %s48
    %s50 = sphi 0, %s48
    %s51 = sphi 0, %s50
    %s65 = sphi 0, %s51
    %s69 = sphi 0, %s69
    %s71 = sphi 0, %s69
    %s72 = sphi 0, %s71
    %s86 = sphi 0, %s72
    %s90 = sphi 0, %s90
    %s92 = sphi 0, %s90
    %s93 = sphi 0, %s92
    %s107 = sphi 0, %s93
    %s111 = sphi 0, %s111
    %s113 = sphi 0, %s111
    %s114 = sphi 0, %s113
    %s128 = sphi 0, %s114
    %s132 = sphi 0, %s132
    %s134 = sphi 0, %s132
    %s135 = sphi 0, %s134
    %s149 = sphi 0, %s135
    %s153 = sphi 0, %s153
    %s155 = sphi 0, %s153
    %s156 = sphi 0, %s155
    %s170 = sphi 0, %s156
    %s174 = sphi 0, %s174
    %s176 = sphi 0, %s174
    %s177 = sphi 0, %s176
    %s191 = sphi 0, %s177
    %s197 = sphi 0, %s199
    %s200 = sphi 0, %s197
    %s201 = sphi 0, %s200
    %s217 = sphi 0, %s201
  $region4: #{transformer_forward.4} parent=0 // loop_header_branch
    %17 = sbr.rel (%p15) target = $region8
  $region5: #{transformer_forward.4} parent=0 // loop_body
    %s19 = ssub.s32 %s14, 1
    %s20 = ssub.s32 %s14, 2
    %s21 = sadd.s32 %s14, 1
    %s22 = ssub.s32 %s14, %s21
    %p23 = scmp.eq.s32.totalorder %s22, 0
    %s25 = sadd.s32 %s24, 1
    %s26 = scalar_select %p23, %s24, %s25
    %p29 = pneg %p23
    %p30 = scmp.eq.s32.totalorder %s14, 1
    %p31 = por %p29, %p30
    %p32 = scmp.ne.s32.totalorder %s24, %s27
    %p33 = scmp.eq.s32.totalorder %s14, 0
    %p34 = por %p32, %p33
    %p35 = scmp.ne.s32.totalorder %s24, %s27
    %p36 = scmp.eq.s32.totalorder %s19, 1
    %p37 = por %p35, %p36
    %p38 = scmp.ne.s32.totalorder %s27, %s28
    %p39 = scmp.eq.s32.totalorder %s19, 0
    %p40 = por %p38, %p39
    %p41 = scmp.ne.s32.totalorder %s27, %s28
    %p42 = scmp.eq.s32.totalorder %s20, 1
    %p43 = por %p41, %p42
    %p45 = scmp.ne.s32.totalorder %s28, %s44
    %p46 = scmp.eq.s32.totalorder %s20, 0
    %p47 = por %p45, %p46
    %s49 = sadd.s32 %s48, 1
    %p52 = scmp.eq.s32.totalorder %s14, 1
    %p53 = scmp.ne.s32.totalorder %s48, %s50
    %p54 = scmp.eq.s32.totalorder %s14, 0
    %p55 = por %p53, %p54
    %p56 = scmp.ne.s32.totalorder %s48, %s50
    %p57 = scmp.eq.s32.totalorder %s19, 1
    %p58 = por %p56, %p57
    %p59 = scmp.ne.s32.totalorder %s50, %s51
    %p60 = scmp.eq.s32.totalorder %s19, 0
    %p61 = por %p59, %p60
    %p62 = scmp.ne.s32.totalorder %s50, %s51
    %p63 = scmp.eq.s32.totalorder %s20, 1
    %p64 = por %p62, %p63
    %p66 = scmp.ne.s32.totalorder %s51, %s65
    %p67 = scmp.eq.s32.totalorder %s20, 0
    %p68 = por %p66, %p67
    %s70 = sadd.s32 %s69, 1
    %p73 = scmp.eq.s32.totalorder %s14, 1
    %p74 = scmp.ne.s32.totalorder %s69, %s71
    %p75 = scmp.eq.s32.totalorder %s14, 0
    %p76 = por %p74, %p75
    %p77 = scmp.ne.s32.totalorder %s69, %s71
    %p78 = scmp.eq.s32.totalorder %s19, 1
    %p79 = por %p77, %p78
    %p80 = scmp.ne.s32.totalorder %s71, %s72
    %p81 = scmp.eq.s32.totalorder %s19, 0
    %p82 = por %p80, %p81
    %p83 = scmp.ne.s32.totalorder %s71, %s72
    %p84 = scmp.eq.s32.totalorder %s20, 1
    %p85 = por %p83, %p84
    %p87 = scmp.ne.s32.totalorder %s72, %s86
    %p88 = scmp.eq.s32.totalorder %s20, 0
    %p89 = por %p87, %p88
    %s91 = sadd.s32 %s90, 1
    %p94 = scmp.eq.s32.totalorder %s14, 1
    %p95 = scmp.ne.s32.totalorder %s90, %s92
    %p96 = scmp.eq.s32.totalorder %s14, 0
    %p97 = por %p95, %p96
    %p98 = scmp.ne.s32.totalorder %s90, %s92
    %p99 = scmp.eq.s32.totalorder %s19, 1
    %p100 = por %p98, %p99
    %p101 = scmp.ne.s32.totalorder %s92, %s93
    %p102 = scmp.eq.s32.totalorder %s19, 0
    %p103 = por %p101, %p102
    %p104 = scmp.ne.s32.totalorder %s92, %s93
    %p105 = scmp.eq.s32.totalorder %s20, 1
    %p106 = por %p104, %p105
    %p108 = scmp.ne.s32.totalorder %s93, %s107
    %p109 = scmp.eq.s32.totalorder %s20, 0
    %p110 = por %p108, %p109
    %s112 = sadd.s32 %s111, 1
    %p115 = scmp.eq.s32.totalorder %s14, 1
    %p116 = scmp.ne.s32.totalorder %s111, %s113
    %p117 = scmp.eq.s32.totalorder %s14, 0
    %p118 = por %p116, %p117
    %p119 = scmp.ne.s32.totalorder %s111, %s113
    %p120 = scmp.eq.s32.totalorder %s19, 1
    %p121 = por %p119, %p120
    %p122 = scmp.ne.s32.totalorder %s113, %s114
    %p123 = scmp.eq.s32.totalorder %s19, 0
    %p124 = por %p122, %p123
    %p125 = scmp.ne.s32.totalorder %s113, %s114
    %p126 = scmp.eq.s32.totalorder %s20, 1
    %p127 = por %p125, %p126
    %p129 = scmp.ne.s32.totalorder %s114, %s128
    %p130 = scmp.eq.s32.totalorder %s20, 0
    %p131 = por %p129, %p130
    %s133 = sadd.s32 %s132, 1
    %p136 = scmp.eq.s32.totalorder %s14, 1
    %p137 = scmp.ne.s32.totalorder %s132, %s134
    %p138 = scmp.eq.s32.totalorder %s14, 0
    %p139 = por %p137, %p138
    %p140 = scmp.ne.s32.totalorder %s132, %s134
    %p141 = scmp.eq.s32.totalorder %s19, 1
    %p142 = por %p140, %p141
    %p143 = scmp.ne.s32.totalorder %s134, %s135
    %p144 = scmp.eq.s32.totalorder %s19, 0
    %p145 = por %p143, %p144
    %p146 = scmp.ne.s32.totalorder %s134, %s135
    %p147 = scmp.eq.s32.totalorder %s20, 1
    %p148 = por %p146, %p147
    %p150 = scmp.ne.s32.totalorder %s135, %s149
    %p151 = scmp.eq.s32.totalorder %s20, 0
    %p152 = por %p150, %p151
    %s154 = sadd.s32 %s153, 1
    %p157 = scmp.eq.s32.totalorder %s14, 1
    %p158 = scmp.ne.s32.totalorder %s153, %s155
    %p159 = scmp.eq.s32.totalorder %s14, 0
    %p160 = por %p158, %p159
    %p161 = scmp.ne.s32.totalorder %s153, %s155
    %p162 = scmp.eq.s32.totalorder %s19, 1
    %p163 = por %p161, %p162
    %p164 = scmp.ne.s32.totalorder %s155, %s156
    %p165 = scmp.eq.s32.totalorder %s19, 0
    %p166 = por %p164, %p165
    %p167 = scmp.ne.s32.totalorder %s155, %s156
    %p168 = scmp.eq.s32.totalorder %s20, 1
    %p169 = por %p167, %p168
    %p171 = scmp.ne.s32.totalorder %s156, %s170
    %p172 = scmp.eq.s32.totalorder %s20, 0
    %p173 = por %p171, %p172
    %s175 = sadd.s32 %s174, 1
    %p178 = scmp.eq.s32.totalorder %s14, 1
    %p179 = scmp.ne.s32.totalorder %s174, %s176
    %p180 = scmp.eq.s32.totalorder %s14, 0
    %p181 = por %p179, %p180
    %p182 = scmp.ne.s32.totalorder %s174, %s176
    %p183 = scmp.eq.s32.totalorder %s19, 1
    %p184 = por %p182, %p183
    %p185 = scmp.ne.s32.totalorder %s176, %s177
    %p186 = scmp.eq.s32.totalorder %s19, 0
    %p187 = por %p185, %p186
    %p188 = scmp.ne.s32.totalorder %s176, %s177
    %p189 = scmp.eq.s32.totalorder %s20, 1
    %p190 = por %p188, %p189
    %p192 = scmp.ne.s32.totalorder %s177, %s191
    %p193 = scmp.eq.s32.totalorder %s20, 0
    %p194 = por %p192, %p193
    %s195 = ssub.s32 %s14, %s21
    %p196 = scmp.eq.s32.totalorder %s195, 0
    %s198 = sadd.s32 %s197, 1
    %s199 = scalar_select %p196, %s197, %s198
    %p202 = pneg %p196
    %p203 = scmp.eq.s32.totalorder %s14, 1
    %p204 = por %p202, %p203
    %p205 = scmp.ne.s32.totalorder %s197, %s200
    %p206 = scmp.eq.s32.totalorder %s14, 0
    %p207 = por %p205, %p206
    %p208 = scmp.ne.s32.totalorder %s197, %s200
    %p209 = scmp.eq.s32.totalorder %s19, 1
    %p210 = por %p208, %p209
    %p211 = scmp.ne.s32.totalorder %s200, %s201
    %p212 = scmp.eq.s32.totalorder %s19, 0
    %p213 = por %p211, %p212
    %p214 = scmp.ne.s32.totalorder %s200, %s201
    %p215 = scmp.eq.s32.totalorder %s20, 1
    %p216 = por %p214, %p215
    %p218 = scmp.ne.s32.totalorder %s201, %s217
    %p219 = scmp.eq.s32.totalorder %s20, 0
    %p220 = por %p218, %p219
    %p221 = scmp.le.s32.totalorder 1, %s14
    %p222 = scmp.lt.s32.totalorder %s14, 3
    %p223 = pnand %p221, %p222
    %p224 = pneg %p223
    // Predicated region
    $region9: #{transformer_forward.4} parent=5 // pred_check
      _
    $region10: #{transformer_forward.4} parent=5 // pred_check_branch
      %226 = sbr.rel (%p223) target = $region12
    $region11: #{transformer_forward.4} parent=5 // pred_region
      %s227 = ssub.s32 %s14, 1
      // Predicated region
      $region13: #{transformer_forward.4} parent=11 // pred_check
        %p228 = pneg %p61
      $region14: #{transformer_forward.4} parent=11 // pred_check_branch
        %230 = sbr.rel (%p228) target = $region16
      $region15: #{transformer_forward.4} parent=11 // pred_region
        _
      $region16: #{transformer_forward.4} parent=11 // pred_fallthru
        _
      // Predicated region
      $region17: #{transformer_forward.4} parent=11 // pred_check
        %p231 = pneg %p82
      $region18: #{transformer_forward.4} parent=11 // pred_check_branch
        %233 = sbr.rel (%p231) target = $region20
      $region19: #{transformer_forward.4} parent=11 // pred_region
        _
      $region20: #{transformer_forward.4} parent=11 // pred_fallthru
        _
      // Predicated region
      $region21: #{transformer_forward.4} parent=11 // pred_check
        %p234 = pneg %p103
      $region22: #{transformer_forward.4} parent=11 // pred_check_branch
        %236 = sbr.rel (%p234) target = $region24
      $region23: #{transformer_forward.4} parent=11 // pred_region
        _
      $region24: #{transformer_forward.4} parent=11 // pred_fallthru
        _
      // Predicated region
      $region25: #{transformer_forward.4} parent=11 // pred_check
        %p237 = pneg %p124
      $region26: #{transformer_forward.4} parent=11 // pred_check_branch
        %239 = sbr.rel (%p237) target = $region28
      $region27: #{transformer_forward.4} parent=11 // pred_region
        _
      $region28: #{transformer_forward.4} parent=11 // pred_fallthru
        _
      // Predicated region
      $region29: #{transformer_forward.4} parent=11 // pred_check
        %p240 = pneg %p145
      $region30: #{transformer_forward.4} parent=11 // pred_check_branch
        %242 = sbr.rel (%p240) target = $region32
      $region31: #{transformer_forward.4} parent=11 // pred_region
        _
      $region32: #{transformer_forward.4} parent=11 // pred_fallthru
        _
      // Predicated region
      $region33: #{transformer_forward.4} parent=11 // pred_check
        %p243 = pneg %p166
      $region34: #{transformer_forward.4} parent=11 // pred_check_branch
        %245 = sbr.rel (%p243) target = $region36
      $region35: #{transformer_forward.4} parent=11 // pred_region
        _
      $region36: #{transformer_forward.4} parent=11 // pred_fallthru
        _
      // Predicated region
      $region37: #{transformer_forward.4} parent=11 // pred_check
        %p246 = pneg %p187
      $region38: #{transformer_forward.4} parent=11 // pred_check_branch
        %248 = sbr.rel (%p246) target = $region40
      $region39: #{transformer_forward.4} parent=11 // pred_region
        _
      $region40: #{transformer_forward.4} parent=11 // pred_fallthru
        _
    $region12: #{transformer_forward.4} parent=5 // pred_fallthru
      _
    %p249 = scmp.lt.s32.totalorder %s14, 2
    // Predicated region
    $region41: #{transformer_forward.4} parent=5 // pred_check
      %p250 = pneg %p249
    $region42: #{transformer_forward.4} parent=5 // pred_check_branch
      %252 = sbr.rel (%p250) target = $region44
    $region43: #{transformer_forward.4} parent=5 // pred_region
      // Predicated region
      $region45: #{transformer_forward.4} parent=43 // pred_check
        %p253 = pneg %p34
      $region46: #{transformer_forward.4} parent=43 // pred_check_branch
        %255 = sbr.rel (%p253) target = $region48
      $region47: #{transformer_forward.4} parent=43 // pred_region
        %p256 = scmp.lt.s32.totalorder %s14, 1
        %s257 = scalar_select %p256, %s14, 1
        %s258 = smul.addr %s257, 4
        %s259 = scalar_lea.vmem %s0, %s258
      $region48: #{transformer_forward.4} parent=43 // pred_fallthru
        _
    $region44: #{transformer_forward.4} parent=5 // pred_fallthru
      _
    %p260 = scmp.le.s32.totalorder 1, %s14
    %p261 = scmp.lt.s32.totalorder %s14, 3
    %p262 = pnand %p260, %p261
    %p263 = pneg %p262
    // Predicated region
    $region49: #{transformer_forward.4} parent=5 // pred_check
      _
    $region50: #{transformer_forward.4} parent=5 // pred_check_branch
      %265 = sbr.rel (%p262) target = $region52
    $region51: #{transformer_forward.4} parent=5 // pred_region
      %s266 = ssub.s32 %s14, 1
      %p267 = scmp.lt.s32.totalorder %s19, 1
      %s268 = scalar_select %p267, %s19, 1
      %s269 = smul.addr %s268, 4
      %s270 = scalar_lea.vmem %s0, %s269
      %p271 = pneg %p40
      %p272 = pneg %p37
      %p273 = pneg %p61
      %p274 = pneg %p58
      %p275 = pneg %p82
      %p276 = pneg %p79
      %p277 = pneg %p103
      %p278 = pneg %p100
      %p279 = pneg %p124
      %p280 = pneg %p121
      %p281 = pneg %p145
      %p282 = pneg %p142
      %p283 = pneg %p166
      %p284 = pneg %p163
      %p285 = pneg %p187
      %p286 = pneg %p184
      %p287 = pneg %p213
      %p288 = pneg %p210
      %p289 = scmp.lt.s32.totalorder %s19, 1
      %s290 = scalar_select %p289, %s19, 1
      %s291 = smul.addr %s290, 4
      %s292 = scalar_lea.vmem %s8, %s291
      %p293 = scmp.lt.s32.totalorder %s19, 1
      %s294 = scalar_select %p293, %s19, 1
      %s295 = smul.addr %s294, 4
      %s296 = scalar_lea.vmem %s0, %s295
      %p297 = scmp.lt.s32.totalorder %s19, 1
      %s298 = scalar_select %p297, %s19, 1
      %s299 = smul.addr %s298, 4
      %s300 = scalar_lea.vmem %s8, %s299
      %v302 = vld [vmem:[%s296] sm:$0xf]
      %v303 = vld [vmem:[%s1] sm:$0xf]
      %v304 = vld [vmem:[%s1 + $0x4] sm:$0xf]
      %v305 = vld [vmem:[%s1 + $0x8] sm:$0xf]
      %v306 = vld [vmem:[%s1 + $0xc] sm:$0xf]
      %v307 = vld [vmem:[%s2] sm:$0x1]
      %v308 = vunpack.c.l.bf16 %v307
      %v309 = vlaneseq
      %v310 = vshrl.u32 %v309, 7
      %v311 = vsub.s32 0, %v310
      %v312 = vrot.slane %v308, %v311
      %v317 = vunpack.c.l.b16 %v303
      %v318 = vunpack.c.l.b16 %v304
      %v319 = vunpack.c.l.b16 %v305
      %v320 = vunpack.c.l.b16 %v306
      %v321 = vpack.c.b16 %v318, %v317
      %v322 = vpack.c.b16 %v320, %v319
      %vm325 = vcmask 261120
      %v327 = vsel %vm325, %v302, 0
      %329 = vmatprep.subr.bf16.mxu0 0
      %330 = vmatpush1.bf16.msra.mxu0 %v321
      %331 = vmatprep.subr.bf16.mxu0 0
      %332 = vmatpush1.bf16.msra.mxu0 %v322
      %333 = vmatprep.subr.bf16.mxu0 0
      %334 = vmatpush1.bf16.msra.mxu0 0
      %335 = vmatprep.subr.bf16.mxu0 0
      %336 = vmatpush1.bf16.msra.mxu0 0
      %337 = vmatprep.subr.bf16.mxu0 0
      %338 = vmatpush1.bf16.msra.mxu0 0
      %339 = vmatprep.subr.bf16.mxu0 0
      %340 = vmatpush1.bf16.msra.mxu0 0
      %341 = vmatprep.subr.bf16.mxu0 0
      %342 = vmatpush1.bf16.msra.mxu0 0
      %343 = vmatprep.subr.bf16.mxu0 0
      %344 = vmatpush1.bf16.msra.mxu0 0
      %345 = vmatprep.subr.bf16.mxu0 0
      %346 = vmatpush1.bf16.msra.mxu0 0
      %347 = vmatprep.subr.bf16.mxu0 0
      %348 = vmatpush1.bf16.msra.mxu0 0
      %349 = vmatprep.subr.bf16.mxu0 0
      %350 = vmatpush1.bf16.msra.mxu0 0
      %351 = vmatprep.subr.bf16.mxu0 0
      %352 = vmatpush1.bf16.msra.mxu0 0
      %353 = vmatprep.subr.bf16.mxu0 0
      %354 = vmatpush1.bf16.msra.mxu0 0
      %355 = vmatprep.subr.bf16.mxu0 0
      %356 = vmatpush1.bf16.msra.mxu0 0
      %357 = vmatprep.subr.bf16.mxu0 0
      %358 = vmatpush1.bf16.msra.mxu0 0
      %359 = vmatprep.subr.bf16.mxu0 0
      %360 = vmatpush1.bf16.msra.mxu0 0
      %361 = vmatprep.mubr.bf16.mxu0 0
      %362 = vmatmul.mubr.bf16.gmra.mrb[0].mxu0 %v327
      %v363 = vpop.f32.mrb[0].mxu0
      %v364 = vadd.f32 %v312, %v363
      %v365 = vpop.f32.mrb[0].mxu0
      %v366 = vpop.f32.mrb[0].mxu0
      %v367 = vpop.f32.mrb[0].mxu0
      %368 = vdwg.mxu0
      %v369 = vxor.u32 %v364, 2147483648
      %v370 = vmul.f32 %v369, 1.442695
      %v371 = vpow.pop %v370
      %v372 = vadd.f32 %v371, 1.0
      %v373 = vrcp.pop %v372
      %v374 = vmul.f32 1.0, %v373
      %v375 = vmul.f32 %v364, %v374
      %v376 = vld [vmem:[%s3] sm:$0xf]
      %v377 = vld [vmem:[%s3 + $0x4] sm:$0xf]
      %v378 = vld [vmem:[%s3 + $0x8] sm:$0xf]
      %v379 = vld [vmem:[%s3 + $0xc] sm:$0xf]
      %v380 = vld [vmem:[%s4] sm:$0x1]
      %v381 = vunpack.c.l.bf16 %v380
      %v382 = vlaneseq
      %v383 = vshrl.u32 %v382, 7
      %v384 = vsub.s32 0, %v383
      %v385 = vrot.slane %v381, %v384
      %v390 = vunpack.c.l.b16 %v376
      %v391 = vunpack.c.l.b16 %v377
      %v392 = vunpack.c.l.b16 %v378
      %v393 = vunpack.c.l.b16 %v379
      %v394 = vpack.c.b16 %v391, %v390
      %v395 = vpack.c.b16 %v393, %v392
      %398 = vmatprep.subr.bf16.mxu0 0
      %399 = vmatpush1.bf16.msra.mxu0 %v394
      %400 = vmatprep.subr.bf16.mxu0 0
      %401 = vmatpush1.bf16.msra.mxu0 %v395
      %402 = vmatprep.subr.bf16.mxu0 0
      %403 = vmatpush1.bf16.msra.mxu0 0
      %404 = vmatprep.subr.bf16.mxu0 0
      %405 = vmatpush1.bf16.msra.mxu0 0
      %406 = vmatprep.subr.bf16.mxu0 0
      %407 = vmatpush1.bf16.msra.mxu0 0
      %408 = vmatprep.subr.bf16.mxu0 0
      %409 = vmatpush1.bf16.msra.mxu0 0
      %410 = vmatprep.subr.bf16.mxu0 0
      %411 = vmatpush1.bf16.msra.mxu0 0
      %412 = vmatprep.subr.bf16.mxu0 0
      %413 = vmatpush1.bf16.msra.mxu0 0
      %414 = vmatprep.subr.bf16.mxu0 0
      %415 = vmatpush1.bf16.msra.mxu0 0
      %416 = vmatprep.subr.bf16.mxu0 0
      %417 = vmatpush1.bf16.msra.mxu0 0
      %418 = vmatprep.subr.bf16.mxu0 0
      %419 = vmatpush1.bf16.msra.mxu0 0
      %420 = vmatprep.subr.bf16.mxu0 0
      %421 = vmatpush1.bf16.msra.mxu0 0
      %422 = vmatprep.subr.bf16.mxu0 0
      %423 = vmatpush1.bf16.msra.mxu0 0
      %424 = vmatprep.subr.bf16.mxu0 0
      %425 = vmatpush1.bf16.msra.mxu0 0
      %426 = vmatprep.subr.bf16.mxu0 0
      %427 = vmatpush1.bf16.msra.mxu0 0
      %428 = vmatprep.subr.bf16.mxu0 0
      %429 = vmatpush1.bf16.msra.mxu0 0
      %430 = vmatprep.mubr.bf16.mxu0 0
      %431 = vmatmul.mubr.bf16.gmra.mrb[0].mxu0 %v327
      %v432 = vpop.f32.mrb[0].mxu0
      %v433 = vadd.f32 %v385, %v432
      %v434 = vpop.f32.mrb[0].mxu0
      %v435 = vpop.f32.mrb[0].mxu0
      %v436 = vpop.f32.mrb[0].mxu0
      %437 = vdwg.mxu0
      %v438 = vmul.f32 %v375, %v433
      %v439 = vpack.c.bf16 %v438, %v438
      %v440 = vld [vmem:[%s5] sm:$0xf]
      %v441 = vld [vmem:[%s5 + $0x4] sm:$0xf]
      %v442 = vld [vmem:[%s5 + $0x8] sm:$0xf]
      %v443 = vld [vmem:[%s5 + $0xc] sm:$0xf]
      %v444 = vld [vmem:[%s5 + $0x10] sm:$0xf]
      %v445 = vld [vmem:[%s5 + $0x14] sm:$0xf]
      %v446 = vld [vmem:[%s5 + $0x18] sm:$0xf]
      %v447 = vld [vmem:[%s5 + $0x1c] sm:$0xf]
      %v448 = vld [vmem:[%s6] sm:$0x1]
      %v449 = vunpack.c.l.bf16 %v448
      %v450 = vlaneseq
      %v451 = vshrl.u32 %v450, 7
      %v452 = vsub.s32 0, %v451
      %v453 = vrot.slane %v449, %v452
      %v462 = vunpack.c.l.b16 %v440
      %v463 = vunpack.c.l.b16 %v441
      %v464 = vunpack.c.l.b16 %v442
      %v465 = vunpack.c.l.b16 %v443
      %v466 = vunpack.c.l.b16 %v444
      %v467 = vunpack.c.l.b16 %v445
      %v468 = vunpack.c.l.b16 %v446
      %v469 = vunpack.c.l.b16 %v447
      %v470 = vpack.c.b16 %v463, %v462
      %v471 = vpack.c.b16 %v465, %v464
      %v472 = vpack.c.b16 %v467, %v466
      %v473 = vpack.c.b16 %v469, %v468
      %vm478 = vcmask 523264
      %v480 = vsel %vm478, %v439, 0
      %482 = vmatprep.subr.bf16.mxu0 0
      %483 = vmatpush1.bf16.msra.mxu0 %v470
      %484 = vmatprep.subr.bf16.mxu0 0
      %485 = vmatpush1.bf16.msra.mxu0 %v471
      %486 = vmatprep.subr.bf16.mxu0 0
      %487 = vmatpush1.bf16.msra.mxu0 %v472
      %488 = vmatprep.subr.bf16.mxu0 0
      %489 = vmatpush1.bf16.msra.mxu0 %v473
      %490 = vmatprep.subr.bf16.mxu0 0
      %491 = vmatpush1.bf16.msra.mxu0 0
      %492 = vmatprep.subr.bf16.mxu0 0
      %493 = vmatpush1.bf16.msra.mxu0 0
      %494 = vmatprep.subr.bf16.mxu0 0
      %495 = vmatpush1.bf16.msra.mxu0 0
      %496 = vmatprep.subr.bf16.mxu0 0
      %497 = vmatpush1.bf16.msra.mxu0 0
      %498 = vmatprep.subr.bf16.mxu0 0
      %499 = vmatpush1.bf16.msra.mxu0 0
      %500 = vmatprep.subr.bf16.mxu0 0
      %501 = vmatpush1.bf16.msra.mxu0 0
      %502 = vmatprep.subr.bf16.mxu0 0
      %503 = vmatpush1.bf16.msra.mxu0 0
      %504 = vmatprep.subr.bf16.mxu0 0
      %505 = vmatpush1.bf16.msra.mxu0 0
      %506 = vmatprep.subr.bf16.mxu0 0
      %507 = vmatpush1.bf16.msra.mxu0 0
      %508 = vmatprep.subr.bf16.mxu0 0
      %509 = vmatpush1.bf16.msra.mxu0 0
      %510 = vmatprep.subr.bf16.mxu0 0
      %511 = vmatpush1.bf16.msra.mxu0 0
      %512 = vmatprep.subr.bf16.mxu0 0
      %513 = vmatpush1.bf16.msra.mxu0 0
      %514 = vmatprep.mubr.bf16.mxu0 0
      %515 = vmatmul.mubr.bf16.gmra.mrb[0].mxu0 %v480
      %v516 = vpop.f32.mrb[0].mxu0
      %v517 = vadd.f32 %v453, %v516
      %v518 = vpop.f32.mrb[0].mxu0
      %v519 = vpop.f32.mrb[0].mxu0
      %v520 = vpop.f32.mrb[0].mxu0
      %521 = vdwg.mxu0
      %v522 = vld [vmem:[%s7] sm:$0xf]
      %v523 = vunpack.c.l.bf16 %v522
      %v524 = vadd.f32 %v517, %v523
      %v525 = vpack.c.bf16 %v524, %v524
      %vm526 = vcmask 257024
      %527 = vst.msk [vmem:[%s300] sm:$0xf] %vm526, %v525
      %p528 = scmp.lt.s32.totalorder %s19, 1
      %s529 = scalar_select %p528, %s19, 1
      %s530 = smul.addr %s529, 4
      %s531 = scalar_lea.vmem %s8, %s530
      // Predicated region
      $region53: #{transformer_forward.4} parent=51 // pred_check
        %p532 = pneg %p210
      $region54: #{transformer_forward.4} parent=51 // pred_check_branch
        %534 = sbr.rel (%p532) target = $region56
      $region55: #{transformer_forward.4} parent=51 // pred_region
        _
      $region56: #{transformer_forward.4} parent=51 // pred_fallthru
        _
    $region52: #{transformer_forward.4} parent=5 // pred_fallthru
      _
    %p535 = scmp.le.s32.totalorder 2, %s14
    // Predicated region
    $region57: #{transformer_forward.4} parent=5 // pred_check
      %p536 = pneg %p535
    $region58: #{transformer_forward.4} parent=5 // pred_check_branch
      %538 = sbr.rel (%p536) target = $region60
    $region59: #{transformer_forward.4} parent=5 // pred_region
      %s539 = ssub.s32 %s14, 2
      // Predicated region
      $region61: #{transformer_forward.4} parent=59 // pred_check
        %p540 = pneg %p216
      $region62: #{transformer_forward.4} parent=59 // pred_check_branch
        %542 = sbr.rel (%p540) target = $region64
      $region63: #{transformer_forward.4} parent=59 // pred_region
        %p543 = scmp.lt.s32.totalorder %s20, 1
        %s544 = scalar_select %p543, %s20, 1
        %s545 = smul.addr %s544, 4
        %s546 = scalar_lea.vmem %s8, %s545
      $region64: #{transformer_forward.4} parent=59 // pred_fallthru
        _
    $region60: #{transformer_forward.4} parent=5 // pred_fallthru
      _
  $region6: #{transformer_forward.4} parent=0 // loop_footer
    %s18 = sadd.s32 1, %s14
  $region7: #{transformer_forward.4} parent=0 // loop_footer_branch
    %13 = sbr.rel target = $region3
  $region8: #{transformer_forward.4} parent=0 // loop_exit
    _

// kernel: transformer_forward.5
$region0: #{transformer_forward.5}
  #allocation0 [shape = 'u32[]', space=smem, size = 0x4, offset = 0x4, fixed_abs, tag = 'smem constant byte address 0x4 - core index']
  #allocation1 [shape = 'u32[144,128]{1,0:T(1,128)}', space=vmem, size = 0x12000, scoped, tag = 'internal scratch']
  %s0 = inlined_call_operand.vmem [shape: bf16[2,10,32], index: 0, kind: input, shape index: {}]
  %s1 = inlined_call_operand.vmem [shape: bf16[1,32], index: 1, kind: input, shape index: {}]
  %s2 = inlined_call_operand.vmem [shape: bf16[1,32], index: 2, kind: input, shape index: {}]
  %s3 = inlined_call_operand.vmem [shape: bf16[4,32,8], index: 3, kind: input, shape index: {}]
  %s4 = inlined_call_operand.vmem [shape: bf16[4,1,8], index: 4, kind: input, shape index: {}]
  %s5 = inlined_call_operand.vmem [shape: bf16[4,32,8], index: 5, kind: input, shape index: {}]
  %s6 = inlined_call_operand.vmem [shape: bf16[4,1,8], index: 6, kind: input, shape index: {}]
  %s7 = inlined_call_operand.vmem [shape: bf16[4,32,8], index: 7, kind: input, shape index: {}]
  %s8 = inlined_call_operand.vmem [shape: bf16[4,1,8], index: 8, kind: input, shape index: {}]
  %s9 = inlined_call_operand.vmem [shape: bf16[4,8,32], index: 9, kind: input, shape index: {}]
  %s10 = inlined_call_operand.vmem [shape: bf16[1,32], index: 10, kind: input, shape index: {}]
  %s11 = inlined_call_operand.vmem [shape: bf16[1,32], index: 11, kind: input, shape index: {}]
  %s12 = inlined_call_operand.vmem [shape: bf16[1,32], index: 12, kind: input, shape index: {}]
  %s13 = inlined_call_operand.vmem [shape: bf16[32,64], index: 13, kind: input, shape index: {}]
  %s14 = inlined_call_operand.vmem [shape: bf16[1,64], index: 14, kind: input, shape index: {}]
  %s15 = inlined_call_operand.vmem [shape: bf16[32,64], index: 15, kind: input, shape index: {}]
  %s16 = inlined_call_operand.vmem [shape: bf16[1,64], index: 16, kind: input, shape index: {}]
  %s17 = inlined_call_operand.vmem [shape: bf16[64,32], index: 17, kind: input, shape index: {}]
  %s18 = inlined_call_operand.vmem [shape: bf16[1,32], index: 18, kind: input, shape index: {}]
  %s19 = inlined_call_operand.vmem [shape: bf16[2,10,32], index: 19, kind: output, shape index: {}]
  %s20 = sld [smem:[#allocation0]]
  $region109: #{transformer_forward.5} parent=0
    _
  %s22 = ssub.s32 1, %s20
  %s23 = scalar_select 0, %s22, %s20
  loop: start=0, step=1, limit=4
  $region2: #{transformer_forward.5} parent=0 // loop_pre_header
    _
  $region3: #{transformer_forward.5} parent=0 // loop_header
    %s25 = sphi 0, %s29
    %p26 = scmp.ge.s32.totalorder %s25, 4
    %s35 = sphi 0, %s37
    %s38 = sphi 0, %s35
    %s39 = sphi 0, %s38
    %s55 = sphi 0, %s39
    %s59 = sphi 0, %s59
    %s61 = sphi 0, %s59
    %s62 = sphi 0, %s61
    %s76 = sphi 0, %s62
    %s80 = sphi 0, %s80
    %s82 = sphi 0, %s80
    %s83 = sphi 0, %s82
    %s97 = sphi 0, %s83
    %s101 = sphi 0, %s101
    %s103 = sphi 0, %s101
    %s104 = sphi 0, %s103
    %s118 = sphi 0, %s104
    %s122 = sphi 0, %s122
    %s124 = sphi 0, %s122
    %s125 = sphi 0, %s124
    %s139 = sphi 0, %s125
    %s143 = sphi 0, %s143
    %s145 = sphi 0, %s143
    %s146 = sphi 0, %s145
    %s160 = sphi 0, %s146
    %s164 = sphi 0, %s164
    %s166 = sphi 0, %s164
    %s167 = sphi 0, %s166
    %s181 = sphi 0, %s167
    %s185 = sphi 0, %s185
    %s187 = sphi 0, %s185
    %s188 = sphi 0, %s187
    %s202 = sphi 0, %s188
    %s206 = sphi 0, %s206
    %s208 = sphi 0, %s206
    %s209 = sphi 0, %s208
    %s223 = sphi 0, %s209
    %s227 = sphi 0, %s227
    %s229 = sphi 0, %s227
    %s230 = sphi 0, %s229
    %s244 = sphi 0, %s230
    %s248 = sphi 0, %s248
    %s250 = sphi 0, %s248
    %s251 = sphi 0, %s250
    %s265 = sphi 0, %s251
    %s269 = sphi 0, %s269
    %s271 = sphi 0, %s269
    %s272 = sphi 0, %s271
    %s286 = sphi 0, %s272
    %s290 = sphi 0, %s290
    %s292 = sphi 0, %s290
    %s293 = sphi 0, %s292
    %s307 = sphi 0, %s293
    %s311 = sphi 0, %s311
    %s313 = sphi 0, %s311
    %s314 = sphi 0, %s313
    %s328 = sphi 0, %s314
    %s332 = sphi 0, %s332
    %s334 = sphi 0, %s332
    %s335 = sphi 0, %s334
    %s349 = sphi 0, %s335
    %s353 = sphi 0, %s353
    %s355 = sphi 0, %s353
    %s356 = sphi 0, %s355
    %s370 = sphi 0, %s356
    %s374 = sphi 0, %s374
    %s376 = sphi 0, %s374
    %s377 = sphi 0, %s376
    %s391 = sphi 0, %s377
    %s395 = sphi 0, %s395
    %s397 = sphi 0, %s395
    %s398 = sphi 0, %s397
    %s412 = sphi 0, %s398
    %s416 = sphi 0, %s416
    %s418 = sphi 0, %s416
    %s419 = sphi 0, %s418
    %s433 = sphi 0, %s419
    %s439 = sphi 0, %s441
    %s442 = sphi 0, %s439
    %s443 = sphi 0, %s442
    %s459 = sphi 0, %s443
  $region4: #{transformer_forward.5} parent=0 // loop_header_branch
    %28 = sbr.rel (%p26) target = $region8
  $region5: #{transformer_forward.5} parent=0 // loop_body
    %s30 = ssub.s32 %s25, 1
    %s31 = ssub.s32 %s25, 2
    %s32 = sadd.s32 %s25, 1
    %s33 = ssub.s32 %s25, %s32
    %p34 = scmp.eq.s32.totalorder %s33, 0
    %s36 = sadd.s32 %s35, 1
    %s37 = scalar_select %p34, %s35, %s36
    %p40 = pneg %p34
    %p41 = scmp.eq.s32.totalorder %s25, 1
    %p42 = por %p40, %p41
    %p43 = scmp.ne.s32.totalorder %s35, %s38
    %p44 = scmp.eq.s32.totalorder %s25, 0
    %p45 = por %p43, %p44
    %p46 = scmp.ne.s32.totalorder %s35, %s38
    %p47 = scmp.eq.s32.totalorder %s30, 1
    %p48 = por %p46, %p47
    %p49 = scmp.ne.s32.totalorder %s38, %s39
    %p50 = scmp.eq.s32.totalorder %s30, 0
    %p51 = por %p49, %p50
    %p52 = scmp.ne.s32.totalorder %s38, %s39
    %p53 = scmp.eq.s32.totalorder %s31, 1
    %p54 = por %p52, %p53
    %p56 = scmp.ne.s32.totalorder %s39, %s55
    %p57 = scmp.eq.s32.totalorder %s31, 0
    %p58 = por %p56, %p57
    %s60 = sadd.s32 %s59, 1
    %p63 = scmp.eq.s32.totalorder %s25, 1
    %p64 = scmp.ne.s32.totalorder %s59, %s61
    %p65 = scmp.eq.s32.totalorder %s25, 0
    %p66 = por %p64, %p65
    %p67 = scmp.ne.s32.totalorder %s59, %s61
    %p68 = scmp.eq.s32.totalorder %s30, 1
    %p69 = por %p67, %p68
    %p70 = scmp.ne.s32.totalorder %s61, %s62
    %p71 = scmp.eq.s32.totalorder %s30, 0
    %p72 = por %p70, %p71
    %p73 = scmp.ne.s32.totalorder %s61, %s62
    %p74 = scmp.eq.s32.totalorder %s31, 1
    %p75 = por %p73, %p74
    %p77 = scmp.ne.s32.totalorder %s62, %s76
    %p78 = scmp.eq.s32.totalorder %s31, 0
    %p79 = por %p77, %p78
    %s81 = sadd.s32 %s80, 1
    %p84 = scmp.eq.s32.totalorder %s25, 1
    %p85 = scmp.ne.s32.totalorder %s80, %s82
    %p86 = scmp.eq.s32.totalorder %s25, 0
    %p87 = por %p85, %p86
    %p88 = scmp.ne.s32.totalorder %s80, %s82
    %p89 = scmp.eq.s32.totalorder %s30, 1
    %p90 = por %p88, %p89
    %p91 = scmp.ne.s32.totalorder %s82, %s83
    %p92 = scmp.eq.s32.totalorder %s30, 0
    %p93 = por %p91, %p92
    %p94 = scmp.ne.s32.totalorder %s82, %s83
    %p95 = scmp.eq.s32.totalorder %s31, 1
    %p96 = por %p94, %p95
    %p98 = scmp.ne.s32.totalorder %s83, %s97
    %p99 = scmp.eq.s32.totalorder %s31, 0
    %p100 = por %p98, %p99
    %s102 = sadd.s32 %s101, 1
    %p105 = scmp.eq.s32.totalorder %s25, 1
    %p106 = scmp.ne.s32.totalorder %s101, %s103
    %p107 = scmp.eq.s32.totalorder %s25, 0
    %p108 = por %p106, %p107
    %p109 = scmp.ne.s32.totalorder %s101, %s103
    %p110 = scmp.eq.s32.totalorder %s30, 1
    %p111 = por %p109, %p110
    %p112 = scmp.ne.s32.totalorder %s103, %s104
    %p113 = scmp.eq.s32.totalorder %s30, 0
    %p114 = por %p112, %p113
    %p115 = scmp.ne.s32.totalorder %s103, %s104
    %p116 = scmp.eq.s32.totalorder %s31, 1
    %p117 = por %p115, %p116
    %p119 = scmp.ne.s32.totalorder %s104, %s118
    %p120 = scmp.eq.s32.totalorder %s31, 0
    %p121 = por %p119, %p120
    %s123 = sadd.s32 %s122, 1
    %p126 = scmp.eq.s32.totalorder %s25, 1
    %p127 = scmp.ne.s32.totalorder %s122, %s124
    %p128 = scmp.eq.s32.totalorder %s25, 0
    %p129 = por %p127, %p128
    %p130 = scmp.ne.s32.totalorder %s122, %s124
    %p131 = scmp.eq.s32.totalorder %s30, 1
    %p132 = por %p130, %p131
    %p133 = scmp.ne.s32.totalorder %s124, %s125
    %p134 = scmp.eq.s32.totalorder %s30, 0
    %p135 = por %p133, %p134
    %p136 = scmp.ne.s32.totalorder %s124, %s125
    %p137 = scmp.eq.s32.totalorder %s31, 1
    %p138 = por %p136, %p137
    %p140 = scmp.ne.s32.totalorder %s125, %s139
    %p141 = scmp.eq.s32.totalorder %s31, 0
    %p142 = por %p140, %p141
    %s144 = sadd.s32 %s143, 1
    %p147 = scmp.eq.s32.totalorder %s25, 1
    %p148 = scmp.ne.s32.totalorder %s143, %s145
    %p149 = scmp.eq.s32.totalorder %s25, 0
    %p150 = por %p148, %p149
    %p151 = scmp.ne.s32.totalorder %s143, %s145
    %p152 = scmp.eq.s32.totalorder %s30, 1
    %p153 = por %p151, %p152
    %p154 = scmp.ne.s32.totalorder %s145, %s146
    %p155 = scmp.eq.s32.totalorder %s30, 0
    %p156 = por %p154, %p155
    %p157 = scmp.ne.s32.totalorder %s145, %s146
    %p158 = scmp.eq.s32.totalorder %s31, 1
    %p159 = por %p157, %p158
    %p161 = scmp.ne.s32.totalorder %s146, %s160
    %p162 = scmp.eq.s32.totalorder %s31, 0
    %p163 = por %p161, %p162
    %s165 = sadd.s32 %s164, 1
    %p168 = scmp.eq.s32.totalorder %s25, 1
    %p169 = scmp.ne.s32.totalorder %s164, %s166
    %p170 = scmp.eq.s32.totalorder %s25, 0
    %p171 = por %p169, %p170
    %p172 = scmp.ne.s32.totalorder %s164, %s166
    %p173 = scmp.eq.s32.totalorder %s30, 1
    %p174 = por %p172, %p173
    %p175 = scmp.ne.s32.totalorder %s166, %s167
    %p176 = scmp.eq.s32.totalorder %s30, 0
    %p177 = por %p175, %p176
    %p178 = scmp.ne.s32.totalorder %s166, %s167
    %p179 = scmp.eq.s32.totalorder %s31, 1
    %p180 = por %p178, %p179
    %p182 = scmp.ne.s32.totalorder %s167, %s181
    %p183 = scmp.eq.s32.totalorder %s31, 0
    %p184 = por %p182, %p183
    %s186 = sadd.s32 %s185, 1
    %p189 = scmp.eq.s32.totalorder %s25, 1
    %p190 = scmp.ne.s32.totalorder %s185, %s187
    %p191 = scmp.eq.s32.totalorder %s25, 0
    %p192 = por %p190, %p191
    %p193 = scmp.ne.s32.totalorder %s185, %s187
    %p194 = scmp.eq.s32.totalorder %s30, 1
    %p195 = por %p193, %p194
    %p196 = scmp.ne.s32.totalorder %s187, %s188
    %p197 = scmp.eq.s32.totalorder %s30, 0
    %p198 = por %p196, %p197
    %p199 = scmp.ne.s32.totalorder %s187, %s188
    %p200 = scmp.eq.s32.totalorder %s31, 1
    %p201 = por %p199, %p200
    %p203 = scmp.ne.s32.totalorder %s188, %s202
    %p204 = scmp.eq.s32.totalorder %s31, 0
    %p205 = por %p203, %p204
    %s207 = sadd.s32 %s206, 1
    %p210 = scmp.eq.s32.totalorder %s25, 1
    %p211 = scmp.ne.s32.totalorder %s206, %s208
    %p212 = scmp.eq.s32.totalorder %s25, 0
    %p213 = por %p211, %p212
    %p214 = scmp.ne.s32.totalorder %s206, %s208
    %p215 = scmp.eq.s32.totalorder %s30, 1
    %p216 = por %p214, %p215
    %p217 = scmp.ne.s32.totalorder %s208, %s209
    %p218 = scmp.eq.s32.totalorder %s30, 0
    %p219 = por %p217, %p218
    %p220 = scmp.ne.s32.totalorder %s208, %s209
    %p221 = scmp.eq.s32.totalorder %s31, 1
    %p222 = por %p220, %p221
    %p224 = scmp.ne.s32.totalorder %s209, %s223
    %p225 = scmp.eq.s32.totalorder %s31, 0
    %p226 = por %p224, %p225
    %s228 = sadd.s32 %s227, 1
    %p231 = scmp.eq.s32.totalorder %s25, 1
    %p232 = scmp.ne.s32.totalorder %s227, %s229
    %p233 = scmp.eq.s32.totalorder %s25, 0
    %p234 = por %p232, %p233
    %p235 = scmp.ne.s32.totalorder %s227, %s229
    %p236 = scmp.eq.s32.totalorder %s30, 1
    %p237 = por %p235, %p236
    %p238 = scmp.ne.s32.totalorder %s229, %s230
    %p239 = scmp.eq.s32.totalorder %s30, 0
    %p240 = por %p238, %p239
    %p241 = scmp.ne.s32.totalorder %s229, %s230
    %p242 = scmp.eq.s32.totalorder %s31, 1
    %p243 = por %p241, %p242
    %p245 = scmp.ne.s32.totalorder %s230, %s244
    %p246 = scmp.eq.s32.totalorder %s31, 0
    %p247 = por %p245, %p246
    %s249 = sadd.s32 %s248, 1
    %p252 = scmp.eq.s32.totalorder %s25, 1
    %p253 = scmp.ne.s32.totalorder %s248, %s250
    %p254 = scmp.eq.s32.totalorder %s25, 0
    %p255 = por %p253, %p254
    %p256 = scmp.ne.s32.totalorder %s248, %s250
    %p257 = scmp.eq.s32.totalorder %s30, 1
    %p258 = por %p256, %p257
    %p259 = scmp.ne.s32.totalorder %s250, %s251
    %p260 = scmp.eq.s32.totalorder %s30, 0
    %p261 = por %p259, %p260
    %p262 = scmp.ne.s32.totalorder %s250, %s251
    %p263 = scmp.eq.s32.totalorder %s31, 1
    %p264 = por %p262, %p263
    %p266 = scmp.ne.s32.totalorder %s251, %s265
    %p267 = scmp.eq.s32.totalorder %s31, 0
    %p268 = por %p266, %p267
    %s270 = sadd.s32 %s269, 1
    %p273 = scmp.eq.s32.totalorder %s25, 1
    %p274 = scmp.ne.s32.totalorder %s269, %s271
    %p275 = scmp.eq.s32.totalorder %s25, 0
    %p276 = por %p274, %p275
    %p277 = scmp.ne.s32.totalorder %s269, %s271
    %p278 = scmp.eq.s32.totalorder %s30, 1
    %p279 = por %p277, %p278
    %p280 = scmp.ne.s32.totalorder %s271, %s272
    %p281 = scmp.eq.s32.totalorder %s30, 0
    %p282 = por %p280, %p281
    %p283 = scmp.ne.s32.totalorder %s271, %s272
    %p284 = scmp.eq.s32.totalorder %s31, 1
    %p285 = por %p283, %p284
    %p287 = scmp.ne.s32.totalorder %s272, %s286
    %p288 = scmp.eq.s32.totalorder %s31, 0
    %p289 = por %p287, %p288
    %s291 = sadd.s32 %s290, 1
    %p294 = scmp.eq.s32.totalorder %s25, 1
    %p295 = scmp.ne.s32.totalorder %s290, %s292
    %p296 = scmp.eq.s32.totalorder %s25, 0
    %p297 = por %p295, %p296
    %p298 = scmp.ne.s32.totalorder %s290, %s292
    %p299 = scmp.eq.s32.totalorder %s30, 1
    %p300 = por %p298, %p299
    %p301 = scmp.ne.s32.totalorder %s292, %s293
    %p302 = scmp.eq.s32.totalorder %s30, 0
    %p303 = por %p301, %p302
    %p304 = scmp.ne.s32.totalorder %s292, %s293
    %p305 = scmp.eq.s32.totalorder %s31, 1
    %p306 = por %p304, %p305
    %p308 = scmp.ne.s32.totalorder %s293, %s307
    %p309 = scmp.eq.s32.totalorder %s31, 0
    %p310 = por %p308, %p309
    %s312 = sadd.s32 %s311, 1
    %p315 = scmp.eq.s32.totalorder %s25, 1
    %p316 = scmp.ne.s32.totalorder %s311, %s313
    %p317 = scmp.eq.s32.totalorder %s25, 0
    %p318 = por %p316, %p317
    %p319 = scmp.ne.s32.totalorder %s311, %s313
    %p320 = scmp.eq.s32.totalorder %s30, 1
    %p321 = por %p319, %p320
    %p322 = scmp.ne.s32.totalorder %s313, %s314
    %p323 = scmp.eq.s32.totalorder %s30, 0
    %p324 = por %p322, %p323
    %p325 = scmp.ne.s32.totalorder %s313, %s314
    %p326 = scmp.eq.s32.totalorder %s31, 1
    %p327 = por %p325, %p326
    %p329 = scmp.ne.s32.totalorder %s314, %s328
    %p330 = scmp.eq.s32.totalorder %s31, 0
    %p331 = por %p329, %p330
    %s333 = sadd.s32 %s332, 1
    %p336 = scmp.eq.s32.totalorder %s25, 1
    %p337 = scmp.ne.s32.totalorder %s332, %s334
    %p338 = scmp.eq.s32.totalorder %s25, 0
    %p339 = por %p337, %p338
    %p340 = scmp.ne.s32.totalorder %s332, %s334
    %p341 = scmp.eq.s32.totalorder %s30, 1
    %p342 = por %p340, %p341
    %p343 = scmp.ne.s32.totalorder %s334, %s335
    %p344 = scmp.eq.s32.totalorder %s30, 0
    %p345 = por %p343, %p344
    %p346 = scmp.ne.s32.totalorder %s334, %s335
    %p347 = scmp.eq.s32.totalorder %s31, 1
    %p348 = por %p346, %p347
    %p350 = scmp.ne.s32.totalorder %s335, %s349
    %p351 = scmp.eq.s32.totalorder %s31, 0
    %p352 = por %p350, %p351
    %s354 = sadd.s32 %s353, 1
    %p357 = scmp.eq.s32.totalorder %s25, 1
    %p358 = scmp.ne.s32.totalorder %s353, %s355
    %p359 = scmp.eq.s32.totalorder %s25, 0
    %p360 = por %p358, %p359
    %p361 = scmp.ne.s32.totalorder %s353, %s355
    %p362 = scmp.eq.s32.totalorder %s30, 1
    %p363 = por %p361, %p362
    %p364 = scmp.ne.s32.totalorder %s355, %s356
    %p365 = scmp.eq.s32.totalorder %s30, 0
    %p366 = por %p364, %p365
    %p367 = scmp.ne.s32.totalorder %s355, %s356
    %p368 = scmp.eq.s32.totalorder %s31, 1
    %p369 = por %p367, %p368
    %p371 = scmp.ne.s32.totalorder %s356, %s370
    %p372 = scmp.eq.s32.totalorder %s31, 0
    %p373 = por %p371, %p372
    %s375 = sadd.s32 %s374, 1
    %p378 = scmp.eq.s32.totalorder %s25, 1
    %p379 = scmp.ne.s32.totalorder %s374, %s376
    %p380 = scmp.eq.s32.totalorder %s25, 0
    %p381 = por %p379, %p380
    %p382 = scmp.ne.s32.totalorder %s374, %s376
    %p383 = scmp.eq.s32.totalorder %s30, 1
    %p384 = por %p382, %p383
    %p385 = scmp.ne.s32.totalorder %s376, %s377
    %p386 = scmp.eq.s32.totalorder %s30, 0
    %p387 = por %p385, %p386
    %p388 = scmp.ne.s32.totalorder %s376, %s377
    %p389 = scmp.eq.s32.totalorder %s31, 1
    %p390 = por %p388, %p389
    %p392 = scmp.ne.s32.totalorder %s377, %s391
    %p393 = scmp.eq.s32.totalorder %s31, 0
    %p394 = por %p392, %p393
    %s396 = sadd.s32 %s395, 1
    %p399 = scmp.eq.s32.totalorder %s25, 1
    %p400 = scmp.ne.s32.totalorder %s395, %s397
    %p401 = scmp.eq.s32.totalorder %s25, 0
    %p402 = por %p400, %p401
    %p403 = scmp.ne.s32.totalorder %s395, %s397
    %p404 = scmp.eq.s32.totalorder %s30, 1
    %p405 = por %p403, %p404
    %p406 = scmp.ne.s32.totalorder %s397, %s398
    %p407 = scmp.eq.s32.totalorder %s30, 0
    %p408 = por %p406, %p407
    %p409 = scmp.ne.s32.totalorder %s397, %s398
    %p410 = scmp.eq.s32.totalorder %s31, 1
    %p411 = por %p409, %p410
    %p413 = scmp.ne.s32.totalorder %s398, %s412
    %p414 = scmp.eq.s32.totalorder %s31, 0
    %p415 = por %p413, %p414
    %s417 = sadd.s32 %s416, 1
    %p420 = scmp.eq.s32.totalorder %s25, 1
    %p421 = scmp.ne.s32.totalorder %s416, %s418
    %p422 = scmp.eq.s32.totalorder %s25, 0
    %p423 = por %p421, %p422
    %p424 = scmp.ne.s32.totalorder %s416, %s418
    %p425 = scmp.eq.s32.totalorder %s30, 1
    %p426 = por %p424, %p425
    %p427 = scmp.ne.s32.totalorder %s418, %s419
    %p428 = scmp.eq.s32.totalorder %s30, 0
    %p429 = por %p427, %p428
    %p430 = scmp.ne.s32.totalorder %s418, %s419
    %p431 = scmp.eq.s32.totalorder %s31, 1
    %p432 = por %p430, %p431
    %p434 = scmp.ne.s32.totalorder %s419, %s433
    %p435 = scmp.eq.s32.totalorder %s31, 0
    %p436 = por %p434, %p435
    %s437 = ssub.s32 %s25, %s32
    %p438 = scmp.eq.s32.totalorder %s437, 0
    %s440 = sadd.s32 %s439, 1
    %s441 = scalar_select %p438, %s439, %s440
    %p444 = pneg %p438
    %p445 = scmp.eq.s32.totalorder %s25, 1
    %p446 = por %p444, %p445
    %p447 = scmp.ne.s32.totalorder %s439, %s442
    %p448 = scmp.eq.s32.totalorder %s25, 0
    %p449 = por %p447, %p448
    %p450 = scmp.ne.s32.totalorder %s439, %s442
    %p451 = scmp.eq.s32.totalorder %s30, 1
    %p452 = por %p450, %p451
    %p453 = scmp.ne.s32.totalorder %s442, %s443
    %p454 = scmp.eq.s32.totalorder %s30, 0
    %p455 = por %p453, %p454
    %p456 = scmp.ne.s32.totalorder %s442, %s443
    %p457 = scmp.eq.s32.totalorder %s31, 1
    %p458 = por %p456, %p457
    %p460 = scmp.ne.s32.totalorder %s443, %s459
    %p461 = scmp.eq.s32.totalorder %s31, 0
    %p462 = por %p460, %p461
    %p463 = scmp.le.s32.totalorder 1, %s25
    %p464 = scmp.lt.s32.totalorder %s25, 3
    %p465 = pnand %p463, %p464
    %p466 = pneg %p465
    // Predicated region
    $region9: #{transformer_forward.5} parent=5 // pred_check
      _
    $region10: #{transformer_forward.5} parent=5 // pred_check_branch
      %468 = sbr.rel (%p465) target = $region12
    $region11: #{transformer_forward.5} parent=5 // pred_region
      %s469 = ssub.s32 %s25, 1
      // Predicated region
      $region13: #{transformer_forward.5} parent=11 // pred_check
        %p470 = pneg %p72
      $region14: #{transformer_forward.5} parent=11 // pred_check_branch
        %472 = sbr.rel (%p470) target = $region16
      $region15: #{transformer_forward.5} parent=11 // pred_region
        _
      $region16: #{transformer_forward.5} parent=11 // pred_fallthru
        _
      // Predicated region
      $region17: #{transformer_forward.5} parent=11 // pred_check
        %p473 = pneg %p93
      $region18: #{transformer_forward.5} parent=11 // pred_check_branch
        %475 = sbr.rel (%p473) target = $region20
      $region19: #{transformer_forward.5} parent=11 // pred_region
        _
      $region20: #{transformer_forward.5} parent=11 // pred_fallthru
        _
      // Predicated region
      $region21: #{transformer_forward.5} parent=11 // pred_check
        %p476 = pneg %p114
      $region22: #{transformer_forward.5} parent=11 // pred_check_branch
        %478 = sbr.rel (%p476) target = $region24
      $region23: #{transformer_forward.5} parent=11 // pred_region
        _
      $region24: #{transformer_forward.5} parent=11 // pred_fallthru
        _
      // Predicated region
      $region25: #{transformer_forward.5} parent=11 // pred_check
        %p479 = pneg %p135
      $region26: #{transformer_forward.5} parent=11 // pred_check_branch
        %481 = sbr.rel (%p479) target = $region28
      $region27: #{transformer_forward.5} parent=11 // pred_region
        _
      $region28: #{transformer_forward.5} parent=11 // pred_fallthru
        _
      // Predicated region
      $region29: #{transformer_forward.5} parent=11 // pred_check
        %p482 = pneg %p156
      $region30: #{transformer_forward.5} parent=11 // pred_check_branch
        %484 = sbr.rel (%p482) target = $region32
      $region31: #{transformer_forward.5} parent=11 // pred_region
        _
      $region32: #{transformer_forward.5} parent=11 // pred_fallthru
        _
      // Predicated region
      $region33: #{transformer_forward.5} parent=11 // pred_check
        %p485 = pneg %p177
      $region34: #{transformer_forward.5} parent=11 // pred_check_branch
        %487 = sbr.rel (%p485) target = $region36
      $region35: #{transformer_forward.5} parent=11 // pred_region
        _
      $region36: #{transformer_forward.5} parent=11 // pred_fallthru
        _
      // Predicated region
      $region37: #{transformer_forward.5} parent=11 // pred_check
        %p488 = pneg %p198
      $region38: #{transformer_forward.5} parent=11 // pred_check_branch
        %490 = sbr.rel (%p488) target = $region40
      $region39: #{transformer_forward.5} parent=11 // pred_region
        _
      $region40: #{transformer_forward.5} parent=11 // pred_fallthru
        _
      // Predicated region
      $region41: #{transformer_forward.5} parent=11 // pred_check
        %p491 = pneg %p219
      $region42: #{transformer_forward.5} parent=11 // pred_check_branch
        %493 = sbr.rel (%p491) target = $region44
      $region43: #{transformer_forward.5} parent=11 // pred_region
        _
      $region44: #{transformer_forward.5} parent=11 // pred_fallthru
        _
      // Predicated region
      $region45: #{transformer_forward.5} parent=11 // pred_check
        %p494 = pneg %p240
      $region46: #{transformer_forward.5} parent=11 // pred_check_branch
        %496 = sbr.rel (%p494) target = $region48
      $region47: #{transformer_forward.5} parent=11 // pred_region
        _
      $region48: #{transformer_forward.5} parent=11 // pred_fallthru
        _
      // Predicated region
      $region49: #{transformer_forward.5} parent=11 // pred_check
        %p497 = pneg %p261
      $region50: #{transformer_forward.5} parent=11 // pred_check_branch
        %499 = sbr.rel (%p497) target = $region52
      $region51: #{transformer_forward.5} parent=11 // pred_region
        _
      $region52: #{transformer_forward.5} parent=11 // pred_fallthru
        _
      // Predicated region
      $region53: #{transformer_forward.5} parent=11 // pred_check
        %p500 = pneg %p282
      $region54: #{transformer_forward.5} parent=11 // pred_check_branch
        %502 = sbr.rel (%p500) target = $region56
      $region55: #{transformer_forward.5} parent=11 // pred_region
        _
      $region56: #{transformer_forward.5} parent=11 // pred_fallthru
        _
      // Predicated region
      $region57: #{transformer_forward.5} parent=11 // pred_check
        %p503 = pneg %p303
      $region58: #{transformer_forward.5} parent=11 // pred_check_branch
        %505 = sbr.rel (%p503) target = $region60
      $region59: #{transformer_forward.5} parent=11 // pred_region
        _
      $region60: #{transformer_forward.5} parent=11 // pred_fallthru
        _
      // Predicated region
      $region61: #{transformer_forward.5} parent=11 // pred_check
        %p506 = pneg %p324
      $region62: #{transformer_forward.5} parent=11 // pred_check_branch
        %508 = sbr.rel (%p506) target = $region64
      $region63: #{transformer_forward.5} parent=11 // pred_region
        _
      $region64: #{transformer_forward.5} parent=11 // pred_fallthru
        _
      // Predicated region
      $region65: #{transformer_forward.5} parent=11 // pred_check
        %p509 = pneg %p345
      $region66: #{transformer_forward.5} parent=11 // pred_check_branch
        %511 = sbr.rel (%p509) target = $region68
      $region67: #{transformer_forward.5} parent=11 // pred_region
        _
      $region68: #{transformer_forward.5} parent=11 // pred_fallthru
        _
      // Predicated region
      $region69: #{transformer_forward.5} parent=11 // pred_check
        %p512 = pneg %p366
      $region70: #{transformer_forward.5} parent=11 // pred_check_branch
        %514 = sbr.rel (%p512) target = $region72
      $region71: #{transformer_forward.5} parent=11 // pred_region
        _
      $region72: #{transformer_forward.5} parent=11 // pred_fallthru
        _
      // Predicated region
      $region73: #{transformer_forward.5} parent=11 // pred_check
        %p515 = pneg %p387
      $region74: #{transformer_forward.5} parent=11 // pred_check_branch
        %517 = sbr.rel (%p515) target = $region76
      $region75: #{transformer_forward.5} parent=11 // pred_region
        _
      $region76: #{transformer_forward.5} parent=11 // pred_fallthru
        _
      // Predicated region
      $region77: #{transformer_forward.5} parent=11 // pred_check
        %p518 = pneg %p408
      $region78: #{transformer_forward.5} parent=11 // pred_check_branch
        %520 = sbr.rel (%p518) target = $region80
      $region79: #{transformer_forward.5} parent=11 // pred_region
        _
      $region80: #{transformer_forward.5} parent=11 // pred_fallthru
        _
      // Predicated region
      $region81: #{transformer_forward.5} parent=11 // pred_check
        %p521 = pneg %p429
      $region82: #{transformer_forward.5} parent=11 // pred_check_branch
        %523 = sbr.rel (%p521) target = $region84
      $region83: #{transformer_forward.5} parent=11 // pred_region
        _
      $region84: #{transformer_forward.5} parent=11 // pred_fallthru
        _
    $region12: #{transformer_forward.5} parent=5 // pred_fallthru
      _
    %p524 = scmp.lt.s32.totalorder %s25, 2
    // Predicated region
    $region85: #{transformer_forward.5} parent=5 // pred_check
      %p525 = pneg %p524
    $region86: #{transformer_forward.5} parent=5 // pred_check_branch
      %527 = sbr.rel (%p525) target = $region88
    $region87: #{transformer_forward.5} parent=5 // pred_region
      // Predicated region
      $region89: #{transformer_forward.5} parent=87 // pred_check
        %p528 = pneg %p45
      $region90: #{transformer_forward.5} parent=87 // pred_check_branch
        %530 = sbr.rel (%p528) target = $region92
      $region91: #{transformer_forward.5} parent=87 // pred_region
        %p531 = scmp.lt.s32.totalorder %s25, 1
        %s532 = scalar_select %p531, %s25, 1
        %s533 = smul.addr %s532, 2
        %s534 = smul.addr %s533, 4
        %s535 = scalar_lea.vmem %s0, %s534
      $region92: #{transformer_forward.5} parent=87 // pred_fallthru
        _
    $region88: #{transformer_forward.5} parent=5 // pred_fallthru
      _
    %p536 = scmp.le.s32.totalorder 1, %s25
    %p537 = scmp.lt.s32.totalorder %s25, 3
    %p538 = pnand %p536, %p537
    %p539 = pneg %p538
    // Predicated region
    $region93: #{transformer_forward.5} parent=5 // pred_check
      _
    $region94: #{transformer_forward.5} parent=5 // pred_check_branch
      %541 = sbr.rel (%p538) target = $region96
    $region95: #{transformer_forward.5} parent=5 // pred_region
      %s542 = ssub.s32 %s25, 1
      %p543 = scmp.lt.s32.totalorder %s30, 1
      %s544 = scalar_select %p543, %s30, 1
      %s545 = smul.addr %s544, 2
      %s546 = smul.addr %s545, 4
      %s547 = scalar_lea.vmem %s0, %s546
      %p548 = pneg %p51
      %p549 = pneg %p48
      %p550 = pneg %p72
      %p551 = pneg %p69
      %p552 = pneg %p93
      %p553 = pneg %p90
      %p554 = pneg %p114
      %p555 = pneg %p111
      %p556 = pneg %p135
      %p557 = pneg %p132
      %p558 = pneg %p156
      %p559 = pneg %p153
      %p560 = pneg %p177
      %p561 = pneg %p174
      %p562 = pneg %p198
      %p563 = pneg %p195
      %p564 = pneg %p219
      %p565 = pneg %p216
      %p566 = pneg %p240
      %p567 = pneg %p237
      %p568 = pneg %p261
      %p569 = pneg %p258
      %p570 = pneg %p282
      %p571 = pneg %p279
      %p572 = pneg %p303
      %p573 = pneg %p300
      %p574 = pneg %p324
      %p575 = pneg %p321
      %p576 = pneg %p345
      %p577 = pneg %p342
      %p578 = pneg %p366
      %p579 = pneg %p363
      %p580 = pneg %p387
      %p581 = pneg %p384
      %p582 = pneg %p408
      %p583 = pneg %p405
      %p584 = pneg %p429
      %p585 = pneg %p426
      %p586 = pneg %p455
      %p587 = pneg %p452
      %p588 = scmp.lt.s32.totalorder %s30, 1
      %s589 = scalar_select %p588, %s30, 1
      %s590 = smul.addr %s589, 2
      %s591 = smul.addr %s590, 4
      %s592 = scalar_lea.vmem %s19, %s591
      %p593 = scmp.lt.s32.totalorder %s30, 1
      %s594 = scalar_select %p593, %s30, 1
      %s595 = smul.addr %s594, 2
      %s596 = smul.addr %s595, 4
      %s597 = scalar_lea.vmem %s0, %s596
      %p598 = scmp.lt.s32.totalorder %s30, 1
      %s599 = scalar_select %p598, %s30, 1
      %s600 = smul.addr %s599, 2
      %s601 = smul.addr %s600, 4
      %s602 = scalar_lea.vmem %s19, %s601
      %v604 = vld [vmem:[%s597] sm:$0xf]
      %v605 = vld [vmem:[%s597 + $0x4] sm:$0x1]
      %v606 = vunpack.c.l.bf16 %v604
      %v607 = vunpack.c.l.bf16 %v605
      %v608 = vld [vmem:[%s1] sm:$0x1]
      %v609 = vld [vmem:[%s2] sm:$0x1]
      %vm610 = vcmask 261120
      %v611 = vsel %vm610, %v606, 0.0
      %612 = vadd.xlane.f32.xlu0 %v611
      %v613 = vpop.xlane.xlu0 %612
      %vm614 = vcmask 254976
      %v615 = vsel %vm614, %v607, 0.0
      %616 = vadd.xlane.f32.xlu0 %v615
      %v617 = vpop.xlane.xlu0 %616
      %v618 = vrcp.pop 32.0
      %v619 = vmul.f32 %v613, %v618
      %v620 = vmul.f32 %v617, %v618
      %v621 = vsub.f32 %v606, %v619
      %v622 = vsub.f32 %v607, %v620
      %v623 = vmul.f32 %v621, %v621
      %v624 = vmul.f32 %v622, %v622
      %v625 = vsel %vm610, %v623, 0.0
      %626 = vadd.xlane.f32.xlu0 %v625
      %v627 = vpop.xlane.xlu0 %626
      %v628 = vsel %vm614, %v624, 0.0
      %629 = vadd.xlane.f32.xlu0 %v628
      %v630 = vpop.xlane.xlu0 %629
      %v631 = vmul.f32 %v627, %v618
      %v632 = vmul.f32 %v630, %v618
      %v633 = vadd.f32 %v631, 1e-05
      %v634 = vadd.f32 %v632, 1e-05
      %v635 = vrsqrt.pop %v633
      %v636 = vrsqrt.pop %v634
      %v637 = vmul.f32 %v621, %v635
      %v638 = vmul.f32 %v622, %v636
      %v639 = vunpack.c.l.bf16 %v608
      %v640 = vlaneseq
      %v641 = vshrl.u32 %v640, 7
      %v642 = vsub.s32 0, %v641
      %v643 = vrot.slane %v639, %v642
      %v644 = vmul.f32 %v637, %v643
      %v645 = vmul.f32 %v638, %v643
      %v646 = vunpack.c.l.bf16 %v609
      %v647 = vlaneseq
      %v648 = vshrl.u32 %v647, 7
      %v649 = vsub.s32 0, %v648
      %v650 = vrot.slane %v646, %v649
      %v651 = vadd.f32 %v644, %v650
      %v652 = vadd.f32 %v645, %v650
      %v653 = vpack.c.bf16 %v652, %v651
      %v654 = vld [vmem:[%s3] sm:$0xf]
      %v655 = vld [vmem:[%s3 + $0x4] sm:$0xf]
      %v656 = vld [vmem:[%s3 + $0x8] sm:$0xf]
      %v657 = vld [vmem:[%s3 + $0xc] sm:$0xf]
      %v658 = vld [vmem:[%s4] sm:$0x1]
      %v659 = vunpack.c.l.bf16 %v658
      %v660 = vlaneseq
      %v661 = vshrl.u32 %v660, 7
      %v662 = vsub.s32 0, %v661
      %v663 = vrot.slane %v659, %v662
      %v668 = vunpack.c.l.b16 %v654
      %v669 = vunpack.c.l.b16 %v655
      %v670 = vunpack.c.l.b16 %v656
      %v671 = vunpack.c.l.b16 %v657
      %v672 = vpack.c.b16 %v669, %v668
      %v673 = vpack.c.b16 %v671, %v670
      %v677 = vsel %vm610, %v653, 0
      %679 = vmatprep.subr.bf16.mxu0 0
      %680 = vmatpush1.bf16.msra.mxu0 %v672
      %681 = vmatprep.subr.bf16.mxu0 0
      %682 = vmatpush1.bf16.msra.mxu0 %v673
      %683 = vmatprep.subr.bf16.mxu0 0
      %684 = vmatpush1.bf16.msra.mxu0 0
      %685 = vmatprep.subr.bf16.mxu0 0
      %686 = vmatpush1.bf16.msra.mxu0 0
      %687 = vmatprep.subr.bf16.mxu0 0
      %688 = vmatpush1.bf16.msra.mxu0 0
      %689 = vmatprep.subr.bf16.mxu0 0
      %690 = vmatpush1.bf16.msra.mxu0 0
      %691 = vmatprep.subr.bf16.mxu0 0
      %692 = vmatpush1.bf16.msra.mxu0 0
      %693 = vmatprep.subr.bf16.mxu0 0
      %694 = vmatpush1.bf16.msra.mxu0 0
      %695 = vmatprep.subr.bf16.mxu0 0
      %696 = vmatpush1.bf16.msra.mxu0 0
      %697 = vmatprep.subr.bf16.mxu0 0
      %698 = vmatpush1.bf16.msra.mxu0 0
      %699 = vmatprep.subr.bf16.mxu0 0
      %700 = vmatpush1.bf16.msra.mxu0 0
      %701 = vmatprep.subr.bf16.mxu0 0
      %702 = vmatpush1.bf16.msra.mxu0 0
      %703 = vmatprep.subr.bf16.mxu0 0
      %704 = vmatpush1.bf16.msra.mxu0 0
      %705 = vmatprep.subr.bf16.mxu0 0
      %706 = vmatpush1.bf16.msra.mxu0 0
      %707 = vmatprep.subr.bf16.mxu0 0
      %708 = vmatpush1.bf16.msra.mxu0 0
      %709 = vmatprep.subr.bf16.mxu0 0
      %710 = vmatpush1.bf16.msra.mxu0 0
      %711 = vmatprep.mubr.bf16.mxu0 0
      %712 = vmatmul.mubr.bf16.gmra.mrb[0].mxu0 %v677
      %v713 = vpop.f32.mrb[0].mxu0
      %v714 = vadd.f32 %v663, %v713
      %v715 = vpop.f32.mrb[0].mxu0
      %v716 = vpop.f32.mrb[0].mxu0
      %v717 = vadd.f32 %v663, %v716
      %v718 = vpop.f32.mrb[0].mxu0
      %719 = vdwg.mxu0
      %v720 = vld [vmem:[%s5] sm:$0xf]
      %v721 = vld [vmem:[%s5 + $0x4] sm:$0xf]
      %v722 = vld [vmem:[%s5 + $0x8] sm:$0xf]
      %v723 = vld [vmem:[%s5 + $0xc] sm:$0xf]
      %v724 = vld [vmem:[%s6] sm:$0x1]
      %v725 = vunpack.c.l.bf16 %v724
      %v726 = vlaneseq
      %v727 = vshrl.u32 %v726, 7
      %v728 = vsub.s32 0, %v727
      %v729 = vrot.slane %v725, %v728
      %v734 = vunpack.c.l.b16 %v720
      %v735 = vunpack.c.l.b16 %v721
      %v736 = vunpack.c.l.b16 %v722
      %v737 = vunpack.c.l.b16 %v723
      %v738 = vpack.c.b16 %v735, %v734
      %v739 = vpack.c.b16 %v737, %v736
      %742 = vmatprep.subr.bf16.mxu0 0
      %743 = vmatpush1.bf16.msra.mxu0 %v738
      %744 = vmatprep.subr.bf16.mxu0 0
      %745 = vmatpush1.bf16.msra.mxu0 %v739
      %746 = vmatprep.subr.bf16.mxu0 0
      %747 = vmatpush1.bf16.msra.mxu0 0
      %748 = vmatprep.subr.bf16.mxu0 0
      %749 = vmatpush1.bf16.msra.mxu0 0
      %750 = vmatprep.subr.bf16.mxu0 0
      %751 = vmatpush1.bf16.msra.mxu0 0
      %752 = vmatprep.subr.bf16.mxu0 0
      %753 = vmatpush1.bf16.msra.mxu0 0
      %754 = vmatprep.subr.bf16.mxu0 0
      %755 = vmatpush1.bf16.msra.mxu0 0
      %756 = vmatprep.subr.bf16.mxu0 0
      %757 = vmatpush1.bf16.msra.mxu0 0
      %758 = vmatprep.subr.bf16.mxu0 0
      %759 = vmatpush1.bf16.msra.mxu0 0
      %760 = vmatprep.subr.bf16.mxu0 0
      %761 = vmatpush1.bf16.msra.mxu0 0
      %762 = vmatprep.subr.bf16.mxu0 0
      %763 = vmatpush1.bf16.msra.mxu0 0
      %764 = vmatprep.subr.bf16.mxu0 0
      %765 = vmatpush1.bf16.msra.mxu0 0
      %766 = vmatprep.subr.bf16.mxu0 0
      %767 = vmatpush1.bf16.msra.mxu0 0
      %768 = vmatprep.subr.bf16.mxu0 0
      %769 = vmatpush1.bf16.msra.mxu0 0
      %770 = vmatprep.subr.bf16.mxu0 0
      %771 = vmatpush1.bf16.msra.mxu0 0
      %772 = vmatprep.subr.bf16.mxu0 0
      %773 = vmatpush1.bf16.msra.mxu0 0
      %774 = vmatprep.mubr.bf16.mxu0 0
      %775 = vmatmul.mubr.bf16.gmra.mrb[0].mxu0 %v677
      %v776 = vpop.f32.mrb[0].mxu0
      %v777 = vadd.f32 %v729, %v776
      %v778 = vpop.f32.mrb[0].mxu0
      %v779 = vpop.f32.mrb[0].mxu0
      %v780 = vadd.f32 %v729, %v779
      %v781 = vpop.f32.mrb[0].mxu0
      %782 = vdwg.mxu0
      %v783 = vld [vmem:[%s7] sm:$0xf]
      %v784 = vld [vmem:[%s7 + $0x4] sm:$0xf]
      %v785 = vld [vmem:[%s7 + $0x8] sm:$0xf]
      %v786 = vld [vmem:[%s7 + $0xc] sm:$0xf]
      %v787 = vld [vmem:[%s8] sm:$0x1]
      %v788 = vunpack.c.l.bf16 %v787
      %v789 = vlaneseq
      %v790 = vshrl.u32 %v789, 7
      %v791 = vsub.s32 0, %v790
      %v792 = vrot.slane %v788, %v791
      %v797 = vunpack.c.l.b16 %v783
      %v798 = vunpack.c.l.b16 %v784
      %v799 = vunpack.c.l.b16 %v785
      %v800 = vunpack.c.l.b16 %v786
      %v801 = vpack.c.b16 %v798, %v797
      %v802 = vpack.c.b16 %v800, %v799
      %805 = vmatprep.subr.bf16.mxu0 0
      %806 = vmatpush1.bf16.msra.mxu0 %v801
      %807 = vmatprep.subr.bf16.mxu0 0
      %808 = vmatpush1.bf16.msra.mxu0 %v802
      %809 = vmatprep.subr.bf16.mxu0 0
      %810 = vmatpush1.bf16.msra.mxu0 0
      %811 = vmatprep.subr.bf16.mxu0 0
      %812 = vmatpush1.bf16.msra.mxu0 0
      %813 = vmatprep.subr.bf16.mxu0 0
      %814 = vmatpush1.bf16.msra.mxu0 0
      %815 = vmatprep.subr.bf16.mxu0 0
      %816 = vmatpush1.bf16.msra.mxu0 0
      %817 = vmatprep.subr.bf16.mxu0 0
      %818 = vmatpush1.bf16.msra.mxu0 0
      %819 = vmatprep.subr.bf16.mxu0 0
      %820 = vmatpush1.bf16.msra.mxu0 0
      %821 = vmatprep.subr.bf16.mxu0 0
      %822 = vmatpush1.bf16.msra.mxu0 0
      %823 = vmatprep.subr.bf16.mxu0 0
      %824 = vmatpush1.bf16.msra.mxu0 0
      %825 = vmatprep.subr.bf16.mxu0 0
      %826 = vmatpush1.bf16.msra.mxu0 0
      %827 = vmatprep.subr.bf16.mxu0 0
      %828 = vmatpush1.bf16.msra.mxu0 0
      %829 = vmatprep.subr.bf16.mxu0 0
      %830 = vmatpush1.bf16.msra.mxu0 0
      %831 = vmatprep.subr.bf16.mxu0 0
      %832 = vmatpush1.bf16.msra.mxu0 0
      %833 = vmatprep.subr.bf16.mxu0 0
      %834 = vmatpush1.bf16.msra.mxu0 0
      %835 = vmatprep.subr.bf16.mxu0 0
      %836 = vmatpush1.bf16.msra.mxu0 0
      %837 = vmatprep.mubr.bf16.mxu0 0
      %838 = vmatmul.mubr.bf16.gmra.mrb[0].mxu0 %v677
      %v839 = vpop.f32.mrb[0].mxu0
      %v840 = vadd.f32 %v792, %v839
      %v841 = vpop.f32.mrb[0].mxu0
      %v842 = vpop.f32.mrb[0].mxu0
      %v843 = vadd.f32 %v792, %v842
      %v844 = vpop.f32.mrb[0].mxu0
      %845 = vdwg.mxu0
      %v846 = vpack.c.bf16 %v843, %v840
      %v847 = vpack.c.bf16 %v717, %v714
      %v848 = vpack.c.bf16 %v780, %v777
      %vm849 = vcmask 64512
      %v851 = vsel %vm849, %v847, 0
      %v854 = vsel %vm849, %v848, 0
      %856 = vmatprep.subr.bf16.mxu0 0
      %857 = vmatpush1.bf16.xpose.msra.mxu0 %v854
      %858 = vmatprep.subr.bf16.mxu0 0
      %859 = vmatpush1.bf16.xpose.msra.mxu0 0
      %860 = vmatprep.subr.bf16.mxu0 0
      %861 = vmatpush1.bf16.xpose.msra.mxu0 0
      %862 = vmatprep.subr.bf16.mxu0 0
      %863 = vmatpush1.bf16.xpose.msra.mxu0 0
      %864 = vmatprep.subr.bf16.mxu0 0
      %865 = vmatpush1.bf16.xpose.msra.mxu0 0
      %866 = vmatprep.subr.bf16.mxu0 0
      %867 = vmatpush1.bf16.xpose.msra.mxu0 0
      %868 = vmatprep.subr.bf16.mxu0 0
      %869 = vmatpush1.bf16.xpose.msra.mxu0 0
      %870 = vmatprep.subr.bf16.mxu0 0
      %871 = vmatpush1.bf16.xpose.msra.mxu0 0
      %872 = vmatprep.subr.bf16.mxu0 0
      %873 = vmatpush1.bf16.xpose.msra.mxu0 0
      %874 = vmatprep.subr.bf16.mxu0 0
      %875 = vmatpush1.bf16.xpose.msra.mxu0 0
      %876 = vmatprep.subr.bf16.mxu0 0
      %877 = vmatpush1.bf16.xpose.msra.mxu0 0
      %878 = vmatprep.subr.bf16.mxu0 0
      %879 = vmatpush1.bf16.xpose.msra.mxu0 0
      %880 = vmatprep.subr.bf16.mxu0 0
      %881 = vmatpush1.bf16.xpose.msra.mxu0 0
      %882 = vmatprep.subr.bf16.mxu0 0
      %883 = vmatpush1.bf16.xpose.msra.mxu0 0
      %884 = vmatprep.subr.bf16.mxu0 0
      %885 = vmatpush1.bf16.xpose.msra.mxu0 0
      %886 = vmatprep.subr.bf16.mxu0 0
      %887 = vmatpush1.bf16.xpose.msra.mxu0 0
      %888 = vmatprep.mubr.bf16.mxu0 0
      %889 = vmatmul.mubr.bf16.gmra.mrb[0].mxu0 %v851
      %v890 = vpop.f32.mrb[0].mxu0
      %v891 = vadd.f32 0.0, %v890
      %v892 = vpop.f32.mrb[0].mxu0
      %v893 = vpop.f32.mrb[0].mxu0
      %v894 = vadd.f32 0.0, %v893
      %v895 = vpop.f32.mrb[0].mxu0
      %896 = vdwg.mxu0
      %vm897 = vcmask 80896
      %v898 = vsel %vm897, %v891, -inf
      %899 = vmax.xlane.f32.xlu0 %v898
      %v900 = vpop.xlane.xlu0 %899
      %vm901 = vcmask 74752
      %v902 = vsel %vm901, %v894, -inf
      %903 = vmax.xlane.f32.xlu0 %v902
      %v904 = vpop.xlane.xlu0 %903
      %v905 = vsub.f32 %v891, %v900
      %v906 = vsub.f32 %v894, %v904
      %v907 = vmul.f32 %v905, 1.442695
      %v908 = vpow.pop %v907
      %v909 = vmul.f32 %v906, 1.442695
      %v910 = vpow.pop %v909
      %v911 = vsel %vm897, %v908, 0.0
      %912 = vadd.xlane.f32.xlu0 %v911
      %v913 = vpop.xlane.xlu0 %912
      %v914 = vsel %vm901, %v910, 0.0
      %915 = vadd.xlane.f32.xlu0 %v914
      %v916 = vpop.xlane.xlu0 %915
      %v917 = vrcp.pop %v913
      %v918 = vrcp.pop %v916
      %v919 = vmul.f32 %v908, %v917
      %v920 = vmul.f32 %v910, %v918
      %v921 = vpack.c.bf16 %v920, %v919
      %v923 = vsel %vm897, %v921, 0
      %vm925 = vcmask 1044480
      %v927 = vsel %vm925, %v846, 0
      %929 = vmatprep.subr.bf16.mxu0 0
      %930 = vmatpush1.bf16.msra.mxu0 %v927
      %931 = vmatprep.subr.bf16.mxu0 0
      %932 = vmatpush1.bf16.msra.mxu0 0
      %933 = vmatprep.subr.bf16.mxu0 0
      %934 = vmatpush1.bf16.msra.mxu0 0
      %935 = vmatprep.subr.bf16.mxu0 0
      %936 = vmatpush1.bf16.msra.mxu0 0
      %937 = vmatprep.subr.bf16.mxu0 0
      %938 = vmatpush1.bf16.msra.mxu0 0
      %939 = vmatprep.subr.bf16.mxu0 0
      %940 = vmatpush1.bf16.msra.mxu0 0
      %941 = vmatprep.subr.bf16.mxu0 0
      %942 = vmatpush1.bf16.msra.mxu0 0
      %943 = vmatprep.subr.bf16.mxu0 0
      %944 = vmatpush1.bf16.msra.mxu0 0
      %945 = vmatprep.subr.bf16.mxu0 0
      %946 = vmatpush1.bf16.msra.mxu0 0
      %947 = vmatprep.subr.bf16.mxu0 0
      %948 = vmatpush1.bf16.msra.mxu0 0
      %949 = vmatprep.subr.bf16.mxu0 0
      %950 = vmatpush1.bf16.msra.mxu0 0
      %951 = vmatprep.subr.bf16.mxu0 0
      %952 = vmatpush1.bf16.msra.mxu0 0
      %953 = vmatprep.subr.bf16.mxu0 0
      %954 = vmatpush1.bf16.msra.mxu0 0
      %955 = vmatprep.subr.bf16.mxu0 0
      %956 = vmatpush1.bf16.msra.mxu0 0
      %957 = vmatprep.subr.bf16.mxu0 0
      %958 = vmatpush1.bf16.msra.mxu0 0
      %959 = vmatprep.subr.bf16.mxu0 0
      %960 = vmatpush1.bf16.msra.mxu0 0
      %961 = vmatprep.mubr.bf16.mxu0 0
      %962 = vmatmul.mubr.bf16.gmra.mrb[0].mxu0 %v923
      %v963 = vpop.f32.mrb[0].mxu0
      %v964 = vadd.f32 0.0, %v963
      %v965 = vpop.f32.mrb[0].mxu0
      %v966 = vpop.f32.mrb[0].mxu0
      %v967 = vadd.f32 0.0, %v966
      %v968 = vpop.f32.mrb[0].mxu0
      %969 = vdwg.mxu0
      %v970 = vpack.c.bf16 %v967, %v964
      %v971 = vld [vmem:[%s9] sm:$0xf]
      %s972 = scalar_lea.vmem %s3, 16
      %v973 = vld [vmem:[%s972] sm:$0xf]
      %v974 = vld [vmem:[%s972 + $0x4] sm:$0xf]
      %v975 = vld [vmem:[%s972 + $0x8] sm:$0xf]
      %v976 = vld [vmem:[%s972 + $0xc] sm:$0xf]
      %s977 = scalar_lea.vmem %s4, 1
      %v978 = vld [vmem:[%s977] sm:$0x1]
      %v979 = vunpack.c.l.bf16 %v978
      %v980 = vlaneseq
      %v981 = vshrl.u32 %v980, 7
      %v982 = vsub.s32 0, %v981
      %v983 = vrot.slane %v979, %v982
      %v988 = vunpack.c.l.b16 %v973
      %v989 = vunpack.c.l.b16 %v974
      %v990 = vunpack.c.l.b16 %v975
      %v991 = vunpack.c.l.b16 %v976
      %v992 = vpack.c.b16 %v989, %v988
      %v993 = vpack.c.b16 %v991, %v990
      %996 = vmatprep.subr.bf16.mxu0 0
      %997 = vmatpush1.bf16.msra.mxu0 %v992
      %998 = vmatprep.subr.bf16.mxu0 0
      %999 = vmatpush1.bf16.msra.mxu0 %v993
      %1000 = vmatprep.subr.bf16.mxu0 0
      %1001 = vmatpush1.bf16.msra.mxu0 0
      %1002 = vmatprep.subr.bf16.mxu0 0
      %1003 = vmatpush1.bf16.msra.mxu0 0
      %1004 = vmatprep.subr.bf16.mxu0 0
      %1005 = vmatpush1.bf16.msra.mxu0 0
      %1006 = vmatprep.subr.bf16.mxu0 0
      %1007 = vmatpush1.bf16.msra.mxu0 0
      %1008 = vmatprep.subr.bf16.mxu0 0
      %1009 = vmatpush1.bf16.msra.mxu0 0
      %1010 = vmatprep.subr.bf16.mxu0 0
      %1011 = vmatpush1.bf16.msra.mxu0 0
      %1012 = vmatprep.subr.bf16.mxu0 0
      %1013 = vmatpush1.bf16.msra.mxu0 0
      %1014 = vmatprep.subr.bf16.mxu0 0
      %1015 = vmatpush1.bf16.msra.mxu0 0
      %1016 = vmatprep.subr.bf16.mxu0 0
      %1017 = vmatpush1.bf16.msra.mxu0 0
      %1018 = vmatprep.subr.bf16.mxu0 0
      %1019 = vmatpush1.bf16.msra.mxu0 0
      %1020 = vmatprep.subr.bf16.mxu0 0
      %1021 = vmatpush1.bf16.msra.mxu0 0
      %1022 = vmatprep.subr.bf16.mxu0 0
      %1023 = vmatpush1.bf16.msra.mxu0 0
      %1024 = vmatprep.subr.bf16.mxu0 0
      %1025 = vmatpush1.bf16.msra.mxu0 0
      %1026 = vmatprep.subr.bf16.mxu0 0
      %1027 = vmatpush1.bf16.msra.mxu0 0
      %1028 = vmatprep.mubr.bf16.mxu0 0
      %1029 = vmatmul.mubr.bf16.gmra.mrb[0].mxu0 %v677
      %v1030 = vpop.f32.mrb[0].mxu0
      %v1031 = vadd.f32 %v983, %v1030
      %v1032 = vpop.f32.mrb[0].mxu0
      %v1033 = vpop.f32.mrb[0].mxu0
      %v1034 = vadd.f32 %v983, %v1033
      %v1035 = vpop.f32.mrb[0].mxu0
      %1036 = vdwg.mxu0
      %s1037 = scalar_lea.vmem %s5, 16
      %v1038 = vld [vmem:[%s1037] sm:$0xf]
      %v1039 = vld [vmem:[%s1037 + $0x4] sm:$0xf]
      %v1040 = vld [vmem:[%s1037 + $0x8] sm:$0xf]
      %v1041 = vld [vmem:[%s1037 + $0xc] sm:$0xf]
      %s1042 = scalar_lea.vmem %s6, 1
      %v1043 = vld [vmem:[%s1042] sm:$0x1]
      %v1044 = vunpack.c.l.bf16 %v1043
      %v1045 = vlaneseq
      %v1046 = vshrl.u32 %v1045, 7
      %v1047 = vsub.s32 0, %v1046
      %v1048 = vrot.slane %v1044, %v1047
      %v1053 = vunpack.c.l.b16 %v1038
      %v1054 = vunpack.c.l.b16 %v1039
      %v1055 = vunpack.c.l.b16 %v1040
      %v1056 = vunpack.c.l.b16 %v1041
      %v1057 = vpack.c.b16 %v1054, %v1053
      %v1058 = vpack.c.b16 %v1056, %v1055
      %1061 = vmatprep.subr.bf16.mxu0 0
      %1062 = vmatpush1.bf16.msra.mxu0 %v1057
      %1063 = vmatprep.subr.bf16.mxu0 0
      %1064 = vmatpush1.bf16.msra.mxu0 %v1058
      %1065 = vmatprep.subr.bf16.mxu0 0
      %1066 = vmatpush1.bf16.msra.mxu0 0
      %1067 = vmatprep.subr.bf16.mxu0 0
      %1068 = vmatpush1.bf16.msra.mxu0 0
      %1069 = vmatprep.subr.bf16.mxu0 0
      %1070 = vmatpush1.bf16.msra.mxu0 0
      %1071 = vmatprep.subr.bf16.mxu0 0
      %1072 = vmatpush1.bf16.msra.mxu0 0
      %1073 = vmatprep.subr.bf16.mxu0 0
      %1074 = vmatpush1.bf16.msra.mxu0 0
      %1075 = vmatprep.subr.bf16.mxu0 0
      %1076 = vmatpush1.bf16.msra.mxu0 0
      %1077 = vmatprep.subr.bf16.mxu0 0
      %1078 = vmatpush1.bf16.msra.mxu0 0
      %1079 = vmatprep.subr.bf16.mxu0 0
      %1080 = vmatpush1.bf16.msra.mxu0 0
      %1081 = vmatprep.subr.bf16.mxu0 0
      %1082 = vmatpush1.bf16.msra.mxu0 0
      %1083 = vmatprep.subr.bf16.mxu0 0
      %1084 = vmatpush1.bf16.msra.mxu0 0
      %1085 = vmatprep.subr.bf16.mxu0 0
      %1086 = vmatpush1.bf16.msra.mxu0 0
      %1087 = vmatprep.subr.bf16.mxu0 0
      %1088 = vmatpush1.bf16.msra.mxu0 0
      %1089 = vmatprep.subr.bf16.mxu0 0
      %1090 = vmatpush1.bf16.msra.mxu0 0
      %1091 = vmatprep.subr.bf16.mxu0 0
      %1092 = vmatpush1.bf16.msra.mxu0 0
      %1093 = vmatprep.mubr.bf16.mxu0 0
      %1094 = vmatmul.mubr.bf16.gmra.mrb[0].mxu0 %v677
      %v1095 = vpop.f32.mrb[0].mxu0
      %v1096 = vadd.f32 %v1048, %v1095
      %v1097 = vpop.f32.mrb[0].mxu0
      %v1098 = vpop.f32.mrb[0].mxu0
      %v1099 = vadd.f32 %v1048, %v1098
      %v1100 = vpop.f32.mrb[0].mxu0
      %1101 = vdwg.mxu0
      %s1102 = scalar_lea.vmem %s7, 16
      %v1103 = vld [vmem:[%s1102] sm:$0xf]
      %v1104 = vld [vmem:[%s1102 + $0x4] sm:$0xf]
      %v1105 = vld [vmem:[%s1102 + $0x8] sm:$0xf]
      %v1106 = vld [vmem:[%s1102 + $0xc] sm:$0xf]
      %s1107 = scalar_lea.vmem %s8, 1
      %v1108 = vld [vmem:[%s1107] sm:$0x1]
      %v1109 = vunpack.c.l.bf16 %v1108
      %v1110 = vlaneseq
      %v1111 = vshrl.u32 %v1110, 7
      %v1112 = vsub.s32 0, %v1111
      %v1113 = vrot.slane %v1109, %v1112
      %v1118 = vunpack.c.l.b16 %v1103
      %v1119 = vunpack.c.l.b16 %v1104
      %v1120 = vunpack.c.l.b16 %v1105
      %v1121 = vunpack.c.l.b16 %v1106
      %v1122 = vpack.c.b16 %v1119, %v1118
      %v1123 = vpack.c.b16 %v1121, %v1120
      %1126 = vmatprep.subr.bf16.mxu0 0
      %1127 = vmatpush1.bf16.msra.mxu0 %v1122
      %1128 = vmatprep.subr.bf16.mxu0 0
      %1129 = vmatpush1.bf16.msra.mxu0 %v1123
      %1130 = vmatprep.subr.bf16.mxu0 0
      %1131 = vmatpush1.bf16.msra.mxu0 0
      %1132 = vmatprep.subr.bf16.mxu0 0
      %1133 = vmatpush1.bf16.msra.mxu0 0
      %1134 = vmatprep.subr.bf16.mxu0 0
      %1135 = vmatpush1.bf16.msra.mxu0 0
      %1136 = vmatprep.subr.bf16.mxu0 0
      %1137 = vmatpush1.bf16.msra.mxu0 0
      %1138 = vmatprep.subr.bf16.mxu0 0
      %1139 = vmatpush1.bf16.msra.mxu0 0
      %1140 = vmatprep.subr.bf16.mxu0 0
      %1141 = vmatpush1.bf16.msra.mxu0 0
      %1142 = vmatprep.subr.bf16.mxu0 0
      %1143 = vmatpush1.bf16.msra.mxu0 0
      %1144 = vmatprep.subr.bf16.mxu0 0
      %1145 = vmatpush1.bf16.msra.mxu0 0
      %1146 = vmatprep.subr.bf16.mxu0 0
      %1147 = vmatpush1.bf16.msra.mxu0 0
      %1148 = vmatprep.subr.bf16.mxu0 0
      %1149 = vmatpush1.bf16.msra.mxu0 0
      %1150 = vmatprep.subr.bf16.mxu0 0
      %1151 = vmatpush1.bf16.msra.mxu0 0
      %1152 = vmatprep.subr.bf16.mxu0 0
      %1153 = vmatpush1.bf16.msra.mxu0 0
      %1154 = vmatprep.subr.bf16.mxu0 0
      %1155 = vmatpush1.bf16.msra.mxu0 0
      %1156 = vmatprep.subr.bf16.mxu0 0
      %1157 = vmatpush1.bf16.msra.mxu0 0
      %1158 = vmatprep.mubr.bf16.mxu0 0
      %1159 = vmatmul.mubr.bf16.gmra.mrb[0].mxu0 %v677
      %v1160 = vpop.f32.mrb[0].mxu0
      %v1161 = vadd.f32 %v1113, %v1160
      %v1162 = vpop.f32.mrb[0].mxu0
      %v1163 = vpop.f32.mrb[0].mxu0
      %v1164 = vadd.f32 %v1113, %v1163
      %v1165 = vpop.f32.mrb[0].mxu0
      %1166 = vdwg.mxu0
      %v1167 = vpack.c.bf16 %v1164, %v1161
      %v1168 = vpack.c.bf16 %v1034, %v1031
      %v1169 = vpack.c.bf16 %v1099, %v1096
      %v1171 = vsel %vm849, %v1168, 0
      %v1174 = vsel %vm849, %v1169, 0
      %1176 = vmatprep.subr.bf16.mxu0 0
      %1177 = vmatpush1.bf16.xpose.msra.mxu0 %v1174
      %1178 = vmatprep.subr.bf16.mxu0 0
      %1179 = vmatpush1.bf16.xpose.msra.mxu0 0
      %1180 = vmatprep.subr.bf16.mxu0 0
      %1181 = vmatpush1.bf16.xpose.msra.mxu0 0
      %1182 = vmatprep.subr.bf16.mxu0 0
      %1183 = vmatpush1.bf16.xpose.msra.mxu0 0
      %1184 = vmatprep.subr.bf16.mxu0 0
      %1185 = vmatpush1.bf16.xpose.msra.mxu0 0
      %1186 = vmatprep.subr.bf16.mxu0 0
      %1187 = vmatpush1.bf16.xpose.msra.mxu0 0
      %1188 = vmatprep.subr.bf16.mxu0 0
      %1189 = vmatpush1.bf16.xpose.msra.mxu0 0
      %1190 = vmatprep.subr.bf16.mxu0 0
      %1191 = vmatpush1.bf16.xpose.msra.mxu0 0
      %1192 = vmatprep.subr.bf16.mxu0 0
      %1193 = vmatpush1.bf16.xpose.msra.mxu0 0
      %1194 = vmatprep.subr.bf16.mxu0 0
      %1195 = vmatpush1.bf16.xpose.msra.mxu0 0
      %1196 = vmatprep.subr.bf16.mxu0 0
      %1197 = vmatpush1.bf16.xpose.msra.mxu0 0
      %1198 = vmatprep.subr.bf16.mxu0 0
      %1199 = vmatpush1.bf16.xpose.msra.mxu0 0
      %1200 = vmatprep.subr.bf16.mxu0 0
      %1201 = vmatpush1.bf16.xpose.msra.mxu0 0
      %1202 = vmatprep.subr.bf16.mxu0 0
      %1203 = vmatpush1.bf16.xpose.msra.mxu0 0
      %1204 = vmatprep.subr.bf16.mxu0 0
      %1205 = vmatpush1.bf16.xpose.msra.mxu0 0
      %1206 = vmatprep.subr.bf16.mxu0 0
      %1207 = vmatpush1.bf16.xpose.msra.mxu0 0
      %1208 = vmatprep.mubr.bf16.mxu0 0
      %1209 = vmatmul.mubr.bf16.gmra.mrb[0].mxu0 %v1171
      %v1210 = vpop.f32.mrb[0].mxu0
      %v1211 = vadd.f32 0.0, %v1210
      %v1212 = vpop.f32.mrb[0].mxu0
      %v1213 = vpop.f32.mrb[0].mxu0
      %v1214 = vadd.f32 0.0, %v1213
      %v1215 = vpop.f32.mrb[0].mxu0
      %1216 = vdwg.mxu0
      %v1217 = vsel %vm897, %v1211, -inf
      %1218 = vmax.xlane.f32.xlu0 %v1217
      %v1219 = vpop.xlane.xlu0 %1218
      %v1220 = vsel %vm901, %v1214, -inf
      %1221 = vmax.xlane.f32.xlu0 %v1220
      %v1222 = vpop.xlane.xlu0 %1221
      %v1223 = vsub.f32 %v1211, %v1219
      %v1224 = vsub.f32 %v1214, %v1222
      %v1225 = vmul.f32 %v1223, 1.442695
      %v1226 = vpow.pop %v1225
      %v1227 = vmul.f32 %v1224, 1.442695
      %v1228 = vpow.pop %v1227
      %v1229 = vsel %vm897, %v1226, 0.0
      %1230 = vadd.xlane.f32.xlu0 %v1229
      %v1231 = vpop.xlane.xlu0 %1230
      %v1232 = vsel %vm901, %v1228, 0.0
      %1233 = vadd.xlane.f32.xlu0 %v1232
      %v1234 = vpop.xlane.xlu0 %1233
      %v1235 = vrcp.pop %v1231
      %v1236 = vrcp.pop %v1234
      %v1237 = vmul.f32 %v1226, %v1235
      %v1238 = vmul.f32 %v1228, %v1236
      %v1239 = vpack.c.bf16 %v1238, %v1237
      %v1241 = vsel %vm897, %v1239, 0
      %v1244 = vsel %vm925, %v1167, 0
      %1246 = vmatprep.subr.bf16.mxu0 0
      %1247 = vmatpush1.bf16.msra.mxu0 %v1244
      %1248 = vmatprep.subr.bf16.mxu0 0
      %1249 = vmatpush1.bf16.msra.mxu0 0
      %1250 = vmatprep.subr.bf16.mxu0 0
      %1251 = vmatpush1.bf16.msra.mxu0 0
      %1252 = vmatprep.subr.bf16.mxu0 0
      %1253 = vmatpush1.bf16.msra.mxu0 0
      %1254 = vmatprep.subr.bf16.mxu0 0
      %1255 = vmatpush1.bf16.msra.mxu0 0
      %1256 = vmatprep.subr.bf16.mxu0 0
      %1257 = vmatpush1.bf16.msra.mxu0 0
      %1258 = vmatprep.subr.bf16.mxu0 0
      %1259 = vmatpush1.bf16.msra.mxu0 0
      %1260 = vmatprep.subr.bf16.mxu0 0
      %1261 = vmatpush1.bf16.msra.mxu0 0
      %1262 = vmatprep.subr.bf16.mxu0 0
      %1263 = vmatpush1.bf16.msra.mxu0 0
      %1264 = vmatprep.subr.bf16.mxu0 0
      %1265 = vmatpush1.bf16.msra.mxu0 0
      %1266 = vmatprep.subr.bf16.mxu0 0
      %1267 = vmatpush1.bf16.msra.mxu0 0
      %1268 = vmatprep.subr.bf16.mxu0 0
      %1269 = vmatpush1.bf16.msra.mxu0 0
      %1270 = vmatprep.subr.bf16.mxu0 0
      %1271 = vmatpush1.bf16.msra.mxu0 0
      %1272 = vmatprep.subr.bf16.mxu0 0
      %1273 = vmatpush1.bf16.msra.mxu0 0
      %1274 = vmatprep.subr.bf16.mxu0 0
      %1275 = vmatpush1.bf16.msra.mxu0 0
      %1276 = vmatprep.subr.bf16.mxu0 0
      %1277 = vmatpush1.bf16.msra.mxu0 0
      %1278 = vmatprep.mubr.bf16.mxu0 0
      %1279 = vmatmul.mubr.bf16.gmra.mrb[0].mxu0 %v1241
      %v1280 = vpop.f32.mrb[0].mxu0
      %v1281 = vadd.f32 0.0, %v1280
      %v1282 = vpop.f32.mrb[0].mxu0
      %v1283 = vpop.f32.mrb[0].mxu0
      %v1284 = vadd.f32 0.0, %v1283
      %v1285 = vpop.f32.mrb[0].mxu0
      %1286 = vdwg.mxu0
      %v1287 = vpack.c.bf16 %v1284, %v1281
      %s1288 = scalar_lea.vmem %s9, 4
      %v1289 = vld [vmem:[%s1288] sm:$0xf]
      %v1291 = vsel %vm849, %v1287, 0
      %vm1293 = vcmask 1043456
      %v1295 = vsel %vm1293, %v1289, 0
      %1297 = vmatprep.subr.bf16.mxu0 0
      %1298 = vmatpush1.bf16.msra.mxu0 %v1295
      %1299 = vmatprep.subr.bf16.mxu0 0
      %1300 = vmatpush1.bf16.msra.mxu0 0
      %1301 = vmatprep.subr.bf16.mxu0 0
      %1302 = vmatpush1.bf16.msra.mxu0 0
      %1303 = vmatprep.subr.bf16.mxu0 0
      %1304 = vmatpush1.bf16.msra.mxu0 0
      %1305 = vmatprep.subr.bf16.mxu0 0
      %1306 = vmatpush1.bf16.msra.mxu0 0
      %1307 = vmatprep.subr.bf16.mxu0 0
      %1308 = vmatpush1.bf16.msra.mxu0 0
      %1309 = vmatprep.subr.bf16.mxu0 0
      %1310 = vmatpush1.bf16.msra.mxu0 0
      %1311 = vmatprep.subr.bf16.mxu0 0
      %1312 = vmatpush1.bf16.msra.mxu0 0
      %1313 = vmatprep.subr.bf16.mxu0 0
      %1314 = vmatpush1.bf16.msra.mxu0 0
      %1315 = vmatprep.subr.bf16.mxu0 0
      %1316 = vmatpush1.bf16.msra.mxu0 0
      %1317 = vmatprep.subr.bf16.mxu0 0
      %1318 = vmatpush1.bf16.msra.mxu0 0
      %1319 = vmatprep.subr.bf16.mxu0 0
      %1320 = vmatpush1.bf16.msra.mxu0 0
      %1321 = vmatprep.subr.bf16.mxu0 0
      %1322 = vmatpush1.bf16.msra.mxu0 0
      %1323 = vmatprep.subr.bf16.mxu0 0
      %1324 = vmatpush1.bf16.msra.mxu0 0
      %1325 = vmatprep.subr.bf16.mxu0 0
      %1326 = vmatpush1.bf16.msra.mxu0 0
      %1327 = vmatprep.subr.bf16.mxu0 0
      %1328 = vmatpush1.bf16.msra.mxu0 0
      %1329 = vmatprep.mubr.bf16.mxu0 0
      %1330 = vmatmul.mubr.bf16.gmra.mrb[0].mxu0 %v1291
      %v1331 = vpop.f32.mrb[0].mxu0
      %v1332 = vadd.f32 0.0, %v1331
      %v1333 = vpop.f32.mrb[0].mxu0
      %v1334 = vpop.f32.mrb[0].mxu0
      %v1335 = vadd.f32 0.0, %v1334
      %v1336 = vpop.f32.mrb[0].mxu0
      %1337 = vdwg.mxu0
      %v1339 = vsel %vm849, %v970, 0
      %v1342 = vsel %vm1293, %v971, 0
      %1344 = vmatprep.subr.bf16.mxu0 0
      %1345 = vmatpush1.bf16.msra.mxu0 %v1342
      %1346 = vmatprep.subr.bf16.mxu0 0
      %1347 = vmatpush1.bf16.msra.mxu0 0
      %1348 = vmatprep.subr.bf16.mxu0 0
      %1349 = vmatpush1.bf16.msra.mxu0 0
      %1350 = vmatprep.subr.bf16.mxu0 0
      %1351 = vmatpush1.bf16.msra.mxu0 0
      %1352 = vmatprep.subr.bf16.mxu0 0
      %1353 = vmatpush1.bf16.msra.mxu0 0
      %1354 = vmatprep.subr.bf16.mxu0 0
      %1355 = vmatpush1.bf16.msra.mxu0 0
      %1356 = vmatprep.subr.bf16.mxu0 0
      %1357 = vmatpush1.bf16.msra.mxu0 0
      %1358 = vmatprep.subr.bf16.mxu0 0
      %1359 = vmatpush1.bf16.msra.mxu0 0
      %1360 = vmatprep.subr.bf16.mxu0 0
      %1361 = vmatpush1.bf16.msra.mxu0 0
      %1362 = vmatprep.subr.bf16.mxu0 0
      %1363 = vmatpush1.bf16.msra.mxu0 0
      %1364 = vmatprep.subr.bf16.mxu0 0
      %1365 = vmatpush1.bf16.msra.mxu0 0
      %1366 = vmatprep.subr.bf16.mxu0 0
      %1367 = vmatpush1.bf16.msra.mxu0 0
      %1368 = vmatprep.subr.bf16.mxu0 0
      %1369 = vmatpush1.bf16.msra.mxu0 0
      %1370 = vmatprep.subr.bf16.mxu0 0
      %1371 = vmatpush1.bf16.msra.mxu0 0
      %1372 = vmatprep.subr.bf16.mxu0 0
      %1373 = vmatpush1.bf16.msra.mxu0 0
      %1374 = vmatprep.subr.bf16.mxu0 0
      %1375 = vmatpush1.bf16.msra.mxu0 0
      %1376 = vmatprep.mubr.bf16.mxu0 0
      %1377 = vmatmul.mubr.bf16.gmra.mrb[0].mxu0 %v1339
      %v1378 = vpop.f32.mrb[0].mxu0
      %v1379 = vadd.f32 %v1332, %v1378
      %v1380 = vpop.f32.mrb[0].mxu0
      %v1381 = vpop.f32.mrb[0].mxu0
      %v1382 = vadd.f32 %v1335, %v1381
      %v1383 = vpop.f32.mrb[0].mxu0
      %1384 = vdwg.mxu0
      %s1385 = scalar_lea.vmem %s3, 32
      %v1386 = vld [vmem:[%s1385] sm:$0xf]
      %v1387 = vld [vmem:[%s1385 + $0x4] sm:$0xf]
      %v1388 = vld [vmem:[%s1385 + $0x8] sm:$0xf]
      %v1389 = vld [vmem:[%s1385 + $0xc] sm:$0xf]
      %s1390 = scalar_lea.vmem %s4, 2
      %v1391 = vld [vmem:[%s1390] sm:$0x1]
      %v1392 = vunpack.c.l.bf16 %v1391
      %v1393 = vlaneseq
      %v1394 = vshrl.u32 %v1393, 7
      %v1395 = vsub.s32 0, %v1394
      %v1396 = vrot.slane %v1392, %v1395
      %v1401 = vunpack.c.l.b16 %v1386
      %v1402 = vunpack.c.l.b16 %v1387
      %v1403 = vunpack.c.l.b16 %v1388
      %v1404 = vunpack.c.l.b16 %v1389
      %v1405 = vpack.c.b16 %v1402, %v1401
      %v1406 = vpack.c.b16 %v1404, %v1403
      %1409 = vmatprep.subr.bf16.mxu0 0
      %1410 = vmatpush1.bf16.msra.mxu0 %v1405
      %1411 = vmatprep.subr.bf16.mxu0 0
      %1412 = vmatpush1.bf16.msra.mxu0 %v1406
      %1413 = vmatprep.subr.bf16.mxu0 0
      %1414 = vmatpush1.bf16.msra.mxu0 0
      %1415 = vmatprep.subr.bf16.mxu0 0
      %1416 = vmatpush1.bf16.msra.mxu0 0
      %1417 = vmatprep.subr.bf16.mxu0 0
      %1418 = vmatpush1.bf16.msra.mxu0 0
      %1419 = vmatprep.subr.bf16.mxu0 0
      %1420 = vmatpush1.bf16.msra.mxu0 0
      %1421 = vmatprep.subr.bf16.mxu0 0
      %1422 = vmatpush1.bf16.msra.mxu0 0
      %1423 = vmatprep.subr.bf16.mxu0 0
      %1424 = vmatpush1.bf16.msra.mxu0 0
      %1425 = vmatprep.subr.bf16.mxu0 0
      %1426 = vmatpush1.bf16.msra.mxu0 0
      %1427 = vmatprep.subr.bf16.mxu0 0
      %1428 = vmatpush1.bf16.msra.mxu0 0
      %1429 = vmatprep.subr.bf16.mxu0 0
      %1430 = vmatpush1.bf16.msra.mxu0 0
      %1431 = vmatprep.subr.bf16.mxu0 0
      %1432 = vmatpush1.bf16.msra.mxu0 0
      %1433 = vmatprep.subr.bf16.mxu0 0
      %1434 = vmatpush1.bf16.msra.mxu0 0
      %1435 = vmatprep.subr.bf16.mxu0 0
      %1436 = vmatpush1.bf16.msra.mxu0 0
      %1437 = vmatprep.subr.bf16.mxu0 0
      %1438 = vmatpush1.bf16.msra.mxu0 0
      %1439 = vmatprep.subr.bf16.mxu0 0
      %1440 = vmatpush1.bf16.msra.mxu0 0
      %1441 = vmatprep.mubr.bf16.mxu0 0
      %1442 = vmatmul.mubr.bf16.gmra.mrb[0].mxu0 %v677
      %v1443 = vpop.f32.mrb[0].mxu0
      %v1444 = vadd.f32 %v1396, %v1443
      %v1445 = vpop.f32.mrb[0].mxu0
      %v1446 = vpop.f32.mrb[0].mxu0
      %v1447 = vadd.f32 %v1396, %v1446
      %v1448 = vpop.f32.mrb[0].mxu0
      %1449 = vdwg.mxu0
      %s1450 = scalar_lea.vmem %s5, 32
      %v1451 = vld [vmem:[%s1450] sm:$0xf]
      %v1452 = vld [vmem:[%s1450 + $0x4] sm:$0xf]
      %v1453 = vld [vmem:[%s1450 + $0x8] sm:$0xf]
      %v1454 = vld [vmem:[%s1450 + $0xc] sm:$0xf]
      %s1455 = scalar_lea.vmem %s6, 2
      %v1456 = vld [vmem:[%s1455] sm:$0x1]
      %v1457 = vunpack.c.l.bf16 %v1456
      %v1458 = vlaneseq
      %v1459 = vshrl.u32 %v1458, 7
      %v1460 = vsub.s32 0, %v1459
      %v1461 = vrot.slane %v1457, %v1460
      %v1466 = vunpack.c.l.b16 %v1451
      %v1467 = vunpack.c.l.b16 %v1452
      %v1468 = vunpack.c.l.b16 %v1453
      %v1469 = vunpack.c.l.b16 %v1454
      %v1470 = vpack.c.b16 %v1467, %v1466
      %v1471 = vpack.c.b16 %v1469, %v1468
      %1474 = vmatprep.subr.bf16.mxu0 0
      %1475 = vmatpush1.bf16.msra.mxu0 %v1470
      %1476 = vmatprep.subr.bf16.mxu0 0
      %1477 = vmatpush1.bf16.msra.mxu0 %v1471
      %1478 = vmatprep.subr.bf16.mxu0 0
      %1479 = vmatpush1.bf16.msra.mxu0 0
      %1480 = vmatprep.subr.bf16.mxu0 0
      %1481 = vmatpush1.bf16.msra.mxu0 0
      %1482 = vmatprep.subr.bf16.mxu0 0
      %1483 = vmatpush1.bf16.msra.mxu0 0
      %1484 = vmatprep.subr.bf16.mxu0 0
      %1485 = vmatpush1.bf16.msra.mxu0 0
      %1486 = vmatprep.subr.bf16.mxu0 0
      %1487 = vmatpush1.bf16.msra.mxu0 0
      %1488 = vmatprep.subr.bf16.mxu0 0
      %1489 = vmatpush1.bf16.msra.mxu0 0
      %1490 = vmatprep.subr.bf16.mxu0 0
      %1491 = vmatpush1.bf16.msra.mxu0 0
      %1492 = vmatprep.subr.bf16.mxu0 0
      %1493 = vmatpush1.bf16.msra.mxu0 0
      %1494 = vmatprep.subr.bf16.mxu0 0
      %1495 = vmatpush1.bf16.msra.mxu0 0
      %1496 = vmatprep.subr.bf16.mxu0 0
      %1497 = vmatpush1.bf16.msra.mxu0 0
      %1498 = vmatprep.subr.bf16.mxu0 0
      %1499 = vmatpush1.bf16.msra.mxu0 0
      %1500 = vmatprep.subr.bf16.mxu0 0
      %1501 = vmatpush1.bf16.msra.mxu0 0
      %1502 = vmatprep.subr.bf16.mxu0 0
      %1503 = vmatpush1.bf16.msra.mxu0 0
      %1504 = vmatprep.subr.bf16.mxu0 0
      %1505 = vmatpush1.bf16.msra.mxu0 0
      %1506 = vmatprep.mubr.bf16.mxu0 0
      %1507 = vmatmul.mubr.bf16.gmra.mrb[0].mxu0 %v677
      %v1508 = vpop.f32.mrb[0].mxu0
      %v1509 = vadd.f32 %v1461, %v1508
      %v1510 = vpop.f32.mrb[0].mxu0
      %v1511 = vpop.f32.mrb[0].mxu0
      %v1512 = vadd.f32 %v1461, %v1511
      %v1513 = vpop.f32.mrb[0].mxu0
      %1514 = vdwg.mxu0
      %s1515 = scalar_lea.vmem %s7, 32
      %v1516 = vld [vmem:[%s1515] sm:$0xf]
      %v1517 = vld [vmem:[%s1515 + $0x4] sm:$0xf]
      %v1518 = vld [vmem:[%s1515 + $0x8] sm:$0xf]
      %v1519 = vld [vmem:[%s1515 + $0xc] sm:$0xf]
      %s1520 = scalar_lea.vmem %s8, 2
      %v1521 = vld [vmem:[%s1520] sm:$0x1]
      %v1522 = vunpack.c.l.bf16 %v1521
      %v1523 = vlaneseq
      %v1524 = vshrl.u32 %v1523, 7
      %v1525 = vsub.s32 0, %v1524
      %v1526 = vrot.slane %v1522, %v1525
      %v1531 = vunpack.c.l.b16 %v1516
      %v1532 = vunpack.c.l.b16 %v1517
      %v1533 = vunpack.c.l.b16 %v1518
      %v1534 = vunpack.c.l.b16 %v1519
      %v1535 = vpack.c.b16 %v1532, %v1531
      %v1536 = vpack.c.b16 %v1534, %v1533
      %1539 = vmatprep.subr.bf16.mxu0 0
      %1540 = vmatpush1.bf16.msra.mxu0 %v1535
      %1541 = vmatprep.subr.bf16.mxu0 0
      %1542 = vmatpush1.bf16.msra.mxu0 %v1536
      %1543 = vmatprep.subr.bf16.mxu0 0
      %1544 = vmatpush1.bf16.msra.mxu0 0
      %1545 = vmatprep.subr.bf16.mxu0 0
      %1546 = vmatpush1.bf16.msra.mxu0 0
      %1547 = vmatprep.subr.bf16.mxu0 0
      %1548 = vmatpush1.bf16.msra.mxu0 0
      %1549 = vmatprep.subr.bf16.mxu0 0
      %1550 = vmatpush1.bf16.msra.mxu0 0
      %1551 = vmatprep.subr.bf16.mxu0 0
      %1552 = vmatpush1.bf16.msra.mxu0 0
      %1553 = vmatprep.subr.bf16.mxu0 0
      %1554 = vmatpush1.bf16.msra.mxu0 0
      %1555 = vmatprep.subr.bf16.mxu0 0
      %1556 = vmatpush1.bf16.msra.mxu0 0
      %1557 = vmatprep.subr.bf16.mxu0 0
      %1558 = vmatpush1.bf16.msra.mxu0 0
      %1559 = vmatprep.subr.bf16.mxu0 0
      %1560 = vmatpush1.bf16.msra.mxu0 0
      %1561 = vmatprep.subr.bf16.mxu0 0
      %1562 = vmatpush1.bf16.msra.mxu0 0
      %1563 = vmatprep.subr.bf16.mxu0 0
      %1564 = vmatpush1.bf16.msra.mxu0 0
      %1565 = vmatprep.subr.bf16.mxu0 0
      %1566 = vmatpush1.bf16.msra.mxu0 0
      %1567 = vmatprep.subr.bf16.mxu0 0
      %1568 = vmatpush1.bf16.msra.mxu0 0
      %1569 = vmatprep.subr.bf16.mxu0 0
      %1570 = vmatpush1.bf16.msra.mxu0 0
      %1571 = vmatprep.mubr.bf16.mxu0 0
      %1572 = vmatmul.mubr.bf16.gmra.mrb[0].mxu0 %v677
      %v1573 = vpop.f32.mrb[0].mxu0
      %v1574 = vadd.f32 %v1526, %v1573
      %v1575 = vpop.f32.mrb[0].mxu0
      %v1576 = vpop.f32.mrb[0].mxu0
      %v1577 = vadd.f32 %v1526, %v1576
      %v1578 = vpop.f32.mrb[0].mxu0
      %1579 = vdwg.mxu0
      %v1580 = vpack.c.bf16 %v1577, %v1574
      %v1581 = vpack.c.bf16 %v1447, %v1444
      %v1582 = vpack.c.bf16 %v1512, %v1509
      %v1584 = vsel %vm849, %v1581, 0
      %v1587 = vsel %vm849, %v1582, 0
      %1589 = vmatprep.subr.bf16.mxu0 0
      %1590 = vmatpush1.bf16.xpose.msra.mxu0 %v1587
      %1591 = vmatprep.subr.bf16.mxu0 0
      %1592 = vmatpush1.bf16.xpose.msra.mxu0 0
      %1593 = vmatprep.subr.bf16.mxu0 0
      %1594 = vmatpush1.bf16.xpose.msra.mxu0 0
      %1595 = vmatprep.subr.bf16.mxu0 0
      %1596 = vmatpush1.bf16.xpose.msra.mxu0 0
      %1597 = vmatprep.subr.bf16.mxu0 0
      %1598 = vmatpush1.bf16.xpose.msra.mxu0 0
      %1599 = vmatprep.subr.bf16.mxu0 0
      %1600 = vmatpush1.bf16.xpose.msra.mxu0 0
      %1601 = vmatprep.subr.bf16.mxu0 0
      %1602 = vmatpush1.bf16.xpose.msra.mxu0 0
      %1603 = vmatprep.subr.bf16.mxu0 0
      %1604 = vmatpush1.bf16.xpose.msra.mxu0 0
      %1605 = vmatprep.subr.bf16.mxu0 0
      %1606 = vmatpush1.bf16.xpose.msra.mxu0 0
      %1607 = vmatprep.subr.bf16.mxu0 0
      %1608 = vmatpush1.bf16.xpose.msra.mxu0 0
      %1609 = vmatprep.subr.bf16.mxu0 0
      %1610 = vmatpush1.bf16.xpose.msra.mxu0 0
      %1611 = vmatprep.subr.bf16.mxu0 0
      %1612 = vmatpush1.bf16.xpose.msra.mxu0 0
      %1613 = vmatprep.subr.bf16.mxu0 0
      %1614 = vmatpush1.bf16.xpose.msra.mxu0 0
      %1615 = vmatprep.subr.bf16.mxu0 0
      %1616 = vmatpush1.bf16.xpose.msra.mxu0 0
      %1617 = vmatprep.subr.bf16.mxu0 0
      %1618 = vmatpush1.bf16.xpose.msra.mxu0 0
      %1619 = vmatprep.subr.bf16.mxu0 0
      %1620 = vmatpush1.bf16.xpose.msra.mxu0 0
      %1621 = vmatprep.mubr.bf16.mxu0 0
      %1622 = vmatmul.mubr.bf16.gmra.mrb[0].mxu0 %v1584
      %v1623 = vpop.f32.mrb[0].mxu0
      %v1624 = vadd.f32 0.0, %v1623
      %v1625 = vpop.f32.mrb[0].mxu0
      %v1626 = vpop.f32.mrb[0].mxu0
      %v1627 = vadd.f32 0.0, %v1626
      %v1628 = vpop.f32.mrb[0].mxu0
      %1629 = vdwg.mxu0
      %v1630 = vsel %vm897, %v1624, -inf
      %1631 = vmax.xlane.f32.xlu0 %v1630
      %v1632 = vpop.xlane.xlu0 %1631
      %v1633 = vsel %vm901, %v1627, -inf
      %1634 = vmax.xlane.f32.xlu0 %v1633
      %v1635 = vpop.xlane.xlu0 %1634
      %v1636 = vsub.f32 %v1624, %v1632
      %v1637 = vsub.f32 %v1627, %v1635
      %v1638 = vmul.f32 %v1636, 1.442695
      %v1639 = vpow.pop %v1638
      %v1640 = vmul.f32 %v1637, 1.442695
      %v1641 = vpow.pop %v1640
      %v1642 = vsel %vm897, %v1639, 0.0
      %1643 = vadd.xlane.f32.xlu0 %v1642
      %v1644 = vpop.xlane.xlu0 %1643
      %v1645 = vsel %vm901, %v1641, 0.0
      %1646 = vadd.xlane.f32.xlu0 %v1645
      %v1647 = vpop.xlane.xlu0 %1646
      %v1648 = vrcp.pop %v1644
      %v1649 = vrcp.pop %v1647
      %v1650 = vmul.f32 %v1639, %v1648
      %v1651 = vmul.f32 %v1641, %v1649
      %v1652 = vpack.c.bf16 %v1651, %v1650
      %v1654 = vsel %vm897, %v1652, 0
      %v1657 = vsel %vm925, %v1580, 0
      %1659 = vmatprep.subr.bf16.mxu0 0
      %1660 = vmatpush1.bf16.msra.mxu0 %v1657
      %1661 = vmatprep.subr.bf16.mxu0 0
      %1662 = vmatpush1.bf16.msra.mxu0 0
      %1663 = vmatprep.subr.bf16.mxu0 0
      %1664 = vmatpush1.bf16.msra.mxu0 0
      %1665 = vmatprep.subr.bf16.mxu0 0
      %1666 = vmatpush1.bf16.msra.mxu0 0
      %1667 = vmatprep.subr.bf16.mxu0 0
      %1668 = vmatpush1.bf16.msra.mxu0 0
      %1669 = vmatprep.subr.bf16.mxu0 0
      %1670 = vmatpush1.bf16.msra.mxu0 0
      %1671 = vmatprep.subr.bf16.mxu0 0
      %1672 = vmatpush1.bf16.msra.mxu0 0
      %1673 = vmatprep.subr.bf16.mxu0 0
      %1674 = vmatpush1.bf16.msra.mxu0 0
      %1675 = vmatprep.subr.bf16.mxu0 0
      %1676 = vmatpush1.bf16.msra.mxu0 0
      %1677 = vmatprep.subr.bf16.mxu0 0
      %1678 = vmatpush1.bf16.msra.mxu0 0
      %1679 = vmatprep.subr.bf16.mxu0 0
      %1680 = vmatpush1.bf16.msra.mxu0 0
      %1681 = vmatprep.subr.bf16.mxu0 0
      %1682 = vmatpush1.bf16.msra.mxu0 0
      %1683 = vmatprep.subr.bf16.mxu0 0
      %1684 = vmatpush1.bf16.msra.mxu0 0
      %1685 = vmatprep.subr.bf16.mxu0 0
      %1686 = vmatpush1.bf16.msra.mxu0 0
      %1687 = vmatprep.subr.bf16.mxu0 0
      %1688 = vmatpush1.bf16.msra.mxu0 0
      %1689 = vmatprep.subr.bf16.mxu0 0
      %1690 = vmatpush1.bf16.msra.mxu0 0
      %1691 = vmatprep.mubr.bf16.mxu0 0
      %1692 = vmatmul.mubr.bf16.gmra.mrb[0].mxu0 %v1654
      %v1693 = vpop.f32.mrb[0].mxu0
      %v1694 = vadd.f32 0.0, %v1693
      %v1695 = vpop.f32.mrb[0].mxu0
      %v1696 = vpop.f32.mrb[0].mxu0
      %v1697 = vadd.f32 0.0, %v1696
      %v1698 = vpop.f32.mrb[0].mxu0
      %1699 = vdwg.mxu0
      %v1700 = vpack.c.bf16 %v1697, %v1694
      %s1701 = scalar_lea.vmem %s9, 8
      %v1702 = vld [vmem:[%s1701] sm:$0xf]
      %v1704 = vsel %vm849, %v1700, 0
      %v1707 = vsel %vm1293, %v1702, 0
      %1709 = vmatprep.subr.bf16.mxu0 0
      %1710 = vmatpush1.bf16.msra.mxu0 %v1707
      %1711 = vmatprep.subr.bf16.mxu0 0
      %1712 = vmatpush1.bf16.msra.mxu0 0
      %1713 = vmatprep.subr.bf16.mxu0 0
      %1714 = vmatpush1.bf16.msra.mxu0 0
      %1715 = vmatprep.subr.bf16.mxu0 0
      %1716 = vmatpush1.bf16.msra.mxu0 0
      %1717 = vmatprep.subr.bf16.mxu0 0
      %1718 = vmatpush1.bf16.msra.mxu0 0
      %1719 = vmatprep.subr.bf16.mxu0 0
      %1720 = vmatpush1.bf16.msra.mxu0 0
      %1721 = vmatprep.subr.bf16.mxu0 0
      %1722 = vmatpush1.bf16.msra.mxu0 0
      %1723 = vmatprep.subr.bf16.mxu0 0
      %1724 = vmatpush1.bf16.msra.mxu0 0
      %1725 = vmatprep.subr.bf16.mxu0 0
      %1726 = vmatpush1.bf16.msra.mxu0 0
      %1727 = vmatprep.subr.bf16.mxu0 0
      %1728 = vmatpush1.bf16.msra.mxu0 0
      %1729 = vmatprep.subr.bf16.mxu0 0
      %1730 = vmatpush1.bf16.msra.mxu0 0
      %1731 = vmatprep.subr.bf16.mxu0 0
      %1732 = vmatpush1.bf16.msra.mxu0 0
      %1733 = vmatprep.subr.bf16.mxu0 0
      %1734 = vmatpush1.bf16.msra.mxu0 0
      %1735 = vmatprep.subr.bf16.mxu0 0
      %1736 = vmatpush1.bf16.msra.mxu0 0
      %1737 = vmatprep.subr.bf16.mxu0 0
      %1738 = vmatpush1.bf16.msra.mxu0 0
      %1739 = vmatprep.subr.bf16.mxu0 0
      %1740 = vmatpush1.bf16.msra.mxu0 0
      %1741 = vmatprep.mubr.bf16.mxu0 0
      %1742 = vmatmul.mubr.bf16.gmra.mrb[0].mxu0 %v1704
      %v1743 = vpop.f32.mrb[0].mxu0
      %v1744 = vadd.f32 0.0, %v1743
      %v1745 = vpop.f32.mrb[0].mxu0
      %v1746 = vpop.f32.mrb[0].mxu0
      %v1747 = vadd.f32 0.0, %v1746
      %v1748 = vpop.f32.mrb[0].mxu0
      %1749 = vdwg.mxu0
      %v1750 = vadd.f32 %v1379, %v1744
      %v1751 = vadd.f32 %v1382, %v1747
      %s1752 = scalar_lea.vmem %s3, 48
      %v1753 = vld [vmem:[%s1752] sm:$0xf]
      %v1754 = vld [vmem:[%s1752 + $0x4] sm:$0xf]
      %v1755 = vld [vmem:[%s1752 + $0x8] sm:$0xf]
      %v1756 = vld [vmem:[%s1752 + $0xc] sm:$0xf]
      %s1757 = scalar_lea.vmem %s4, 3
      %v1758 = vld [vmem:[%s1757] sm:$0x1]
      %v1759 = vunpack.c.l.bf16 %v1758
      %v1760 = vlaneseq
      %v1761 = vshrl.u32 %v1760, 7
      %v1762 = vsub.s32 0, %v1761
      %v1763 = vrot.slane %v1759, %v1762
      %v1768 = vunpack.c.l.b16 %v1753
      %v1769 = vunpack.c.l.b16 %v1754
      %v1770 = vunpack.c.l.b16 %v1755
      %v1771 = vunpack.c.l.b16 %v1756
      %v1772 = vpack.c.b16 %v1769, %v1768
      %v1773 = vpack.c.b16 %v1771, %v1770
      %1776 = vmatprep.subr.bf16.mxu0 0
      %1777 = vmatpush1.bf16.msra.mxu0 %v1772
      %1778 = vmatprep.subr.bf16.mxu0 0
      %1779 = vmatpush1.bf16.msra.mxu0 %v1773
      %1780 = vmatprep.subr.bf16.mxu0 0
      %1781 = vmatpush1.bf16.msra.mxu0 0
      %1782 = vmatprep.subr.bf16.mxu0 0
      %1783 = vmatpush1.bf16.msra.mxu0 0
      %1784 = vmatprep.subr.bf16.mxu0 0
      %1785 = vmatpush1.bf16.msra.mxu0 0
      %1786 = vmatprep.subr.bf16.mxu0 0
      %1787 = vmatpush1.bf16.msra.mxu0 0
      %1788 = vmatprep.subr.bf16.mxu0 0
      %1789 = vmatpush1.bf16.msra.mxu0 0
      %1790 = vmatprep.subr.bf16.mxu0 0
      %1791 = vmatpush1.bf16.msra.mxu0 0
      %1792 = vmatprep.subr.bf16.mxu0 0
      %1793 = vmatpush1.bf16.msra.mxu0 0
      %1794 = vmatprep.subr.bf16.mxu0 0
      %1795 = vmatpush1.bf16.msra.mxu0 0
      %1796 = vmatprep.subr.bf16.mxu0 0
      %1797 = vmatpush1.bf16.msra.mxu0 0
      %1798 = vmatprep.subr.bf16.mxu0 0
      %1799 = vmatpush1.bf16.msra.mxu0 0
      %1800 = vmatprep.subr.bf16.mxu0 0
      %1801 = vmatpush1.bf16.msra.mxu0 0
      %1802 = vmatprep.subr.bf16.mxu0 0
      %1803 = vmatpush1.bf16.msra.mxu0 0
      %1804 = vmatprep.subr.bf16.mxu0 0
      %1805 = vmatpush1.bf16.msra.mxu0 0
      %1806 = vmatprep.subr.bf16.mxu0 0
      %1807 = vmatpush1.bf16.msra.mxu0 0
      %1808 = vmatprep.mubr.bf16.mxu0 0
      %1809 = vmatmul.mubr.bf16.gmra.mrb[0].mxu0 %v677
      %v1810 = vpop.f32.mrb[0].mxu0
      %v1811 = vadd.f32 %v1763, %v1810
      %v1812 = vpop.f32.mrb[0].mxu0
      %v1813 = vpop.f32.mrb[0].mxu0
      %v1814 = vadd.f32 %v1763, %v1813
      %v1815 = vpop.f32.mrb[0].mxu0
      %1816 = vdwg.mxu0
      %s1817 = scalar_lea.vmem %s5, 48
      %v1818 = vld [vmem:[%s1817] sm:$0xf]
      %v1819 = vld [vmem:[%s1817 + $0x4] sm:$0xf]
      %v1820 = vld [vmem:[%s1817 + $0x8] sm:$0xf]
      %v1821 = vld [vmem:[%s1817 + $0xc] sm:$0xf]
      %s1822 = scalar_lea.vmem %s6, 3
      %v1823 = vld [vmem:[%s1822] sm:$0x1]
      %v1824 = vunpack.c.l.bf16 %v1823
      %v1825 = vlaneseq
      %v1826 = vshrl.u32 %v1825, 7
      %v1827 = vsub.s32 0, %v1826
      %v1828 = vrot.slane %v1824, %v1827
      %v1833 = vunpack.c.l.b16 %v1818
      %v1834 = vunpack.c.l.b16 %v1819
      %v1835 = vunpack.c.l.b16 %v1820
      %v1836 = vunpack.c.l.b16 %v1821
      %v1837 = vpack.c.b16 %v1834, %v1833
      %v1838 = vpack.c.b16 %v1836, %v1835
      %1841 = vmatprep.subr.bf16.mxu0 0
      %1842 = vmatpush1.bf16.msra.mxu0 %v1837
      %1843 = vmatprep.subr.bf16.mxu0 0
      %1844 = vmatpush1.bf16.msra.mxu0 %v1838
      %1845 = vmatprep.subr.bf16.mxu0 0
      %1846 = vmatpush1.bf16.msra.mxu0 0
      %1847 = vmatprep.subr.bf16.mxu0 0
      %1848 = vmatpush1.bf16.msra.mxu0 0
      %1849 = vmatprep.subr.bf16.mxu0 0
      %1850 = vmatpush1.bf16.msra.mxu0 0
      %1851 = vmatprep.subr.bf16.mxu0 0
      %1852 = vmatpush1.bf16.msra.mxu0 0
      %1853 = vmatprep.subr.bf16.mxu0 0
      %1854 = vmatpush1.bf16.msra.mxu0 0
      %1855 = vmatprep.subr.bf16.mxu0 0
      %1856 = vmatpush1.bf16.msra.mxu0 0
      %1857 = vmatprep.subr.bf16.mxu0 0
      %1858 = vmatpush1.bf16.msra.mxu0 0
      %1859 = vmatprep.subr.bf16.mxu0 0
      %1860 = vmatpush1.bf16.msra.mxu0 0
      %1861 = vmatprep.subr.bf16.mxu0 0
      %1862 = vmatpush1.bf16.msra.mxu0 0
      %1863 = vmatprep.subr.bf16.mxu0 0
      %1864 = vmatpush1.bf16.msra.mxu0 0
      %1865 = vmatprep.subr.bf16.mxu0 0
      %1866 = vmatpush1.bf16.msra.mxu0 0
      %1867 = vmatprep.subr.bf16.mxu0 0
      %1868 = vmatpush1.bf16.msra.mxu0 0
      %1869 = vmatprep.subr.bf16.mxu0 0
      %1870 = vmatpush1.bf16.msra.mxu0 0
      %1871 = vmatprep.subr.bf16.mxu0 0
      %1872 = vmatpush1.bf16.msra.mxu0 0
      %1873 = vmatprep.mubr.bf16.mxu0 0
      %1874 = vmatmul.mubr.bf16.gmra.mrb[0].mxu0 %v677
      %v1875 = vpop.f32.mrb[0].mxu0
      %v1876 = vadd.f32 %v1828, %v1875
      %v1877 = vpop.f32.mrb[0].mxu0
      %v1878 = vpop.f32.mrb[0].mxu0
      %v1879 = vadd.f32 %v1828, %v1878
      %v1880 = vpop.f32.mrb[0].mxu0
      %1881 = vdwg.mxu0
      %s1882 = scalar_lea.vmem %s7, 48
      %v1883 = vld [vmem:[%s1882] sm:$0xf]
      %v1884 = vld [vmem:[%s1882 + $0x4] sm:$0xf]
      %v1885 = vld [vmem:[%s1882 + $0x8] sm:$0xf]
      %v1886 = vld [vmem:[%s1882 + $0xc] sm:$0xf]
      %s1887 = scalar_lea.vmem %s8, 3
      %v1888 = vld [vmem:[%s1887] sm:$0x1]
      %v1889 = vunpack.c.l.bf16 %v1888
      %v1890 = vlaneseq
      %v1891 = vshrl.u32 %v1890, 7
      %v1892 = vsub.s32 0, %v1891
      %v1893 = vrot.slane %v1889, %v1892
      %v1898 = vunpack.c.l.b16 %v1883
      %v1899 = vunpack.c.l.b16 %v1884
      %v1900 = vunpack.c.l.b16 %v1885
      %v1901 = vunpack.c.l.b16 %v1886
      %v1902 = vpack.c.b16 %v1899, %v1898
      %v1903 = vpack.c.b16 %v1901, %v1900
      %1906 = vmatprep.subr.bf16.mxu0 0
      %1907 = vmatpush1.bf16.msra.mxu0 %v1902
      %1908 = vmatprep.subr.bf16.mxu0 0
      %1909 = vmatpush1.bf16.msra.mxu0 %v1903
      %1910 = vmatprep.subr.bf16.mxu0 0
      %1911 = vmatpush1.bf16.msra.mxu0 0
      %1912 = vmatprep.subr.bf16.mxu0 0
      %1913 = vmatpush1.bf16.msra.mxu0 0
      %1914 = vmatprep.subr.bf16.mxu0 0
      %1915 = vmatpush1.bf16.msra.mxu0 0
      %1916 = vmatprep.subr.bf16.mxu0 0
      %1917 = vmatpush1.bf16.msra.mxu0 0
      %1918 = vmatprep.subr.bf16.mxu0 0
      %1919 = vmatpush1.bf16.msra.mxu0 0
      %1920 = vmatprep.subr.bf16.mxu0 0
      %1921 = vmatpush1.bf16.msra.mxu0 0
      %1922 = vmatprep.subr.bf16.mxu0 0
      %1923 = vmatpush1.bf16.msra.mxu0 0
      %1924 = vmatprep.subr.bf16.mxu0 0
      %1925 = vmatpush1.bf16.msra.mxu0 0
      %1926 = vmatprep.subr.bf16.mxu0 0
      %1927 = vmatpush1.bf16.msra.mxu0 0
      %1928 = vmatprep.subr.bf16.mxu0 0
      %1929 = vmatpush1.bf16.msra.mxu0 0
      %1930 = vmatprep.subr.bf16.mxu0 0
      %1931 = vmatpush1.bf16.msra.mxu0 0
      %1932 = vmatprep.subr.bf16.mxu0 0
      %1933 = vmatpush1.bf16.msra.mxu0 0
      %1934 = vmatprep.subr.bf16.mxu0 0
      %1935 = vmatpush1.bf16.msra.mxu0 0
      %1936 = vmatprep.subr.bf16.mxu0 0
      %1937 = vmatpush1.bf16.msra.mxu0 0
      %1938 = vmatprep.mubr.bf16.mxu0 0
      %1939 = vmatmul.mubr.bf16.gmra.mrb[0].mxu0 %v677
      %v1940 = vpop.f32.mrb[0].mxu0
      %v1941 = vadd.f32 %v1893, %v1940
      %v1942 = vpop.f32.mrb[0].mxu0
      %v1943 = vpop.f32.mrb[0].mxu0
      %v1944 = vadd.f32 %v1893, %v1943
      %v1945 = vpop.f32.mrb[0].mxu0
      %1946 = vdwg.mxu0
      %v1947 = vpack.c.bf16 %v1944, %v1941
      %v1948 = vpack.c.bf16 %v1814, %v1811
      %v1949 = vpack.c.bf16 %v1879, %v1876
      %v1951 = vsel %vm849, %v1948, 0
      %v1954 = vsel %vm849, %v1949, 0
      %1956 = vmatprep.subr.bf16.mxu0 0
      %1957 = vmatpush1.bf16.xpose.msra.mxu0 %v1954
      %1958 = vmatprep.subr.bf16.mxu0 0
      %1959 = vmatpush1.bf16.xpose.msra.mxu0 0
      %1960 = vmatprep.subr.bf16.mxu0 0
      %1961 = vmatpush1.bf16.xpose.msra.mxu0 0
      %1962 = vmatprep.subr.bf16.mxu0 0
      %1963 = vmatpush1.bf16.xpose.msra.mxu0 0
      %1964 = vmatprep.subr.bf16.mxu0 0
      %1965 = vmatpush1.bf16.xpose.msra.mxu0 0
      %1966 = vmatprep.subr.bf16.mxu0 0
      %1967 = vmatpush1.bf16.xpose.msra.mxu0 0
      %1968 = vmatprep.subr.bf16.mxu0 0
      %1969 = vmatpush1.bf16.xpose.msra.mxu0 0
      %1970 = vmatprep.subr.bf16.mxu0 0
      %1971 = vmatpush1.bf16.xpose.msra.mxu0 0
      %1972 = vmatprep.subr.bf16.mxu0 0
      %1973 = vmatpush1.bf16.xpose.msra.mxu0 0
      %1974 = vmatprep.subr.bf16.mxu0 0
      %1975 = vmatpush1.bf16.xpose.msra.mxu0 0
      %1976 = vmatprep.subr.bf16.mxu0 0
      %1977 = vmatpush1.bf16.xpose.msra.mxu0 0
      %1978 = vmatprep.subr.bf16.mxu0 0
      %1979 = vmatpush1.bf16.xpose.msra.mxu0 0
      %1980 = vmatprep.subr.bf16.mxu0 0
      %1981 = vmatpush1.bf16.xpose.msra.mxu0 0
      %1982 = vmatprep.subr.bf16.mxu0 0
      %1983 = vmatpush1.bf16.xpose.msra.mxu0 0
      %1984 = vmatprep.subr.bf16.mxu0 0
      %1985 = vmatpush1.bf16.xpose.msra.mxu0 0
      %1986 = vmatprep.subr.bf16.mxu0 0
      %1987 = vmatpush1.bf16.xpose.msra.mxu0 0
      %1988 = vmatprep.mubr.bf16.mxu0 0
      %1989 = vmatmul.mubr.bf16.gmra.mrb[0].mxu0 %v1951
      %v1990 = vpop.f32.mrb[0].mxu0
      %v1991 = vadd.f32 0.0, %v1990
      %v1992 = vpop.f32.mrb[0].mxu0
      %v1993 = vpop.f32.mrb[0].mxu0
      %v1994 = vadd.f32 0.0, %v1993
      %v1995 = vpop.f32.mrb[0].mxu0
      %1996 = vdwg.mxu0
      %v1997 = vsel %vm897, %v1991, -inf
      %1998 = vmax.xlane.f32.xlu0 %v1997
      %v1999 = vpop.xlane.xlu0 %1998
      %v2000 = vsel %vm901, %v1994, -inf
      %2001 = vmax.xlane.f32.xlu0 %v2000
      %v2002 = vpop.xlane.xlu0 %2001
      %v2003 = vsub.f32 %v1991, %v1999
      %v2004 = vsub.f32 %v1994, %v2002
      %v2005 = vmul.f32 %v2003, 1.442695
      %v2006 = vpow.pop %v2005
      %v2007 = vmul.f32 %v2004, 1.442695
      %v2008 = vpow.pop %v2007
      %v2009 = vsel %vm897, %v2006, 0.0
      %2010 = vadd.xlane.f32.xlu0 %v2009
      %v2011 = vpop.xlane.xlu0 %2010
      %v2012 = vsel %vm901, %v2008, 0.0
      %2013 = vadd.xlane.f32.xlu0 %v2012
      %v2014 = vpop.xlane.xlu0 %2013
      %v2015 = vrcp.pop %v2011
      %v2016 = vrcp.pop %v2014
      %v2017 = vmul.f32 %v2006, %v2015
      %v2018 = vmul.f32 %v2008, %v2016
      %v2019 = vpack.c.bf16 %v2018, %v2017
      %v2021 = vsel %vm897, %v2019, 0
      %v2024 = vsel %vm925, %v1947, 0
      %2026 = vmatprep.subr.bf16.mxu0 0
      %2027 = vmatpush1.bf16.msra.mxu0 %v2024
      %2028 = vmatprep.subr.bf16.mxu0 0
      %2029 = vmatpush1.bf16.msra.mxu0 0
      %2030 = vmatprep.subr.bf16.mxu0 0
      %2031 = vmatpush1.bf16.msra.mxu0 0
      %2032 = vmatprep.subr.bf16.mxu0 0
      %2033 = vmatpush1.bf16.msra.mxu0 0
      %2034 = vmatprep.subr.bf16.mxu0 0
      %2035 = vmatpush1.bf16.msra.mxu0 0
      %2036 = vmatprep.subr.bf16.mxu0 0
      %2037 = vmatpush1.bf16.msra.mxu0 0
      %2038 = vmatprep.subr.bf16.mxu0 0
      %2039 = vmatpush1.bf16.msra.mxu0 0
      %2040 = vmatprep.subr.bf16.mxu0 0
      %2041 = vmatpush1.bf16.msra.mxu0 0
      %2042 = vmatprep.subr.bf16.mxu0 0
      %2043 = vmatpush1.bf16.msra.mxu0 0
      %2044 = vmatprep.subr.bf16.mxu0 0
      %2045 = vmatpush1.bf16.msra.mxu0 0
      %2046 = vmatprep.subr.bf16.mxu0 0
      %2047 = vmatpush1.bf16.msra.mxu0 0
      %2048 = vmatprep.subr.bf16.mxu0 0
      %2049 = vmatpush1.bf16.msra.mxu0 0
      %2050 = vmatprep.subr.bf16.mxu0 0
      %2051 = vmatpush1.bf16.msra.mxu0 0
      %2052 = vmatprep.subr.bf16.mxu0 0
      %2053 = vmatpush1.bf16.msra.mxu0 0
      %2054 = vmatprep.subr.bf16.mxu0 0
      %2055 = vmatpush1.bf16.msra.mxu0 0
      %2056 = vmatprep.subr.bf16.mxu0 0
      %2057 = vmatpush1.bf16.msra.mxu0 0
      %2058 = vmatprep.mubr.bf16.mxu0 0
      %2059 = vmatmul.mubr.bf16.gmra.mrb[0].mxu0 %v2021
      %v2060 = vpop.f32.mrb[0].mxu0
      %v2061 = vadd.f32 0.0, %v2060
      %v2062 = vpop.f32.mrb[0].mxu0
      %v2063 = vpop.f32.mrb[0].mxu0
      %v2064 = vadd.f32 0.0, %v2063
      %v2065 = vpop.f32.mrb[0].mxu0
      %2066 = vdwg.mxu0
      %v2067 = vpack.c.bf16 %v2064, %v2061
      %s2068 = scalar_lea.vmem %s9, 12
      %v2069 = vld [vmem:[%s2068] sm:$0xf]
      %v2071 = vsel %vm849, %v2067, 0
      %v2074 = vsel %vm1293, %v2069, 0
      %2076 = vmatprep.subr.bf16.mxu0 0
      %2077 = vmatpush1.bf16.msra.mxu0 %v2074
      %2078 = vmatprep.subr.bf16.mxu0 0
      %2079 = vmatpush1.bf16.msra.mxu0 0
      %2080 = vmatprep.subr.bf16.mxu0 0
      %2081 = vmatpush1.bf16.msra.mxu0 0
      %2082 = vmatprep.subr.bf16.mxu0 0
      %2083 = vmatpush1.bf16.msra.mxu0 0
      %2084 = vmatprep.subr.bf16.mxu0 0
      %2085 = vmatpush1.bf16.msra.mxu0 0
      %2086 = vmatprep.subr.bf16.mxu0 0
      %2087 = vmatpush1.bf16.msra.mxu0 0
      %2088 = vmatprep.subr.bf16.mxu0 0
      %2089 = vmatpush1.bf16.msra.mxu0 0
      %2090 = vmatprep.subr.bf16.mxu0 0
      %2091 = vmatpush1.bf16.msra.mxu0 0
      %2092 = vmatprep.subr.bf16.mxu0 0
      %2093 = vmatpush1.bf16.msra.mxu0 0
      %2094 = vmatprep.subr.bf16.mxu0 0
      %2095 = vmatpush1.bf16.msra.mxu0 0
      %2096 = vmatprep.subr.bf16.mxu0 0
      %2097 = vmatpush1.bf16.msra.mxu0 0
      %2098 = vmatprep.subr.bf16.mxu0 0
      %2099 = vmatpush1.bf16.msra.mxu0 0
      %2100 = vmatprep.subr.bf16.mxu0 0
      %2101 = vmatpush1.bf16.msra.mxu0 0
      %2102 = vmatprep.subr.bf16.mxu0 0
      %2103 = vmatpush1.bf16.msra.mxu0 0
      %2104 = vmatprep.subr.bf16.mxu0 0
      %2105 = vmatpush1.bf16.msra.mxu0 0
      %2106 = vmatprep.subr.bf16.mxu0 0
      %2107 = vmatpush1.bf16.msra.mxu0 0
      %2108 = vmatprep.mubr.bf16.mxu0 0
      %2109 = vmatmul.mubr.bf16.gmra.mrb[0].mxu0 %v2071
      %v2110 = vpop.f32.mrb[0].mxu0
      %v2111 = vadd.f32 0.0, %v2110
      %v2112 = vpop.f32.mrb[0].mxu0
      %v2113 = vpop.f32.mrb[0].mxu0
      %v2114 = vadd.f32 0.0, %v2113
      %v2115 = vpop.f32.mrb[0].mxu0
      %2116 = vdwg.mxu0
      %v2117 = vadd.f32 %v1750, %v2111
      %v2118 = vadd.f32 %v1751, %v2114
      %v2119 = vadd.f32 %v606, %v2117
      %v2120 = vadd.f32 %v607, %v2118
      %v2121 = vld [vmem:[%s10] sm:$0x1]
      %v2122 = vunpack.c.l.bf16 %v2121
      %v2123 = vlaneseq
      %v2124 = vshrl.u32 %v2123, 7
      %v2125 = vsub.s32 0, %v2124
      %v2126 = vrot.slane %v2122, %v2125
      %v2127 = vadd.f32 %v2119, %v2126
      %v2128 = vadd.f32 %v2120, %v2126
      %v2129 = vld [vmem:[%s11] sm:$0x1]
      %v2130 = vld [vmem:[%s12] sm:$0x1]
      %v2131 = vsel %vm610, %v2127, 0.0
      %2132 = vadd.xlane.f32.xlu0 %v2131
      %v2133 = vpop.xlane.xlu0 %2132
      %v2134 = vsel %vm614, %v2128, 0.0
      %2135 = vadd.xlane.f32.xlu0 %v2134
      %v2136 = vpop.xlane.xlu0 %2135
      %v2137 = vmul.f32 %v2133, %v618
      %v2138 = vmul.f32 %v2136, %v618
      %v2139 = vsub.f32 %v2127, %v2137
      %v2140 = vsub.f32 %v2128, %v2138
      %v2141 = vmul.f32 %v2139, %v2139
      %v2142 = vmul.f32 %v2140, %v2140
      %v2143 = vsel %vm610, %v2141, 0.0
      %2144 = vadd.xlane.f32.xlu0 %v2143
      %v2145 = vpop.xlane.xlu0 %2144
      %v2146 = vsel %vm614, %v2142, 0.0
      %2147 = vadd.xlane.f32.xlu0 %v2146
      %v2148 = vpop.xlane.xlu0 %2147
      %v2149 = vmul.f32 %v2145, %v618
      %v2150 = vmul.f32 %v2148, %v618
      %v2151 = vadd.f32 %v2149, 1e-05
      %v2152 = vadd.f32 %v2150, 1e-05
      %v2153 = vrsqrt.pop %v2151
      %v2154 = vrsqrt.pop %v2152
      %v2155 = vmul.f32 %v2139, %v2153
      %v2156 = vmul.f32 %v2140, %v2154
      %v2157 = vunpack.c.l.bf16 %v2129
      %v2158 = vlaneseq
      %v2159 = vshrl.u32 %v2158, 7
      %v2160 = vsub.s32 0, %v2159
      %v2161 = vrot.slane %v2157, %v2160
      %v2162 = vmul.f32 %v2155, %v2161
      %v2163 = vmul.f32 %v2156, %v2161
      %v2164 = vunpack.c.l.bf16 %v2130
      %v2165 = vlaneseq
      %v2166 = vshrl.u32 %v2165, 7
      %v2167 = vsub.s32 0, %v2166
      %v2168 = vrot.slane %v2164, %v2167
      %v2169 = vadd.f32 %v2162, %v2168
      %v2170 = vadd.f32 %v2163, %v2168
      %v2171 = vpack.c.bf16 %v2170, %v2169
      %v2172 = vld [vmem:[%s13] sm:$0xf]
      %v2173 = vld [vmem:[%s13 + $0x4] sm:$0xf]
      %v2174 = vld [vmem:[%s13 + $0x8] sm:$0xf]
      %v2175 = vld [vmem:[%s13 + $0xc] sm:$0xf]
      %v2176 = vld [vmem:[%s14] sm:$0x1]
      %v2177 = vunpack.c.l.bf16 %v2176
      %v2178 = vlaneseq
      %v2179 = vshrl.u32 %v2178, 7
      %v2180 = vsub.s32 0, %v2179
      %v2181 = vrot.slane %v2177, %v2180
      %v2186 = vunpack.c.l.b16 %v2172
      %v2187 = vunpack.c.l.b16 %v2173
      %v2188 = vunpack.c.l.b16 %v2174
      %v2189 = vunpack.c.l.b16 %v2175
      %v2190 = vpack.c.b16 %v2187, %v2186
      %v2191 = vpack.c.b16 %v2189, %v2188
      %v2195 = vsel %vm610, %v2171, 0
      %2197 = vmatprep.subr.bf16.mxu0 0
      %2198 = vmatpush1.bf16.msra.mxu0 %v2190
      %2199 = vmatprep.subr.bf16.mxu0 0
      %2200 = vmatpush1.bf16.msra.mxu0 %v2191
      %2201 = vmatprep.subr.bf16.mxu0 0
      %2202 = vmatpush1.bf16.msra.mxu0 0
      %2203 = vmatprep.subr.bf16.mxu0 0
      %2204 = vmatpush1.bf16.msra.mxu0 0
      %2205 = vmatprep.subr.bf16.mxu0 0
      %2206 = vmatpush1.bf16.msra.mxu0 0
      %2207 = vmatprep.subr.bf16.mxu0 0
      %2208 = vmatpush1.bf16.msra.mxu0 0
      %2209 = vmatprep.subr.bf16.mxu0 0
      %2210 = vmatpush1.bf16.msra.mxu0 0
      %2211 = vmatprep.subr.bf16.mxu0 0
      %2212 = vmatpush1.bf16.msra.mxu0 0
      %2213 = vmatprep.subr.bf16.mxu0 0
      %2214 = vmatpush1.bf16.msra.mxu0 0
      %2215 = vmatprep.subr.bf16.mxu0 0
      %2216 = vmatpush1.bf16.msra.mxu0 0
      %2217 = vmatprep.subr.bf16.mxu0 0
      %2218 = vmatpush1.bf16.msra.mxu0 0
      %2219 = vmatprep.subr.bf16.mxu0 0
      %2220 = vmatpush1.bf16.msra.mxu0 0
      %2221 = vmatprep.subr.bf16.mxu0 0
      %2222 = vmatpush1.bf16.msra.mxu0 0
      %2223 = vmatprep.subr.bf16.mxu0 0
      %2224 = vmatpush1.bf16.msra.mxu0 0
      %2225 = vmatprep.subr.bf16.mxu0 0
      %2226 = vmatpush1.bf16.msra.mxu0 0
      %2227 = vmatprep.subr.bf16.mxu0 0
      %2228 = vmatpush1.bf16.msra.mxu0 0
      %2229 = vmatprep.mubr.bf16.mxu0 0
      %2230 = vmatmul.mubr.bf16.gmra.mrb[0].mxu0 %v2195
      %v2231 = vpop.f32.mrb[0].mxu0
      %v2232 = vadd.f32 %v2181, %v2231
      %v2233 = vpop.f32.mrb[0].mxu0
      %v2234 = vpop.f32.mrb[0].mxu0
      %v2235 = vadd.f32 %v2181, %v2234
      %v2236 = vpop.f32.mrb[0].mxu0
      %2237 = vdwg.mxu0
      %v2238 = vxor.u32 %v2232, 2147483648
      %v2239 = vxor.u32 %v2235, 2147483648
      %v2240 = vmul.f32 %v2238, 1.442695
      %v2241 = vpow.pop %v2240
      %v2242 = vmul.f32 %v2239, 1.442695
      %v2243 = vpow.pop %v2242
      %v2244 = vadd.f32 %v2241, 1.0
      %v2245 = vadd.f32 %v2243, 1.0
      %v2246 = vrcp.pop %v2244
      %v2247 = vmul.f32 1.0, %v2246
      %v2248 = vrcp.pop %v2245
      %v2249 = vmul.f32 1.0, %v2248
      %v2250 = vmul.f32 %v2232, %v2247
      %v2251 = vmul.f32 %v2235, %v2249
      %v2252 = vld [vmem:[%s15] sm:$0xf]
      %v2253 = vld [vmem:[%s15 + $0x4] sm:$0xf]
      %v2254 = vld [vmem:[%s15 + $0x8] sm:$0xf]
      %v2255 = vld [vmem:[%s15 + $0xc] sm:$0xf]
      %v2256 = vld [vmem:[%s16] sm:$0x1]
      %v2257 = vunpack.c.l.bf16 %v2256
      %v2258 = vlaneseq
      %v2259 = vshrl.u32 %v2258, 7
      %v2260 = vsub.s32 0, %v2259
      %v2261 = vrot.slane %v2257, %v2260
      %v2266 = vunpack.c.l.b16 %v2252
      %v2267 = vunpack.c.l.b16 %v2253
      %v2268 = vunpack.c.l.b16 %v2254
      %v2269 = vunpack.c.l.b16 %v2255
      %v2270 = vpack.c.b16 %v2267, %v2266
      %v2271 = vpack.c.b16 %v2269, %v2268
      %2274 = vmatprep.subr.bf16.mxu0 0
      %2275 = vmatpush1.bf16.msra.mxu0 %v2270
      %2276 = vmatprep.subr.bf16.mxu0 0
      %2277 = vmatpush1.bf16.msra.mxu0 %v2271
      %2278 = vmatprep.subr.bf16.mxu0 0
      %2279 = vmatpush1.bf16.msra.mxu0 0
      %2280 = vmatprep.subr.bf16.mxu0 0
      %2281 = vmatpush1.bf16.msra.mxu0 0
      %2282 = vmatprep.subr.bf16.mxu0 0
      %2283 = vmatpush1.bf16.msra.mxu0 0
      %2284 = vmatprep.subr.bf16.mxu0 0
      %2285 = vmatpush1.bf16.msra.mxu0 0
      %2286 = vmatprep.subr.bf16.mxu0 0
      %2287 = vmatpush1.bf16.msra.mxu0 0
      %2288 = vmatprep.subr.bf16.mxu0 0
      %2289 = vmatpush1.bf16.msra.mxu0 0
      %2290 = vmatprep.subr.bf16.mxu0 0
      %2291 = vmatpush1.bf16.msra.mxu0 0
      %2292 = vmatprep.subr.bf16.mxu0 0
      %2293 = vmatpush1.bf16.msra.mxu0 0
      %2294 = vmatprep.subr.bf16.mxu0 0
      %2295 = vmatpush1.bf16.msra.mxu0 0
      %2296 = vmatprep.subr.bf16.mxu0 0
      %2297 = vmatpush1.bf16.msra.mxu0 0
      %2298 = vmatprep.subr.bf16.mxu0 0
      %2299 = vmatpush1.bf16.msra.mxu0 0
      %2300 = vmatprep.subr.bf16.mxu0 0
      %2301 = vmatpush1.bf16.msra.mxu0 0
      %2302 = vmatprep.subr.bf16.mxu0 0
      %2303 = vmatpush1.bf16.msra.mxu0 0
      %2304 = vmatprep.subr.bf16.mxu0 0
      %2305 = vmatpush1.bf16.msra.mxu0 0
      %2306 = vmatprep.mubr.bf16.mxu0 0
      %2307 = vmatmul.mubr.bf16.gmra.mrb[0].mxu0 %v2195
      %v2308 = vpop.f32.mrb[0].mxu0
      %v2309 = vadd.f32 %v2261, %v2308
      %v2310 = vpop.f32.mrb[0].mxu0
      %v2311 = vpop.f32.mrb[0].mxu0
      %v2312 = vadd.f32 %v2261, %v2311
      %v2313 = vpop.f32.mrb[0].mxu0
      %2314 = vdwg.mxu0
      %v2315 = vmul.f32 %v2250, %v2309
      %v2316 = vmul.f32 %v2251, %v2312
      %v2317 = vpack.c.bf16 %v2316, %v2315
      %v2318 = vld [vmem:[%s17] sm:$0xf]
      %v2319 = vld [vmem:[%s17 + $0x4] sm:$0xf]
      %v2320 = vld [vmem:[%s17 + $0x8] sm:$0xf]
      %v2321 = vld [vmem:[%s17 + $0xc] sm:$0xf]
      %v2322 = vld [vmem:[%s17 + $0x10] sm:$0xf]
      %v2323 = vld [vmem:[%s17 + $0x14] sm:$0xf]
      %v2324 = vld [vmem:[%s17 + $0x18] sm:$0xf]
      %v2325 = vld [vmem:[%s17 + $0x1c] sm:$0xf]
      %v2326 = vld [vmem:[%s18] sm:$0x1]
      %v2327 = vunpack.c.l.bf16 %v2326
      %v2328 = vlaneseq
      %v2329 = vshrl.u32 %v2328, 7
      %v2330 = vsub.s32 0, %v2329
      %v2331 = vrot.slane %v2327, %v2330
      %v2340 = vunpack.c.l.b16 %v2318
      %v2341 = vunpack.c.l.b16 %v2319
      %v2342 = vunpack.c.l.b16 %v2320
      %v2343 = vunpack.c.l.b16 %v2321
      %v2344 = vunpack.c.l.b16 %v2322
      %v2345 = vunpack.c.l.b16 %v2323
      %v2346 = vunpack.c.l.b16 %v2324
      %v2347 = vunpack.c.l.b16 %v2325
      %v2348 = vpack.c.b16 %v2341, %v2340
      %v2349 = vpack.c.b16 %v2343, %v2342
      %v2350 = vpack.c.b16 %v2345, %v2344
      %v2351 = vpack.c.b16 %v2347, %v2346
      %vm2356 = vcmask 523264
      %v2358 = vsel %vm2356, %v2317, 0
      %2360 = vmatprep.subr.bf16.mxu0 0
      %2361 = vmatpush1.bf16.msra.mxu0 %v2348
      %2362 = vmatprep.subr.bf16.mxu0 0
      %2363 = vmatpush1.bf16.msra.mxu0 %v2349
      %2364 = vmatprep.subr.bf16.mxu0 0
      %2365 = vmatpush1.bf16.msra.mxu0 %v2350
      %2366 = vmatprep.subr.bf16.mxu0 0
      %2367 = vmatpush1.bf16.msra.mxu0 %v2351
      %2368 = vmatprep.subr.bf16.mxu0 0
      %2369 = vmatpush1.bf16.msra.mxu0 0
      %2370 = vmatprep.subr.bf16.mxu0 0
      %2371 = vmatpush1.bf16.msra.mxu0 0
      %2372 = vmatprep.subr.bf16.mxu0 0
      %2373 = vmatpush1.bf16.msra.mxu0 0
      %2374 = vmatprep.subr.bf16.mxu0 0
      %2375 = vmatpush1.bf16.msra.mxu0 0
      %2376 = vmatprep.subr.bf16.mxu0 0
      %2377 = vmatpush1.bf16.msra.mxu0 0
      %2378 = vmatprep.subr.bf16.mxu0 0
      %2379 = vmatpush1.bf16.msra.mxu0 0
      %2380 = vmatprep.subr.bf16.mxu0 0
      %2381 = vmatpush1.bf16.msra.mxu0 0
      %2382 = vmatprep.subr.bf16.mxu0 0
      %2383 = vmatpush1.bf16.msra.mxu0 0
      %2384 = vmatprep.subr.bf16.mxu0 0
      %2385 = vmatpush1.bf16.msra.mxu0 0
      %2386 = vmatprep.subr.bf16.mxu0 0
      %2387 = vmatpush1.bf16.msra.mxu0 0
      %2388 = vmatprep.subr.bf16.mxu0 0
      %2389 = vmatpush1.bf16.msra.mxu0 0
      %2390 = vmatprep.subr.bf16.mxu0 0
      %2391 = vmatpush1.bf16.msra.mxu0 0
      %2392 = vmatprep.mubr.bf16.mxu0 0
      %2393 = vmatmul.mubr.bf16.gmra.mrb[0].mxu0 %v2358
      %v2394 = vpop.f32.mrb[0].mxu0
      %v2395 = vadd.f32 %v2331, %v2394
      %v2396 = vpop.f32.mrb[0].mxu0
      %v2397 = vpop.f32.mrb[0].mxu0
      %v2398 = vadd.f32 %v2331, %v2397
      %v2399 = vpop.f32.mrb[0].mxu0
      %2400 = vdwg.mxu0
      %v2401 = vadd.f32 %v2127, %v2395
      %v2402 = vadd.f32 %v2128, %v2398
      %v2403 = vpack.c.bf16 %v2402, %v2401
      %v2405 = vunpack.c.l.b16 %v2403
      %v2406 = vunpack.c.h.b16 %v2403
      %v2407 = vpack.c.b16 %v2405, %v2405
      %v2408 = vpack.c.b16 %v2406, %v2406
      %vm2411 = vcmask 257024
      %2412 = vst.msk [vmem:[%s602] sm:$0xf] %vm2411, %v2407
      %vm2413 = vcmask 253952
      %2414 = vst.msk [vmem:[%s602 + $0x4] sm:$0x1] %vm2413, %v2408
      %p2415 = scmp.lt.s32.totalorder %s30, 1
      %s2416 = scalar_select %p2415, %s30, 1
      %s2417 = smul.addr %s2416, 2
      %s2418 = smul.addr %s2417, 4
      %s2419 = scalar_lea.vmem %s19, %s2418
      // Predicated region
      $region97: #{transformer_forward.5} parent=95 // pred_check
        %p2420 = pneg %p452
      $region98: #{transformer_forward.5} parent=95 // pred_check_branch
        %2422 = sbr.rel (%p2420) target = $region100
      $region99: #{transformer_forward.5} parent=95 // pred_region
        _
      $region100: #{transformer_forward.5} parent=95 // pred_fallthru
        _
    $region96: #{transformer_forward.5} parent=5 // pred_fallthru
      _
    %p2423 = scmp.le.s32.totalorder 2, %s25
    // Predicated region
    $region101: #{transformer_forward.5} parent=5 // pred_check
      %p2424 = pneg %p2423
    $region102: #{transformer_forward.5} parent=5 // pred_check_branch
      %2426 = sbr.rel (%p2424) target = $region104
    $region103: #{transformer_forward.5} parent=5 // pred_region
      %s2427 = ssub.s32 %s25, 2
      // Predicated region
      $region105: #{transformer_forward.5} parent=103 // pred_check
        %p2428 = pneg %p458
      $region106: #{transformer_forward.5} parent=103 // pred_check_branch
        %2430 = sbr.rel (%p2428) target = $region108
      $region107: #{transformer_forward.5} parent=103 // pred_region
        %p2431 = scmp.lt.s32.totalorder %s31, 1
        %s2432 = scalar_select %p2431, %s31, 1
        %s2433 = smul.addr %s2432, 2
        %s2434 = smul.addr %s2433, 4
        %s2435 = scalar_lea.vmem %s19, %s2434
      $region108: #{transformer_forward.5} parent=103 // pred_fallthru
        _
    $region104: #{transformer_forward.5} parent=5 // pred_fallthru
      _
  $region6: #{transformer_forward.5} parent=0 // loop_footer
    %s29 = sadd.s32 1, %s25
  $region7: #{transformer_forward.5} parent=0 // loop_footer_branch
    %24 = sbr.rel target = $region3
  $region8: #{transformer_forward.5} parent=0 // loop_exit
    _

</llo_original>
